<compile_context>
chip_gen: v7x
topology: tpu7x:2x2x1
jax: 0.10.0
libtpu: 0.0.40
codegen_flags: <defaults>
</compile_context>

<pallas_src>
import functools

import jax
import jax.numpy as jnp
from jax.experimental import pallas as pl
from jax.experimental.pallas import tpu as pltpu


def _round_up(x, m):
    return (x + m - 1) // m * m


def _pick_bb(bp):
    """Decode batch-block size: multiple of 8 that divides bp, >=2 blocks when bp>=16."""
    if bp <= 16:
        return bp
    for bb in range(_round_up(bp // 2, 8), 7, -8):
        if bp % bb == 0:
            return bb
    return bp


_TL = 8   # decode time-block: amortizes grid-step overhead over _TL LSTM steps
_EB = 8   # encoder batch-block: keeps per-block VMEM small (v5e 16MiB / v7x 64MiB safe)


# ---------------------------------------------------------------------------
# Kernel 1: encoder (two FCs + mask) + masked temporal mean + fused
#           [W_h0 | W_c0 | W_vh] projection.  grid over batch blocks ("parallel").
# ---------------------------------------------------------------------------
def _encode_kernel(rgb_ref, op_ref, fmask_ref,
                   w_rgb_ref, b_rgb_ref, w_op_ref, b_op_ref,
                   w6_ref, b6_ref,
                   h0_ref, c0_ref, ctxg_ref, *, eb, t_len, rnn):
    dr = rgb_ref.shape[-1]
    do = op_ref.shape[-1]

    rgb2 = rgb_ref[...].reshape(eb * t_len, dr)          # bf16
    op2 = op_ref[...].reshape(eb * t_len, do)            # bf16
    enc = (jnp.dot(rgb2, w_rgb_ref[...], preferred_element_type=jnp.float32)
           + b_rgb_ref[...]
           + jnp.dot(op2, w_op_ref[...], preferred_element_type=jnp.float32)
           + b_op_ref[...])                              # (eb*t_len, rnn) f32

    fm = fmask_ref[...]                                   # (eb, t_len, 1) f32
    enc = enc * fm.reshape(eb * t_len, 1)                 # masked encoded feats

    # init_hidden: mask-weighted mean over frames (no kron matmul, plain reduce)
    feat_sum = jnp.sum(enc.reshape(eb, t_len, rnn), axis=1)   # (eb, rnn)
    mask_sum = jnp.sum(fm, axis=1)                            # (eb, 1)
    feat_mean = feat_sum / jnp.maximum(mask_sum, 1.0)         # clamp: padded rows

    # one wide matmul: [h0 | c0 | ctx_gate(+b_lstm)]
    hm = (jnp.dot(feat_mean, w6_ref[...], preferred_element_type=jnp.float32)
          + b6_ref[...])                                  # (eb, 6*rnn)
    h0_ref[...] = hm[:, 0 * rnn:1 * rnn]
    c0_ref[...] = hm[:, 1 * rnn:2 * rnn]
    ctxg_ref[...] = hm[:, 2 * rnn:6 * rnn]


# ---------------------------------------------------------------------------
# Kernel 2: fused decode — TL masked LSTM steps per grid step, batched
#           x@W_ih + batched logits/log_softmax, h/c carried in VMEM scratch.
#           grid = (batch blocks "parallel", time blocks "arbitrary").
# ---------------------------------------------------------------------------
def _decode_kernel(emb_ref, mask_ref, h0_ref, c0_ref, ctxg_ref,
                   w_ih_ref, w_hh_ref, w_logit_ref, b_logit_ref,
                   logp_ref, h_scr, c_scr, *, tl, bb, rnn):
    @pl.when(pl.program_id(1) == 0)
    def _():
        h_scr[...] = h0_ref[...]
        c_scr[...] = c0_ref[...]

    e_dim = emb_ref.shape[-1]
    ctxg = ctxg_ref[...]                                  # (bb, 4*rnn)  resident
    w_hh = w_hh_ref[...]                                  # (rnn, 4*rnn) resident

    # all TL token embeddings -> input-gate contributions in ONE matmul
    xg = jnp.dot(emb_ref[...].reshape(tl * bb, e_dim), w_ih_ref[...],
                 preferred_element_type=jnp.float32)      # (tl*bb, 4*rnn)

    h = h_scr[...]
    c = c_scr[...]
    hs = []
    for t in range(tl):                                   # static unroll: 1 MXU op/step
        m = mask_ref[t]                                   # (bb, 1)
        gates = (xg[t * bb:(t + 1) * bb, :] + ctxg
                 + jnp.dot(h, w_hh, preferred_element_type=jnp.float32))
        i_g = jax.nn.sigmoid(gates[:, 0 * rnn:1 * rnn])
        f_g = jax.nn.sigmoid(gates[:, 1 * rnn:2 * rnn])
        g_g = jnp.tanh(gates[:, 2 * rnn:3 * rnn])
        o_g = jax.nn.sigmoid(gates[:, 3 * rnn:4 * rnn])
        c_new = f_g * c + i_g * g_g
        h_new = o_g * jnp.tanh(c_new)
        # masked update: positions with xt_mask == 0 keep their previous state
        c = m * c_new + (1.0 - m) * c
        h = m * h_new + (1.0 - m) * h
        hs.append(h)
    h_scr[...] = h
    c_scr[...] = c

    # batched logits + log_softmax for the whole time block (lane-dense store;
    # padded classes carry a -1e30 f32 bias -> ~0 probability)
    hcat = jnp.concatenate(hs, axis=0)                    # (tl*bb, rnn)
    logits = (jnp.dot(hcat, w_logit_ref[...], preferred_element_type=jnp.float32)
              + b_logit_ref[...])                         # (tl*bb, Cp)
    z = logits - jnp.max(logits, axis=-1, keepdims=True)
    lp = z - jnp.log(jnp.sum(jnp.exp(z), axis=-1, keepdims=True))
    logp_ref[...] = lp.reshape(tl, bb, logits.shape[-1])


# ---------------------------------------------------------------------------
# Static-shape forward (jitted end-to-end; no host sync, no per-L recompiles)
# ---------------------------------------------------------------------------
def _forward_impl(params, feats_rgb, feats_opfl, feat_mask, cap_classes, new_mask):
    B, T, Dr = feats_rgb.shape
    Do = feats_opfl.shape[-1]
    L = cap_classes.shape[1]
    R = params["w_hh"].shape[0]
    G = 4 * R
    E = params["w_ih"].shape[0]
    C = params["w_logit"].shape[1]

    Bp = _round_up(B, 8)                 # sublane-pad the batch
    Cp = _round_up(C, 128)               # lane-pad the class dim
    Lp = _round_up(L, _TL)               # time padded to the decode time-block
    BB = _pick_bb(Bp)
    EB = min(_EB, Bp)

    pad_b = Bp - B
    # encoder matmul operands streamed as bf16 (f32 accumulate & elementwise math)
    rgb_p = jnp.pad(feats_rgb, ((0, pad_b), (0, 0), (0, 0))).astype(jnp.bfloat16)
    op_p = jnp.pad(feats_opfl, ((0, pad_b), (0, 0), (0, 0))).astype(jnp.bfloat16)
    fmask_p = jnp.pad(feat_mask.astype(jnp.float32), ((0, pad_b), (0, 0)))[..., None]

    cap_p = jnp.pad(cap_classes, ((0, pad_b), (0, Lp - L)))
    nmask_p = jnp.pad(new_mask.astype(jnp.float32), ((0, pad_b), (0, Lp - L)))

    # whole-sequence embedding lookup (single gather), time-major for the decode grid
    emb = jnp.take(params["embed"], cap_p, axis=0)            # (Bp, Lp, E)
    emb_t = jnp.transpose(emb, (1, 0, 2))                     # (Lp, Bp, E)
    mask_t = jnp.transpose(nmask_p)[:, :, None]               # (Lp, Bp, 1)

    w_rgb = params["w_rgb"].astype(jnp.bfloat16)
    w_opfl = params["w_opfl"].astype(jnp.bfloat16)
    # fused init/context projection weights: one (R, 6R) matmul instead of three
    w6 = jnp.concatenate([params["w_h0"], params["w_c0"], params["w_vh"]], axis=1)
    b6 = jnp.concatenate([params["b_h0"], params["b_c0"], params["b_lstm"]], axis=1)

    # lane-pad logit weights; padded classes get -1e30 bias (keep f32!)
    w_logit_p = jnp.pad(params["w_logit"], ((0, 0), (0, Cp - C)))
    b_logit_p = jnp.pad(params["b_logit"], ((0, 0), (0, Cp - C)),
                        constant_values=-1e30)

    # ---- kernel 1: encoder + init_hidden + ctx_gate ----
    enc_kernel = functools.partial(_encode_kernel, eb=EB, t_len=T, rnn=R)
    h0, c0, ctxg = pl.pallas_call(
        enc_kernel,
        out_shape=(jax.ShapeDtypeStruct((Bp, R), jnp.float32),
                   jax.ShapeDtypeStruct((Bp, R), jnp.float32),
                   jax.ShapeDtypeStruct((Bp, G), jnp.float32)),
        grid=(Bp // EB,),
        in_specs=[
            pl.BlockSpec((EB, T, Dr), lambda e: (e, 0, 0)),   # rgb block (bf16)
            pl.BlockSpec((EB, T, Do), lambda e: (e, 0, 0)),   # opfl block (bf16)
            pl.BlockSpec((EB, T, 1), lambda e: (e, 0, 0)),    # feat_mask block
            pl.BlockSpec((Dr, R), lambda e: (0, 0)),          # w_rgb   (resident)
            pl.BlockSpec((1, R), lambda e: (0, 0)),           # b_rgb
            pl.BlockSpec((Do, R), lambda e: (0, 0)),          # w_opfl  (resident)
            pl.BlockSpec((1, R), lambda e: (0, 0)),           # b_opfl
            pl.BlockSpec((R, 6 * R), lambda e: (0, 0)),       # [W_h0|W_c0|W_vh]
            pl.BlockSpec((1, 6 * R), lambda e: (0, 0)),       # [b_h0|b_c0|b_lstm]
        ],
        out_specs=(pl.BlockSpec((EB, R), lambda e: (e, 0)),
                   pl.BlockSpec((EB, R), lambda e: (e, 0)),
                   pl.BlockSpec((EB, G), lambda e: (e, 0))),
        compiler_params=pltpu.CompilerParams(
            dimension_semantics=("parallel",)),
    )(rgb_p, op_p, fmask_p, w_rgb, params["b_rgb"], w_opfl, params["b_opfl"],
      w6, b6)

    # ---- kernel 2: fused decode loop ----
    dec_kernel = functools.partial(_decode_kernel, tl=_TL, bb=BB, rnn=R)
    logp = pl.pallas_call(
        dec_kernel,
        out_shape=jax.ShapeDtypeStruct((Lp, Bp, Cp), jnp.float32),
        grid=(Bp // BB, Lp // _TL),
        in_specs=[
            pl.BlockSpec((_TL, BB, E), lambda b, t: (t, b, 0)),  # token embeds
            pl.BlockSpec((_TL, BB, 1), lambda b, t: (t, b, 0)),  # token mask
            pl.BlockSpec((BB, R), lambda b, t: (b, 0)),          # h0
            pl.BlockSpec((BB, R), lambda b, t: (b, 0)),          # c0
            pl.BlockSpec((BB, G), lambda b, t: (b, 0)),          # ctx_gate
            pl.BlockSpec((E, G), lambda b, t: (0, 0)),           # W_ih    (resident)
            pl.BlockSpec((R, G), lambda b, t: (0, 0)),           # W_hh    (resident)
            pl.BlockSpec((R, Cp), lambda b, t: (0, 0)),          # W_logit (resident)
            pl.BlockSpec((1, Cp), lambda b, t: (0, 0)),          # b_logit (resident)
        ],
        out_specs=pl.BlockSpec((_TL, BB, Cp), lambda b, t: (t, b, 0)),
        scratch_shapes=[pltpu.VMEM((BB, R), jnp.float32),
                        pltpu.VMEM((BB, R), jnp.float32)],
        compiler_params=pltpu.CompilerParams(
            dimension_semantics=("parallel", "arbitrary")),
    )(emb_t, mask_t, h0, c0, ctxg,
      params["w_ih"], params["w_hh"], w_logit_p, b_logit_p)

    # (B, L, C) — padded batch rows / time steps / classes stripped
    return jnp.transpose(logp, (1, 0, 2))[:B, :L, :C]


_forward_jit = jax.jit(_forward_impl)


# ---------------------------------------------------------------------------
# Pos_generator.forward equivalent
# ---------------------------------------------------------------------------
def pos_generator_forward(params, feats_rgb, feats_opfl, feat_mask,
                          seq, seq_mask, cap_classes, new_mask):
    # forward() overrides: seq = cap_classes ; seq_mask = new_mask
    del seq, seq_mask
    L = cap_classes.shape[1]

    # static-length fused forward (dispatched async; no shape-dependent recompiles)
    ret_full = _forward_jit(params, feats_rgb, feats_opfl, feat_mask,
                            cap_classes, new_mask)

    # PyTorch early-break: trailing steps are inert in-kernel (xt_mask == 0);
    # the break index is only needed to slice the returned tensor.  The tiny
    # host read overlaps the in-flight forward computation.
    col_sums = jax.device_get(jnp.sum(cap_classes, axis=0))
    L_used = L
    for i in range(1, L):
        if int(col_sums[i]) == 0:
            L_used = i
            break
    return ret_full[:, :L_used, :]


# ---------------------------------------------------------------------------
# Deterministic parameter construction
# ---------------------------------------------------------------------------
def make_params(key, d_rgb, d_opfl, rnn_size, word_embed_size, category_size):
    ks = jax.random.split(key, 12)
    u = lambda k, s: jax.random.uniform(k, s, jnp.float32, -0.1, 0.1)
    R, E, C = rnn_size, word_embed_size, category_size
    return {
        # encoder (two fc)
        "w_rgb":   u(ks[0], (d_rgb, R)),
        "b_rgb":   jnp.zeros((1, R), jnp.float32),
        "w_opfl":  u(ks[1], (d_opfl, R)),
        "b_opfl":  jnp.zeros((1, R), jnp.float32),
        # init_hidden linears
        "w_h0":    u(ks[2], (R, R)),
        "b_h0":    jnp.zeros((1, R), jnp.float32),
        "w_c0":    u(ks[3], (R, R)),
        "b_c0":    jnp.zeros((1, R), jnp.float32),
        # decoder LSTM cell
        "w_ih":    u(ks[4], (E, 4 * R)),
        "w_hh":    u(ks[5], (R, 4 * R)),
        "w_vh":    u(ks[6], (R, 4 * R)),
        "b_lstm":  jnp.zeros((1, 4 * R), jnp.float32),
        # embedding + logit (init_weights: uniform(-0.1, 0.1), bias 0)
        "embed":   u(ks[7], (C, E)),
        "w_logit": u(ks[8], (R, C)),
        "b_logit": jnp.zeros((1, C), jnp.float32),
    }


if __name__ == "__main__":
    # small shapes consistent with the module (lane-friendly where possible)
    B, T = 2, 8                    # batch, video frames
    D_RGB, D_OPFL = 128, 128       # raw visual feature dims
    RNN, EMB, CAT = 128, 32, 16    # rnn_size, word_embed_size, category_size
    SEQ_LEN = 6                    # seq_length

    key = jax.random.PRNGKey(0)
    k_par, k_rgb, k_op, k_cap = jax.random.split(key, 4)

    params = make_params(k_par, D_RGB, D_OPFL, RNN, EMB, CAT)

    feats_rgb = jax.random.normal(k_rgb, (B, T, D_RGB), jnp.float32)
    feats_opfl = jax.random.normal(k_op, (B, T, D_OPFL), jnp.float32)
    feat_mask = jnp.concatenate(
        [jnp.ones((B, T - 2), jnp.float32), jnp.zeros((B, 2), jnp.float32)], axis=1)

    # caption class ids: nonzero for the first 4 steps, zero afterwards (tests early break)
    cap_classes = jax.random.randint(k_cap, (B, SEQ_LEN), 1, CAT).astype(jnp.int32)
    cap_classes = cap_classes.at[:, 4:].set(0)
    new_mask = (cap_classes > 0).astype(jnp.float32)
    new_mask = new_mask.at[:, 0].set(1.0)

    # unused (overridden inside forward), kept for signature parity
    seq = cap_classes
    seq_mask = new_mask

    ret = pos_generator_forward(params, feats_rgb, feats_opfl, feat_mask,
                                seq, seq_mask, cap_classes, new_mask)
    ret = jax.block_until_ready(ret)

    assert ret.shape == (B, 4, CAT), ret.shape
    # each row of log-probs should (approximately) exp-sum to 1 over real classes
    assert bool(jnp.all(jnp.abs(jnp.sum(jnp.exp(ret), axis=-1) - 1.0) < 1e-3))
    assert bool(jnp.all(jnp.isfinite(ret)))
    print("KERNEL_OK")
</pallas_src>

<mosaic_0001>
module attributes {stable_mosaic.version = 11 : i64} {
  func.func @_encode_kernel(%arg0: i32, %arg1: memref<8x8x128xbf16, #tpu.memory_space<vmem>>, %arg2: memref<8x8x128xbf16, #tpu.memory_space<vmem>>, %arg3: memref<8x8x1xf32, #tpu.memory_space<vmem>>, %arg4: memref<128x128xbf16, #tpu.memory_space<vmem>>, %arg5: memref<1x128xf32, #tpu.memory_space<vmem>>, %arg6: memref<128x128xbf16, #tpu.memory_space<vmem>>, %arg7: memref<1x128xf32, #tpu.memory_space<vmem>>, %arg8: memref<128x768xf32, #tpu.memory_space<vmem>>, %arg9: memref<1x768xf32, #tpu.memory_space<vmem>>, %arg10: memref<8x128xf32, #tpu.memory_space<vmem>>, %arg11: memref<8x128xf32, #tpu.memory_space<vmem>>, %arg12: memref<8x512xf32, #tpu.memory_space<vmem>>) attributes {dimension_semantics = [#tpu.dimension_semantics<parallel>], iteration_bounds = array<i64: 1>, scalar_prefetch = 0 : i64, scratch_operands = 0 : i64, tpu.core_type = #tpu.core_type<tc>, window_params = [{transform_indices = @transform_0, window_bounds = array<i64: 8, 8, 128>}, {transform_indices = @transform_1, window_bounds = array<i64: 8, 8, 128>}, {transform_indices = @transform_2, window_bounds = array<i64: 8, 8, 1>}, {pipeline_mode = #tpu.pipeline_mode<synchronous>, transform_indices = @transform_3, window_bounds = array<i64: 128, 128>}, {pipeline_mode = #tpu.pipeline_mode<synchronous>, transform_indices = @transform_4, window_bounds = array<i64: 1, 128>}, {pipeline_mode = #tpu.pipeline_mode<synchronous>, transform_indices = @transform_5, window_bounds = array<i64: 128, 128>}, {pipeline_mode = #tpu.pipeline_mode<synchronous>, transform_indices = @transform_6, window_bounds = array<i64: 1, 128>}, {pipeline_mode = #tpu.pipeline_mode<synchronous>, transform_indices = @transform_7, window_bounds = array<i64: 128, 768>}, {pipeline_mode = #tpu.pipeline_mode<synchronous>, transform_indices = @transform_8, window_bounds = array<i64: 1, 768>}, {transform_indices = @transform_9, window_bounds = array<i64: 8, 128>}, {transform_indices = @transform_10, window_bounds = array<i64: 8, 128>}, {transform_indices = @transform_11, window_bounds = array<i64: 8, 512>}]} {
    %c0 = arith.constant 0 : index
    %c0_0 = arith.constant 0 : index
    %c0_1 = arith.constant 0 : index
    %0 = vector.load %arg1[%c0, %c0_0, %c0_1] : memref<8x8x128xbf16, #tpu.memory_space<vmem>>, vector<8x8x128xbf16>
    %1 = vector.shape_cast %0 : vector<8x8x128xbf16> to vector<64x128xbf16>
    %c0_2 = arith.constant 0 : index
    %c0_3 = arith.constant 0 : index
    %c0_4 = arith.constant 0 : index
    %2 = vector.load %arg2[%c0_2, %c0_3, %c0_4] : memref<8x8x128xbf16, #tpu.memory_space<vmem>>, vector<8x8x128xbf16>
    %3 = vector.shape_cast %2 : vector<8x8x128xbf16> to vector<64x128xbf16>
    %c0_5 = arith.constant 0 : index
    %c0_6 = arith.constant 0 : index
    %4 = vector.load %arg4[%c0_5, %c0_6] : memref<128x128xbf16, #tpu.memory_space<vmem>>, vector<128x128xbf16>
    %cst = arith.constant dense<0.000000e+00> : vector<64x128xf32>
    %5 = tpu.matmul %1, %4, %cst {dimension_numbers = #tpu.dot_dimension_numbers<[1], [0], [0], [1], [0, 0, 1, 1], [], []>} : vector<64x128xbf16>, vector<128x128xbf16>, vector<64x128xf32> -> vector<64x128xf32>
    %c0_7 = arith.constant 0 : index
    %c0_8 = arith.constant 0 : index
    %6 = vector.load %arg5[%c0_7, %c0_8] : memref<1x128xf32, #tpu.memory_space<vmem>>, vector<1x128xf32>
    %7 = vector.broadcast %6 : vector<1x128xf32> to vector<64x128xf32>
    %8 = arith.addf %5, %7 : vector<64x128xf32>
    %c0_9 = arith.constant 0 : index
    %c0_10 = arith.constant 0 : index
    %9 = vector.load %arg6[%c0_9, %c0_10] : memref<128x128xbf16, #tpu.memory_space<vmem>>, vector<128x128xbf16>
    %cst_11 = arith.constant dense<0.000000e+00> : vector<64x128xf32>
    %10 = tpu.matmul %3, %9, %cst_11 {dimension_numbers = #tpu.dot_dimension_numbers<[1], [0], [0], [1], [0, 0, 1, 1], [], []>} : vector<64x128xbf16>, vector<128x128xbf16>, vector<64x128xf32> -> vector<64x128xf32>
    %11 = arith.addf %8, %10 : vector<64x128xf32>
    %c0_12 = arith.constant 0 : index
    %c0_13 = arith.constant 0 : index
    %12 = vector.load %arg7[%c0_12, %c0_13] : memref<1x128xf32, #tpu.memory_space<vmem>>, vector<1x128xf32>
    %13 = vector.broadcast %12 : vector<1x128xf32> to vector<64x128xf32>
    %14 = arith.addf %11, %13 : vector<64x128xf32>
    %c0_14 = arith.constant 0 : index
    %c0_15 = arith.constant 0 : index
    %c0_16 = arith.constant 0 : index
    %15 = vector.load %arg3[%c0_14, %c0_15, %c0_16] : memref<8x8x1xf32, #tpu.memory_space<vmem>>, vector<8x8x1xf32>
    %16 = vector.shape_cast %15 : vector<8x8x1xf32> to vector<64x1xf32>
    %17 = vector.broadcast %16 : vector<64x1xf32> to vector<64x128xf32>
    %18 = arith.mulf %14, %17 : vector<64x128xf32>
    %19 = vector.shape_cast %18 : vector<64x128xf32> to vector<8x8x128xf32>
    %cst_17 = arith.constant dense<0.000000e+00> : vector<8x128xf32>
    %20 = vector.multi_reduction <add>, %19, %cst_17 [1] : vector<8x8x128xf32> to vector<8x128xf32>
    %cst_18 = arith.constant dense<0.000000e+00> : vector<8x1xf32>
    %21 = vector.multi_reduction <add>, %15, %cst_18 [1] : vector<8x8x1xf32> to vector<8x1xf32>
    %cst_19 = arith.constant 1.000000e+00 : f32
    %22 = vector.broadcast %cst_19 : f32 to vector<8x1xf32>
    %23 = arith.maximumf %21, %22 : vector<8x1xf32>
    %24 = vector.broadcast %23 : vector<8x1xf32> to vector<8x128xf32>
    %25 = arith.divf %20, %24 : vector<8x128xf32>
    %c0_20 = arith.constant 0 : index
    %c0_21 = arith.constant 0 : index
    %26 = vector.load %arg8[%c0_20, %c0_21] : memref<128x768xf32, #tpu.memory_space<vmem>>, vector<128x768xf32>
    %cst_22 = arith.constant dense<0.000000e+00> : vector<8x768xf32>
    %27 = tpu.matmul %25, %26, %cst_22 {dimension_numbers = #tpu.dot_dimension_numbers<[1], [0], [0], [1], [0, 0, 1, 1], [], []>} : vector<8x128xf32>, vector<128x768xf32>, vector<8x768xf32> -> vector<8x768xf32>
    %c0_23 = arith.constant 0 : index
    %c0_24 = arith.constant 0 : index
    %28 = vector.load %arg9[%c0_23, %c0_24] : memref<1x768xf32, #tpu.memory_space<vmem>>, vector<1x768xf32>
    %29 = vector.broadcast %28 : vector<1x768xf32> to vector<8x768xf32>
    %30 = arith.addf %27, %29 : vector<8x768xf32>
    %31 = vector.extract_strided_slice %30 {offsets = [0, 0], sizes = [8, 128], strides = [1, 1]} : vector<8x768xf32> to vector<8x128xf32>
    %c0_25 = arith.constant 0 : index
    %c0_26 = arith.constant 0 : index
    %32 = vector.load %arg10[%c0_25, %c0_26] : memref<8x128xf32, #tpu.memory_space<vmem>>, vector<8x128xf32>
    tpu.vector_store %arg10[%c0_25, %c0_26], %31 {strides = array<i32>} : memref<8x128xf32, #tpu.memory_space<vmem>>, vector<8x128xf32>,
    %33 = vector.extract_strided_slice %30 {offsets = [0, 128], sizes = [8, 128], strides = [1, 1]} : vector<8x768xf32> to vector<8x128xf32>
    %c0_27 = arith.constant 0 : index
    %c0_28 = arith.constant 0 : index
    %34 = vector.load %arg11[%c0_27, %c0_28] : memref<8x128xf32, #tpu.memory_space<vmem>>, vector<8x128xf32>
    tpu.vector_store %arg11[%c0_27, %c0_28], %33 {strides = array<i32>} : memref<8x128xf32, #tpu.memory_space<vmem>>, vector<8x128xf32>,
    %35 = vector.extract_strided_slice %30 {offsets = [0, 256], sizes = [8, 512], strides = [1, 1]} : vector<8x768xf32> to vector<8x512xf32>
    %c0_29 = arith.constant 0 : index
    %c0_30 = arith.constant 0 : index
    %36 = vector.load %arg12[%c0_29, %c0_30] : memref<8x512xf32, #tpu.memory_space<vmem>>, vector<8x512xf32>
    tpu.vector_store %arg12[%c0_29, %c0_30], %35 {strides = array<i32>} : memref<8x512xf32, #tpu.memory_space<vmem>>, vector<8x512xf32>,
    return
  }
  func.func @transform_0(%arg0: i32) -> (i32, i32, i32) {
    %c0_i32 = arith.constant 0 : i32
    %c0_i32_0 = arith.constant 0 : i32
    %c0_i32_1 = arith.constant 0 : i32
    return %arg0, %c0_i32, %c0_i32_0 : i32, i32, i32
  }
  func.func @transform_1(%arg0: i32) -> (i32, i32, i32) {
    %c0_i32 = arith.constant 0 : i32
    %c0_i32_0 = arith.constant 0 : i32
    %c0_i32_1 = arith.constant 0 : i32
    return %arg0, %c0_i32, %c0_i32_0 : i32, i32, i32
  }
  func.func @transform_2(%arg0: i32) -> (i32, i32, i32) {
    %c0_i32 = arith.constant 0 : i32
    %c0_i32_0 = arith.constant 0 : i32
    %c0_i32_1 = arith.constant 0 : i32
    return %arg0, %c0_i32, %c0_i32_0 : i32, i32, i32
  }
  func.func @transform_3(%arg0: i32) -> (i32, i32) {
    %c0_i32 = arith.constant 0 : i32
    %c0_i32_0 = arith.constant 0 : i32
    %c0_i32_1 = arith.constant 0 : i32
    return %c0_i32, %c0_i32_0 : i32, i32
  }
  func.func @transform_4(%arg0: i32) -> (i32, i32) {
    %c0_i32 = arith.constant 0 : i32
    %c0_i32_0 = arith.constant 0 : i32
    %c0_i32_1 = arith.constant 0 : i32
    return %c0_i32, %c0_i32_0 : i32, i32
  }
  func.func @transform_5(%arg0: i32) -> (i32, i32) {
    %c0_i32 = arith.constant 0 : i32
    %c0_i32_0 = arith.constant 0 : i32
    %c0_i32_1 = arith.constant 0 : i32
    return %c0_i32, %c0_i32_0 : i32, i32
  }
  func.func @transform_6(%arg0: i32) -> (i32, i32) {
    %c0_i32 = arith.constant 0 : i32
    %c0_i32_0 = arith.constant 0 : i32
    %c0_i32_1 = arith.constant 0 : i32
    return %c0_i32, %c0_i32_0 : i32, i32
  }
  func.func @transform_7(%arg0: i32) -> (i32, i32) {
    %c0_i32 = arith.constant 0 : i32
    %c0_i32_0 = arith.constant 0 : i32
    %c0_i32_1 = arith.constant 0 : i32
    return %c0_i32, %c0_i32_0 : i32, i32
  }
  func.func @transform_8(%arg0: i32) -> (i32, i32) {
    %c0_i32 = arith.constant 0 : i32
    %c0_i32_0 = arith.constant 0 : i32
    %c0_i32_1 = arith.constant 0 : i32
    return %c0_i32, %c0_i32_0 : i32, i32
  }
  func.func @transform_9(%arg0: i32) -> (i32, i32) {
    %c0_i32 = arith.constant 0 : i32
    %c0_i32_0 = arith.constant 0 : i32
    return %arg0, %c0_i32 : i32, i32
  }
  func.func @transform_10(%arg0: i32) -> (i32, i32) {
    %c0_i32 = arith.constant 0 : i32
    %c0_i32_0 = arith.constant 0 : i32
    return %arg0, %c0_i32 : i32, i32
  }
  func.func @transform_11(%arg0: i32) -> (i32, i32) {
    %c0_i32 = arith.constant 0 : i32
    %c0_i32_0 = arith.constant 0 : i32
    return %arg0, %c0_i32 : i32, i32
  }
}

module attributes {stable_mosaic.version = 11 : i64} {
  func.func @_decode_kernel(%arg0: i32, %arg1: i32, %arg2: memref<8x8x32xf32, #tpu.memory_space<vmem>>, %arg3: memref<8x8x1xf32, #tpu.memory_space<vmem>>, %arg4: memref<8x128xf32, #tpu.memory_space<vmem>>, %arg5: memref<8x128xf32, #tpu.memory_space<vmem>>, %arg6: memref<8x512xf32, #tpu.memory_space<vmem>>, %arg7: memref<32x512xf32, #tpu.memory_space<vmem>>, %arg8: memref<128x512xf32, #tpu.memory_space<vmem>>, %arg9: memref<128x128xf32, #tpu.memory_space<vmem>>, %arg10: memref<1x128xf32, #tpu.memory_space<vmem>>, %arg11: memref<8x8x128xf32, #tpu.memory_space<vmem>>, %arg12: memref<8x128xf32, #tpu.memory_space<vmem>>, %arg13: memref<8x128xf32, #tpu.memory_space<vmem>>) attributes {dimension_semantics = [#tpu.dimension_semantics<parallel>, #tpu.dimension_semantics<arbitrary>], iteration_bounds = array<i64: 1, 1>, scalar_prefetch = 0 : i64, scratch_operands = 2 : i64, tpu.core_type = #tpu.core_type<tc>, window_params = [{transform_indices = @transform_0, window_bounds = array<i64: 8, 8, 32>}, {transform_indices = @transform_1, window_bounds = array<i64: 8, 8, 1>}, {transform_indices = @transform_2, window_bounds = array<i64: 8, 128>}, {transform_indices = @transform_3, window_bounds = array<i64: 8, 128>}, {transform_indices = @transform_4, window_bounds = array<i64: 8, 512>}, {pipeline_mode = #tpu.pipeline_mode<synchronous>, transform_indices = @transform_5, window_bounds = array<i64: 32, 512>}, {pipeline_mode = #tpu.pipeline_mode<synchronous>, transform_indices = @transform_6, window_bounds = array<i64: 128, 512>}, {pipeline_mode = #tpu.pipeline_mode<synchronous>, transform_indices = @transform_7, window_bounds = array<i64: 128, 128>}, {pipeline_mode = #tpu.pipeline_mode<synchronous>, transform_indices = @transform_8, window_bounds = array<i64: 1, 128>}, {transform_indices = @transform_9, window_bounds = array<i64: 8, 8, 128>}]} {
    %c0_i32 = arith.constant 0 : i32
    %0 = arith.cmpi eq, %arg1, %c0_i32 : i32
    %1 = arith.extui %0 : i1 to i32
    %c0_i32_0 = arith.constant 0 : i32
    %2 = arith.cmpi ne, %1, %c0_i32_0 : i32
    scf.if %2 {
      %c0_92 = arith.constant 0 : index
      %c0_93 = arith.constant 0 : index
      %391 = vector.load %arg4[%c0_92, %c0_93] : memref<8x128xf32, #tpu.memory_space<vmem>>, vector<8x128xf32>
      %c0_94 = arith.constant 0 : index
      %c0_95 = arith.constant 0 : index
      %392 = vector.load %arg12[%c0_94, %c0_95] : memref<8x128xf32, #tpu.memory_space<vmem>>, vector<8x128xf32>
      tpu.vector_store %arg12[%c0_94, %c0_95], %391 {strides = array<i32>} : memref<8x128xf32, #tpu.memory_space<vmem>>, vector<8x128xf32>,
      %c0_96 = arith.constant 0 : index
      %c0_97 = arith.constant 0 : index
      %393 = vector.load %arg5[%c0_96, %c0_97] : memref<8x128xf32, #tpu.memory_space<vmem>>, vector<8x128xf32>
      %c0_98 = arith.constant 0 : index
      %c0_99 = arith.constant 0 : index
      %394 = vector.load %arg13[%c0_98, %c0_99] : memref<8x128xf32, #tpu.memory_space<vmem>>, vector<8x128xf32>
      tpu.vector_store %arg13[%c0_98, %c0_99], %393 {strides = array<i32>} : memref<8x128xf32, #tpu.memory_space<vmem>>, vector<8x128xf32>,
    } else {
    }
    %c0 = arith.constant 0 : index
    %c0_1 = arith.constant 0 : index
    %3 = vector.load %arg6[%c0, %c0_1] : memref<8x512xf32, #tpu.memory_space<vmem>>, vector<8x512xf32>
    %c0_2 = arith.constant 0 : index
    %c0_3 = arith.constant 0 : index
    %4 = vector.load %arg8[%c0_2, %c0_3] : memref<128x512xf32, #tpu.memory_space<vmem>>, vector<128x512xf32>
    %c0_4 = arith.constant 0 : index
    %c0_5 = arith.constant 0 : index
    %c0_6 = arith.constant 0 : index
    %5 = vector.load %arg2[%c0_4, %c0_5, %c0_6] : memref<8x8x32xf32, #tpu.memory_space<vmem>>, vector<8x8x32xf32>
    %6 = vector.shape_cast %5 : vector<8x8x32xf32> to vector<64x32xf32>
    %c0_7 = arith.constant 0 : index
    %c0_8 = arith.constant 0 : index
    %7 = vector.load %arg7[%c0_7, %c0_8] : memref<32x512xf32, #tpu.memory_space<vmem>>, vector<32x512xf32>
    %cst = arith.constant dense<0.000000e+00> : vector<64x512xf32>
    %8 = tpu.matmul %6, %7, %cst {dimension_numbers = #tpu.dot_dimension_numbers<[1], [0], [0], [1], [0, 0, 1, 1], [], []>} : vector<64x32xf32>, vector<32x512xf32>, vector<64x512xf32> -> vector<64x512xf32>
    %c0_9 = arith.constant 0 : index
    %c0_10 = arith.constant 0 : index
    %9 = vector.load %arg12[%c0_9, %c0_10] : memref<8x128xf32, #tpu.memory_space<vmem>>, vector<8x128xf32>
    %c0_11 = arith.constant 0 : index
    %c0_12 = arith.constant 0 : index
    %10 = vector.load %arg13[%c0_11, %c0_12] : memref<8x128xf32, #tpu.memory_space<vmem>>, vector<8x128xf32>
    %c0_13 = arith.constant 0 : index
    %c0_14 = arith.constant 0 : index
    %c0_15 = arith.constant 0 : index
    %11 = vector.load %arg3[%c0_13, %c0_14, %c0_15] : memref<8x8x1xf32, #tpu.memory_space<vmem>>, vector<1x8x1xf32>
    %12 = vector.shape_cast %11 : vector<1x8x1xf32> to vector<8x1xf32>
    %13 = vector.extract_strided_slice %8 {offsets = [0, 0], sizes = [8, 512], strides = [1, 1]} : vector<64x512xf32> to vector<8x512xf32>
    %14 = arith.addf %13, %3 : vector<8x512xf32>
    %cst_16 = arith.constant dense<0.000000e+00> : vector<8x512xf32>
    %15 = tpu.matmul %9, %4, %cst_16 {dimension_numbers = #tpu.dot_dimension_numbers<[1], [0], [0], [1], [0, 0, 1, 1], [], []>} : vector<8x128xf32>, vector<128x512xf32>, vector<8x512xf32> -> vector<8x512xf32>
    %16 = arith.addf %14, %15 : vector<8x512xf32>
    %17 = vector.extract_strided_slice %16 {offsets = [0, 0], sizes = [8, 128], strides = [1, 1]} : vector<8x512xf32> to vector<8x128xf32>
    %18 = arith.negf %17 : vector<8x128xf32>
    %19 = math.exp %18 : vector<8x128xf32>
    %cst_17 = arith.constant 1.000000e+00 : f32
    %20 = vector.broadcast %cst_17 : f32 to vector<8x128xf32>
    %21 = arith.addf %20, %19 : vector<8x128xf32>
    %22 = arith.divf %20, %21 : vector<8x128xf32>
    %23 = vector.extract_strided_slice %16 {offsets = [0, 128], sizes = [8, 128], strides = [1, 1]} : vector<8x512xf32> to vector<8x128xf32>
    %24 = arith.negf %23 : vector<8x128xf32>
    %25 = math.exp %24 : vector<8x128xf32>
    %cst_18 = arith.constant 1.000000e+00 : f32
    %26 = vector.broadcast %cst_18 : f32 to vector<8x128xf32>
    %27 = arith.addf %26, %25 : vector<8x128xf32>
    %28 = arith.divf %26, %27 : vector<8x128xf32>
    %29 = vector.extract_strided_slice %16 {offsets = [0, 256], sizes = [8, 128], strides = [1, 1]} : vector<8x512xf32> to vector<8x128xf32>
    %30 = math.tanh %29 : vector<8x128xf32>
    %31 = vector.extract_strided_slice %16 {offsets = [0, 384], sizes = [8, 128], strides = [1, 1]} : vector<8x512xf32> to vector<8x128xf32>
    %32 = arith.negf %31 : vector<8x128xf32>
    %33 = math.exp %32 : vector<8x128xf32>
    %cst_19 = arith.constant 1.000000e+00 : f32
    %34 = vector.broadcast %cst_19 : f32 to vector<8x128xf32>
    %35 = arith.addf %34, %33 : vector<8x128xf32>
    %36 = arith.divf %34, %35 : vector<8x128xf32>
    %37 = arith.mulf %28, %10 : vector<8x128xf32>
    %38 = arith.mulf %22, %30 : vector<8x128xf32>
    %39 = arith.addf %37, %38 : vector<8x128xf32>
    %40 = math.tanh %39 : vector<8x128xf32>
    %41 = arith.mulf %36, %40 : vector<8x128xf32>
    %42 = vector.broadcast %12 : vector<8x1xf32> to vector<8x128xf32>
    %43 = arith.mulf %42, %39 : vector<8x128xf32>
    %cst_20 = arith.constant 1.000000e+00 : f32
    %44 = vector.broadcast %cst_20 : f32 to vector<8x1xf32>
    %45 = arith.subf %44, %12 : vector<8x1xf32>
    %46 = vector.broadcast %45 : vector<8x1xf32> to vector<8x128xf32>
    %47 = arith.mulf %46, %10 : vector<8x128xf32>
    %48 = arith.addf %43, %47 : vector<8x128xf32>
    %49 = vector.broadcast %12 : vector<8x1xf32> to vector<8x128xf32>
    %50 = arith.mulf %49, %41 : vector<8x128xf32>
    %cst_21 = arith.constant 1.000000e+00 : f32
    %51 = vector.broadcast %cst_21 : f32 to vector<8x1xf32>
    %52 = arith.subf %51, %12 : vector<8x1xf32>
    %53 = vector.broadcast %52 : vector<8x1xf32> to vector<8x128xf32>
    %54 = arith.mulf %53, %9 : vector<8x128xf32>
    %55 = arith.addf %50, %54 : vector<8x128xf32>
    %c1 = arith.constant 1 : index
    %c0_22 = arith.constant 0 : index
    %c0_23 = arith.constant 0 : index
    %56 = vector.load %arg3[%c1, %c0_22, %c0_23] : memref<8x8x1xf32, #tpu.memory_space<vmem>>, vector<1x8x1xf32>
    %57 = vector.shape_cast %56 : vector<1x8x1xf32> to vector<8x1xf32>
    %58 = vector.extract_strided_slice %8 {offsets = [8, 0], sizes = [8, 512], strides = [1, 1]} : vector<64x512xf32> to vector<8x512xf32>
    %59 = arith.addf %58, %3 : vector<8x512xf32>
    %cst_24 = arith.constant dense<0.000000e+00> : vector<8x512xf32>
    %60 = tpu.matmul %55, %4, %cst_24 {dimension_numbers = #tpu.dot_dimension_numbers<[1], [0], [0], [1], [0, 0, 1, 1], [], []>} : vector<8x128xf32>, vector<128x512xf32>, vector<8x512xf32> -> vector<8x512xf32>
    %61 = arith.addf %59, %60 : vector<8x512xf32>
    %62 = vector.extract_strided_slice %61 {offsets = [0, 0], sizes = [8, 128], strides = [1, 1]} : vector<8x512xf32> to vector<8x128xf32>
    %63 = arith.negf %62 : vector<8x128xf32>
    %64 = math.exp %63 : vector<8x128xf32>
    %cst_25 = arith.constant 1.000000e+00 : f32
    %65 = vector.broadcast %cst_25 : f32 to vector<8x128xf32>
    %66 = arith.addf %65, %64 : vector<8x128xf32>
    %67 = arith.divf %65, %66 : vector<8x128xf32>
    %68 = vector.extract_strided_slice %61 {offsets = [0, 128], sizes = [8, 128], strides = [1, 1]} : vector<8x512xf32> to vector<8x128xf32>
    %69 = arith.negf %68 : vector<8x128xf32>
    %70 = math.exp %69 : vector<8x128xf32>
    %cst_26 = arith.constant 1.000000e+00 : f32
    %71 = vector.broadcast %cst_26 : f32 to vector<8x128xf32>
    %72 = arith.addf %71, %70 : vector<8x128xf32>
    %73 = arith.divf %71, %72 : vector<8x128xf32>
    %74 = vector.extract_strided_slice %61 {offsets = [0, 256], sizes = [8, 128], strides = [1, 1]} : vector<8x512xf32> to vector<8x128xf32>
    %75 = math.tanh %74 : vector<8x128xf32>
    %76 = vector.extract_strided_slice %61 {offsets = [0, 384], sizes = [8, 128], strides = [1, 1]} : vector<8x512xf32> to vector<8x128xf32>
    %77 = arith.negf %76 : vector<8x128xf32>
    %78 = math.exp %77 : vector<8x128xf32>
    %cst_27 = arith.constant 1.000000e+00 : f32
    %79 = vector.broadcast %cst_27 : f32 to vector<8x128xf32>
    %80 = arith.addf %79, %78 : vector<8x128xf32>
    %81 = arith.divf %79, %80 : vector<8x128xf32>
    %82 = arith.mulf %73, %48 : vector<8x128xf32>
    %83 = arith.mulf %67, %75 : vector<8x128xf32>
    %84 = arith.addf %82, %83 : vector<8x128xf32>
    %85 = math.tanh %84 : vector<8x128xf32>
    %86 = arith.mulf %81, %85 : vector<8x128xf32>
    %87 = vector.broadcast %57 : vector<8x1xf32> to vector<8x128xf32>
    %88 = arith.mulf %87, %84 : vector<8x128xf32>
    %cst_28 = arith.constant 1.000000e+00 : f32
    %89 = vector.broadcast %cst_28 : f32 to vector<8x1xf32>
    %90 = arith.subf %89, %57 : vector<8x1xf32>
    %91 = vector.broadcast %90 : vector<8x1xf32> to vector<8x128xf32>
    %92 = arith.mulf %91, %48 : vector<8x128xf32>
    %93 = arith.addf %88, %92 : vector<8x128xf32>
    %94 = vector.broadcast %57 : vector<8x1xf32> to vector<8x128xf32>
    %95 = arith.mulf %94, %86 : vector<8x128xf32>
    %cst_29 = arith.constant 1.000000e+00 : f32
    %96 = vector.broadcast %cst_29 : f32 to vector<8x1xf32>
    %97 = arith.subf %96, %57 : vector<8x1xf32>
    %98 = vector.broadcast %97 : vector<8x1xf32> to vector<8x128xf32>
    %99 = arith.mulf %98, %55 : vector<8x128xf32>
    %100 = arith.addf %95, %99 : vector<8x128xf32>
    %c2 = arith.constant 2 : index
    %c0_30 = arith.constant 0 : index
    %c0_31 = arith.constant 0 : index
    %101 = vector.load %arg3[%c2, %c0_30, %c0_31] : memref<8x8x1xf32, #tpu.memory_space<vmem>>, vector<1x8x1xf32>
    %102 = vector.shape_cast %101 : vector<1x8x1xf32> to vector<8x1xf32>
    %103 = vector.extract_strided_slice %8 {offsets = [16, 0], sizes = [8, 512], strides = [1, 1]} : vector<64x512xf32> to vector<8x512xf32>
    %104 = arith.addf %103, %3 : vector<8x512xf32>
    %cst_32 = arith.constant dense<0.000000e+00> : vector<8x512xf32>
    %105 = tpu.matmul %100, %4, %cst_32 {dimension_numbers = #tpu.dot_dimension_numbers<[1], [0], [0], [1], [0, 0, 1, 1], [], []>} : vector<8x128xf32>, vector<128x512xf32>, vector<8x512xf32> -> vector<8x512xf32>
    %106 = arith.addf %104, %105 : vector<8x512xf32>
    %107 = vector.extract_strided_slice %106 {offsets = [0, 0], sizes = [8, 128], strides = [1, 1]} : vector<8x512xf32> to vector<8x128xf32>
    %108 = arith.negf %107 : vector<8x128xf32>
    %109 = math.exp %108 : vector<8x128xf32>
    %cst_33 = arith.constant 1.000000e+00 : f32
    %110 = vector.broadcast %cst_33 : f32 to vector<8x128xf32>
    %111 = arith.addf %110, %109 : vector<8x128xf32>
    %112 = arith.divf %110, %111 : vector<8x128xf32>
    %113 = vector.extract_strided_slice %106 {offsets = [0, 128], sizes = [8, 128], strides = [1, 1]} : vector<8x512xf32> to vector<8x128xf32>
    %114 = arith.negf %113 : vector<8x128xf32>
    %115 = math.exp %114 : vector<8x128xf32>
    %cst_34 = arith.constant 1.000000e+00 : f32
    %116 = vector.broadcast %cst_34 : f32 to vector<8x128xf32>
    %117 = arith.addf %116, %115 : vector<8x128xf32>
    %118 = arith.divf %116, %117 : vector<8x128xf32>
    %119 = vector.extract_strided_slice %106 {offsets = [0, 256], sizes = [8, 128], strides = [1, 1]} : vector<8x512xf32> to vector<8x128xf32>
    %120 = math.tanh %119 : vector<8x128xf32>
    %121 = vector.extract_strided_slice %106 {offsets = [0, 384], sizes = [8, 128], strides = [1, 1]} : vector<8x512xf32> to vector<8x128xf32>
    %122 = arith.negf %121 : vector<8x128xf32>
    %123 = math.exp %122 : vector<8x128xf32>
    %cst_35 = arith.constant 1.000000e+00 : f32
    %124 = vector.broadcast %cst_35 : f32 to vector<8x128xf32>
    %125 = arith.addf %124, %123 : vector<8x128xf32>
    %126 = arith.divf %124, %125 : vector<8x128xf32>
    %127 = arith.mulf %118, %93 : vector<8x128xf32>
    %128 = arith.mulf %112, %120 : vector<8x128xf32>
    %129 = arith.addf %127, %128 : vector<8x128xf32>
    %130 = math.tanh %129 : vector<8x128xf32>
    %131 = arith.mulf %126, %130 : vector<8x128xf32>
    %132 = vector.broadcast %102 : vector<8x1xf32> to vector<8x128xf32>
    %133 = arith.mulf %132, %129 : vector<8x128xf32>
    %cst_36 = arith.constant 1.000000e+00 : f32
    %134 = vector.broadcast %cst_36 : f32 to vector<8x1xf32>
    %135 = arith.subf %134, %102 : vector<8x1xf32>
    %136 = vector.broadcast %135 : vector<8x1xf32> to vector<8x128xf32>
    %137 = arith.mulf %136, %93 : vector<8x128xf32>
    %138 = arith.addf %133, %137 : vector<8x128xf32>
    %139 = vector.broadcast %102 : vector<8x1xf32> to vector<8x128xf32>
    %140 = arith.mulf %139, %131 : vector<8x128xf32>
    %cst_37 = arith.constant 1.000000e+00 : f32
    %141 = vector.broadcast %cst_37 : f32 to vector<8x1xf32>
    %142 = arith.subf %141, %102 : vector<8x1xf32>
    %143 = vector.broadcast %142 : vector<8x1xf32> to vector<8x128xf32>
    %144 = arith.mulf %143, %100 : vector<8x128xf32>
    %145 = arith.addf %140, %144 : vector<8x128xf32>
    %c3 = arith.constant 3 : index
    %c0_38 = arith.constant 0 : index
    %c0_39 = arith.constant 0 : index
    %146 = vector.load %arg3[%c3, %c0_38, %c0_39] : memref<8x8x1xf32, #tpu.memory_space<vmem>>, vector<1x8x1xf32>
    %147 = vector.shape_cast %146 : vector<1x8x1xf32> to vector<8x1xf32>
    %148 = vector.extract_strided_slice %8 {offsets = [24, 0], sizes = [8, 512], strides = [1, 1]} : vector<64x512xf32> to vector<8x512xf32>
    %149 = arith.addf %148, %3 : vector<8x512xf32>
    %cst_40 = arith.constant dense<0.000000e+00> : vector<8x512xf32>
    %150 = tpu.matmul %145, %4, %cst_40 {dimension_numbers = #tpu.dot_dimension_numbers<[1], [0], [0], [1], [0, 0, 1, 1], [], []>} : vector<8x128xf32>, vector<128x512xf32>, vector<8x512xf32> -> vector<8x512xf32>
    %151 = arith.addf %149, %150 : vector<8x512xf32>
    %152 = vector.extract_strided_slice %151 {offsets = [0, 0], sizes = [8, 128], strides = [1, 1]} : vector<8x512xf32> to vector<8x128xf32>
    %153 = arith.negf %152 : vector<8x128xf32>
    %154 = math.exp %153 : vector<8x128xf32>
    %cst_41 = arith.constant 1.000000e+00 : f32
    %155 = vector.broadcast %cst_41 : f32 to vector<8x128xf32>
    %156 = arith.addf %155, %154 : vector<8x128xf32>
    %157 = arith.divf %155, %156 : vector<8x128xf32>
    %158 = vector.extract_strided_slice %151 {offsets = [0, 128], sizes = [8, 128], strides = [1, 1]} : vector<8x512xf32> to vector<8x128xf32>
    %159 = arith.negf %158 : vector<8x128xf32>
    %160 = math.exp %159 : vector<8x128xf32>
    %cst_42 = arith.constant 1.000000e+00 : f32
    %161 = vector.broadcast %cst_42 : f32 to vector<8x128xf32>
    %162 = arith.addf %161, %160 : vector<8x128xf32>
    %163 = arith.divf %161, %162 : vector<8x128xf32>
    %164 = vector.extract_strided_slice %151 {offsets = [0, 256], sizes = [8, 128], strides = [1, 1]} : vector<8x512xf32> to vector<8x128xf32>
    %165 = math.tanh %164 : vector<8x128xf32>
    %166 = vector.extract_strided_slice %151 {offsets = [0, 384], sizes = [8, 128], strides = [1, 1]} : vector<8x512xf32> to vector<8x128xf32>
    %167 = arith.negf %166 : vector<8x128xf32>
    %168 = math.exp %167 : vector<8x128xf32>
    %cst_43 = arith.constant 1.000000e+00 : f32
    %169 = vector.broadcast %cst_43 : f32 to vector<8x128xf32>
    %170 = arith.addf %169, %168 : vector<8x128xf32>
    %171 = arith.divf %169, %170 : vector<8x128xf32>
    %172 = arith.mulf %163, %138 : vector<8x128xf32>
    %173 = arith.mulf %157, %165 : vector<8x128xf32>
    %174 = arith.addf %172, %173 : vector<8x128xf32>
    %175 = math.tanh %174 : vector<8x128xf32>
    %176 = arith.mulf %171, %175 : vector<8x128xf32>
    %177 = vector.broadcast %147 : vector<8x1xf32> to vector<8x128xf32>
    %178 = arith.mulf %177, %174 : vector<8x128xf32>
    %cst_44 = arith.constant 1.000000e+00 : f32
    %179 = vector.broadcast %cst_44 : f32 to vector<8x1xf32>
    %180 = arith.subf %179, %147 : vector<8x1xf32>
    %181 = vector.broadcast %180 : vector<8x1xf32> to vector<8x128xf32>
    %182 = arith.mulf %181, %138 : vector<8x128xf32>
    %183 = arith.addf %178, %182 : vector<8x128xf32>
    %184 = vector.broadcast %147 : vector<8x1xf32> to vector<8x128xf32>
    %185 = arith.mulf %184, %176 : vector<8x128xf32>
    %cst_45 = arith.constant 1.000000e+00 : f32
    %186 = vector.broadcast %cst_45 : f32 to vector<8x1xf32>
    %187 = arith.subf %186, %147 : vector<8x1xf32>
    %188 = vector.broadcast %187 : vector<8x1xf32> to vector<8x128xf32>
    %189 = arith.mulf %188, %145 : vector<8x128xf32>
    %190 = arith.addf %185, %189 : vector<8x128xf32>
    %c4 = arith.constant 4 : index
    %c0_46 = arith.constant 0 : index
    %c0_47 = arith.constant 0 : index
    %191 = vector.load %arg3[%c4, %c0_46, %c0_47] : memref<8x8x1xf32, #tpu.memory_space<vmem>>, vector<1x8x1xf32>
    %192 = vector.shape_cast %191 : vector<1x8x1xf32> to vector<8x1xf32>
    %193 = vector.extract_strided_slice %8 {offsets = [32, 0], sizes = [8, 512], strides = [1, 1]} : vector<64x512xf32> to vector<8x512xf32>
    %194 = arith.addf %193, %3 : vector<8x512xf32>
    %cst_48 = arith.constant dense<0.000000e+00> : vector<8x512xf32>
    %195 = tpu.matmul %190, %4, %cst_48 {dimension_numbers = #tpu.dot_dimension_numbers<[1], [0], [0], [1], [0, 0, 1, 1], [], []>} : vector<8x128xf32>, vector<128x512xf32>, vector<8x512xf32> -> vector<8x512xf32>
    %196 = arith.addf %194, %195 : vector<8x512xf32>
    %197 = vector.extract_strided_slice %196 {offsets = [0, 0], sizes = [8, 128], strides = [1, 1]} : vector<8x512xf32> to vector<8x128xf32>
    %198 = arith.negf %197 : vector<8x128xf32>
    %199 = math.exp %198 : vector<8x128xf32>
    %cst_49 = arith.constant 1.000000e+00 : f32
    %200 = vector.broadcast %cst_49 : f32 to vector<8x128xf32>
    %201 = arith.addf %200, %199 : vector<8x128xf32>
    %202 = arith.divf %200, %201 : vector<8x128xf32>
    %203 = vector.extract_strided_slice %196 {offsets = [0, 128], sizes = [8, 128], strides = [1, 1]} : vector<8x512xf32> to vector<8x128xf32>
    %204 = arith.negf %203 : vector<8x128xf32>
    %205 = math.exp %204 : vector<8x128xf32>
    %cst_50 = arith.constant 1.000000e+00 : f32
    %206 = vector.broadcast %cst_50 : f32 to vector<8x128xf32>
    %207 = arith.addf %206, %205 : vector<8x128xf32>
    %208 = arith.divf %206, %207 : vector<8x128xf32>
    %209 = vector.extract_strided_slice %196 {offsets = [0, 256], sizes = [8, 128], strides = [1, 1]} : vector<8x512xf32> to vector<8x128xf32>
    %210 = math.tanh %209 : vector<8x128xf32>
    %211 = vector.extract_strided_slice %196 {offsets = [0, 384], sizes = [8, 128], strides = [1, 1]} : vector<8x512xf32> to vector<8x128xf32>
    %212 = arith.negf %211 : vector<8x128xf32>
    %213 = math.exp %212 : vector<8x128xf32>
    %cst_51 = arith.constant 1.000000e+00 : f32
    %214 = vector.broadcast %cst_51 : f32 to vector<8x128xf32>
    %215 = arith.addf %214, %213 : vector<8x128xf32>
    %216 = arith.divf %214, %215 : vector<8x128xf32>
    %217 = arith.mulf %208, %183 : vector<8x128xf32>
    %218 = arith.mulf %202, %210 : vector<8x128xf32>
    %219 = arith.addf %217, %218 : vector<8x128xf32>
    %220 = math.tanh %219 : vector<8x128xf32>
    %221 = arith.mulf %216, %220 : vector<8x128xf32>
    %222 = vector.broadcast %192 : vector<8x1xf32> to vector<8x128xf32>
    %223 = arith.mulf %222, %219 : vector<8x128xf32>
    %cst_52 = arith.constant 1.000000e+00 : f32
    %224 = vector.broadcast %cst_52 : f32 to vector<8x1xf32>
    %225 = arith.subf %224, %192 : vector<8x1xf32>
    %226 = vector.broadcast %225 : vector<8x1xf32> to vector<8x128xf32>
    %227 = arith.mulf %226, %183 : vector<8x128xf32>
    %228 = arith.addf %223, %227 : vector<8x128xf32>
    %229 = vector.broadcast %192 : vector<8x1xf32> to vector<8x128xf32>
    %230 = arith.mulf %229, %221 : vector<8x128xf32>
    %cst_53 = arith.constant 1.000000e+00 : f32
    %231 = vector.broadcast %cst_53 : f32 to vector<8x1xf32>
    %232 = arith.subf %231, %192 : vector<8x1xf32>
    %233 = vector.broadcast %232 : vector<8x1xf32> to vector<8x128xf32>
    %234 = arith.mulf %233, %190 : vector<8x128xf32>
    %235 = arith.addf %230, %234 : vector<8x128xf32>
    %c5 = arith.constant 5 : index
    %c0_54 = arith.constant 0 : index
    %c0_55 = arith.constant 0 : index
    %236 = vector.load %arg3[%c5, %c0_54, %c0_55] : memref<8x8x1xf32, #tpu.memory_space<vmem>>, vector<1x8x1xf32>
    %237 = vector.shape_cast %236 : vector<1x8x1xf32> to vector<8x1xf32>
    %238 = vector.extract_strided_slice %8 {offsets = [40, 0], sizes = [8, 512], strides = [1, 1]} : vector<64x512xf32> to vector<8x512xf32>
    %239 = arith.addf %238, %3 : vector<8x512xf32>
    %cst_56 = arith.constant dense<0.000000e+00> : vector<8x512xf32>
    %240 = tpu.matmul %235, %4, %cst_56 {dimension_numbers = #tpu.dot_dimension_numbers<[1], [0], [0], [1], [0, 0, 1, 1], [], []>} : vector<8x128xf32>, vector<128x512xf32>, vector<8x512xf32> -> vector<8x512xf32>
    %241 = arith.addf %239, %240 : vector<8x512xf32>
    %242 = vector.extract_strided_slice %241 {offsets = [0, 0], sizes = [8, 128], strides = [1, 1]} : vector<8x512xf32> to vector<8x128xf32>
    %243 = arith.negf %242 : vector<8x128xf32>
    %244 = math.exp %243 : vector<8x128xf32>
    %cst_57 = arith.constant 1.000000e+00 : f32
    %245 = vector.broadcast %cst_57 : f32 to vector<8x128xf32>
    %246 = arith.addf %245, %244 : vector<8x128xf32>
    %247 = arith.divf %245, %246 : vector<8x128xf32>
    %248 = vector.extract_strided_slice %241 {offsets = [0, 128], sizes = [8, 128], strides = [1, 1]} : vector<8x512xf32> to vector<8x128xf32>
    %249 = arith.negf %248 : vector<8x128xf32>
    %250 = math.exp %249 : vector<8x128xf32>
    %cst_58 = arith.constant 1.000000e+00 : f32
    %251 = vector.broadcast %cst_58 : f32 to vector<8x128xf32>
    %252 = arith.addf %251, %250 : vector<8x128xf32>
    %253 = arith.divf %251, %252 : vector<8x128xf32>
    %254 = vector.extract_strided_slice %241 {offsets = [0, 256], sizes = [8, 128], strides = [1, 1]} : vector<8x512xf32> to vector<8x128xf32>
    %255 = math.tanh %254 : vector<8x128xf32>
    %256 = vector.extract_strided_slice %241 {offsets = [0, 384], sizes = [8, 128], strides = [1, 1]} : vector<8x512xf32> to vector<8x128xf32>
    %257 = arith.negf %256 : vector<8x128xf32>
    %258 = math.exp %257 : vector<8x128xf32>
    %cst_59 = arith.constant 1.000000e+00 : f32
    %259 = vector.broadcast %cst_59 : f32 to vector<8x128xf32>
    %260 = arith.addf %259, %258 : vector<8x128xf32>
    %261 = arith.divf %259, %260 : vector<8x128xf32>
    %262 = arith.mulf %253, %228 : vector<8x128xf32>
    %263 = arith.mulf %247, %255 : vector<8x128xf32>
    %264 = arith.addf %262, %263 : vector<8x128xf32>
    %265 = math.tanh %264 : vector<8x128xf32>
    %266 = arith.mulf %261, %265 : vector<8x128xf32>
    %267 = vector.broadcast %237 : vector<8x1xf32> to vector<8x128xf32>
    %268 = arith.mulf %267, %264 : vector<8x128xf32>
    %cst_60 = arith.constant 1.000000e+00 : f32
    %269 = vector.broadcast %cst_60 : f32 to vector<8x1xf32>
    %270 = arith.subf %269, %237 : vector<8x1xf32>
    %271 = vector.broadcast %270 : vector<8x1xf32> to vector<8x128xf32>
    %272 = arith.mulf %271, %228 : vector<8x128xf32>
    %273 = arith.addf %268, %272 : vector<8x128xf32>
    %274 = vector.broadcast %237 : vector<8x1xf32> to vector<8x128xf32>
    %275 = arith.mulf %274, %266 : vector<8x128xf32>
    %cst_61 = arith.constant 1.000000e+00 : f32
    %276 = vector.broadcast %cst_61 : f32 to vector<8x1xf32>
    %277 = arith.subf %276, %237 : vector<8x1xf32>
    %278 = vector.broadcast %277 : vector<8x1xf32> to vector<8x128xf32>
    %279 = arith.mulf %278, %235 : vector<8x128xf32>
    %280 = arith.addf %275, %279 : vector<8x128xf32>
    %c6 = arith.constant 6 : index
    %c0_62 = arith.constant 0 : index
    %c0_63 = arith.constant 0 : index
    %281 = vector.load %arg3[%c6, %c0_62, %c0_63] : memref<8x8x1xf32, #tpu.memory_space<vmem>>, vector<1x8x1xf32>
    %282 = vector.shape_cast %281 : vector<1x8x1xf32> to vector<8x1xf32>
    %283 = vector.extract_strided_slice %8 {offsets = [48, 0], sizes = [8, 512], strides = [1, 1]} : vector<64x512xf32> to vector<8x512xf32>
    %284 = arith.addf %283, %3 : vector<8x512xf32>
    %cst_64 = arith.constant dense<0.000000e+00> : vector<8x512xf32>
    %285 = tpu.matmul %280, %4, %cst_64 {dimension_numbers = #tpu.dot_dimension_numbers<[1], [0], [0], [1], [0, 0, 1, 1], [], []>} : vector<8x128xf32>, vector<128x512xf32>, vector<8x512xf32> -> vector<8x512xf32>
    %286 = arith.addf %284, %285 : vector<8x512xf32>
    %287 = vector.extract_strided_slice %286 {offsets = [0, 0], sizes = [8, 128], strides = [1, 1]} : vector<8x512xf32> to vector<8x128xf32>
    %288 = arith.negf %287 : vector<8x128xf32>
    %289 = math.exp %288 : vector<8x128xf32>
    %cst_65 = arith.constant 1.000000e+00 : f32
    %290 = vector.broadcast %cst_65 : f32 to vector<8x128xf32>
    %291 = arith.addf %290, %289 : vector<8x128xf32>
    %292 = arith.divf %290, %291 : vector<8x128xf32>
    %293 = vector.extract_strided_slice %286 {offsets = [0, 128], sizes = [8, 128], strides = [1, 1]} : vector<8x512xf32> to vector<8x128xf32>
    %294 = arith.negf %293 : vector<8x128xf32>
    %295 = math.exp %294 : vector<8x128xf32>
    %cst_66 = arith.constant 1.000000e+00 : f32
    %296 = vector.broadcast %cst_66 : f32 to vector<8x128xf32>
    %297 = arith.addf %296, %295 : vector<8x128xf32>
    %298 = arith.divf %296, %297 : vector<8x128xf32>
    %299 = vector.extract_strided_slice %286 {offsets = [0, 256], sizes = [8, 128], strides = [1, 1]} : vector<8x512xf32> to vector<8x128xf32>
    %300 = math.tanh %299 : vector<8x128xf32>
    %301 = vector.extract_strided_slice %286 {offsets = [0, 384], sizes = [8, 128], strides = [1, 1]} : vector<8x512xf32> to vector<8x128xf32>
    %302 = arith.negf %301 : vector<8x128xf32>
    %303 = math.exp %302 : vector<8x128xf32>
    %cst_67 = arith.constant 1.000000e+00 : f32
    %304 = vector.broadcast %cst_67 : f32 to vector<8x128xf32>
    %305 = arith.addf %304, %303 : vector<8x128xf32>
    %306 = arith.divf %304, %305 : vector<8x128xf32>
    %307 = arith.mulf %298, %273 : vector<8x128xf32>
    %308 = arith.mulf %292, %300 : vector<8x128xf32>
    %309 = arith.addf %307, %308 : vector<8x128xf32>
    %310 = math.tanh %309 : vector<8x128xf32>
    %311 = arith.mulf %306, %310 : vector<8x128xf32>
    %312 = vector.broadcast %282 : vector<8x1xf32> to vector<8x128xf32>
    %313 = arith.mulf %312, %309 : vector<8x128xf32>
    %cst_68 = arith.constant 1.000000e+00 : f32
    %314 = vector.broadcast %cst_68 : f32 to vector<8x1xf32>
    %315 = arith.subf %314, %282 : vector<8x1xf32>
    %316 = vector.broadcast %315 : vector<8x1xf32> to vector<8x128xf32>
    %317 = arith.mulf %316, %273 : vector<8x128xf32>
    %318 = arith.addf %313, %317 : vector<8x128xf32>
    %319 = vector.broadcast %282 : vector<8x1xf32> to vector<8x128xf32>
    %320 = arith.mulf %319, %311 : vector<8x128xf32>
    %cst_69 = arith.constant 1.000000e+00 : f32
    %321 = vector.broadcast %cst_69 : f32 to vector<8x1xf32>
    %322 = arith.subf %321, %282 : vector<8x1xf32>
    %323 = vector.broadcast %322 : vector<8x1xf32> to vector<8x128xf32>
    %324 = arith.mulf %323, %280 : vector<8x128xf32>
    %325 = arith.addf %320, %324 : vector<8x128xf32>
    %c7 = arith.constant 7 : index
    %c0_70 = arith.constant 0 : index
    %c0_71 = arith.constant 0 : index
    %326 = vector.load %arg3[%c7, %c0_70, %c0_71] : memref<8x8x1xf32, #tpu.memory_space<vmem>>, vector<1x8x1xf32>
    %327 = vector.shape_cast %326 : vector<1x8x1xf32> to vector<8x1xf32>
    %328 = vector.extract_strided_slice %8 {offsets = [56, 0], sizes = [8, 512], strides = [1, 1]} : vector<64x512xf32> to vector<8x512xf32>
    %329 = arith.addf %328, %3 : vector<8x512xf32>
    %cst_72 = arith.constant dense<0.000000e+00> : vector<8x512xf32>
    %330 = tpu.matmul %325, %4, %cst_72 {dimension_numbers = #tpu.dot_dimension_numbers<[1], [0], [0], [1], [0, 0, 1, 1], [], []>} : vector<8x128xf32>, vector<128x512xf32>, vector<8x512xf32> -> vector<8x512xf32>
    %331 = arith.addf %329, %330 : vector<8x512xf32>
    %332 = vector.extract_strided_slice %331 {offsets = [0, 0], sizes = [8, 128], strides = [1, 1]} : vector<8x512xf32> to vector<8x128xf32>
    %333 = arith.negf %332 : vector<8x128xf32>
    %334 = math.exp %333 : vector<8x128xf32>
    %cst_73 = arith.constant 1.000000e+00 : f32
    %335 = vector.broadcast %cst_73 : f32 to vector<8x128xf32>
    %336 = arith.addf %335, %334 : vector<8x128xf32>
    %337 = arith.divf %335, %336 : vector<8x128xf32>
    %338 = vector.extract_strided_slice %331 {offsets = [0, 128], sizes = [8, 128], strides = [1, 1]} : vector<8x512xf32> to vector<8x128xf32>
    %339 = arith.negf %338 : vector<8x128xf32>
    %340 = math.exp %339 : vector<8x128xf32>
    %cst_74 = arith.constant 1.000000e+00 : f32
    %341 = vector.broadcast %cst_74 : f32 to vector<8x128xf32>
    %342 = arith.addf %341, %340 : vector<8x128xf32>
    %343 = arith.divf %341, %342 : vector<8x128xf32>
    %344 = vector.extract_strided_slice %331 {offsets = [0, 256], sizes = [8, 128], strides = [1, 1]} : vector<8x512xf32> to vector<8x128xf32>
    %345 = math.tanh %344 : vector<8x128xf32>
    %346 = vector.extract_strided_slice %331 {offsets = [0, 384], sizes = [8, 128], strides = [1, 1]} : vector<8x512xf32> to vector<8x128xf32>
    %347 = arith.negf %346 : vector<8x128xf32>
    %348 = math.exp %347 : vector<8x128xf32>
    %cst_75 = arith.constant 1.000000e+00 : f32
    %349 = vector.broadcast %cst_75 : f32 to vector<8x128xf32>
    %350 = arith.addf %349, %348 : vector<8x128xf32>
    %351 = arith.divf %349, %350 : vector<8x128xf32>
    %352 = arith.mulf %343, %318 : vector<8x128xf32>
    %353 = arith.mulf %337, %345 : vector<8x128xf32>
    %354 = arith.addf %352, %353 : vector<8x128xf32>
    %355 = math.tanh %354 : vector<8x128xf32>
    %356 = arith.mulf %351, %355 : vector<8x128xf32>
    %357 = vector.broadcast %327 : vector<8x1xf32> to vector<8x128xf32>
    %358 = arith.mulf %357, %354 : vector<8x128xf32>
    %cst_76 = arith.constant 1.000000e+00 : f32
    %359 = vector.broadcast %cst_76 : f32 to vector<8x1xf32>
    %360 = arith.subf %359, %327 : vector<8x1xf32>
    %361 = vector.broadcast %360 : vector<8x1xf32> to vector<8x128xf32>
    %362 = arith.mulf %361, %318 : vector<8x128xf32>
    %363 = arith.addf %358, %362 : vector<8x128xf32>
    %364 = vector.broadcast %327 : vector<8x1xf32> to vector<8x128xf32>
    %365 = arith.mulf %364, %356 : vector<8x128xf32>
    %cst_77 = arith.constant 1.000000e+00 : f32
    %366 = vector.broadcast %cst_77 : f32 to vector<8x1xf32>
    %367 = arith.subf %366, %327 : vector<8x1xf32>
    %368 = vector.broadcast %367 : vector<8x1xf32> to vector<8x128xf32>
    %369 = arith.mulf %368, %325 : vector<8x128xf32>
    %370 = arith.addf %365, %369 : vector<8x128xf32>
    %c0_78 = arith.constant 0 : index
    %c0_79 = arith.constant 0 : index
    %371 = vector.load %arg12[%c0_78, %c0_79] : memref<8x128xf32, #tpu.memory_space<vmem>>, vector<8x128xf32>
    tpu.vector_store %arg12[%c0_78, %c0_79], %370 {strides = array<i32>} : memref<8x128xf32, #tpu.memory_space<vmem>>, vector<8x128xf32>,
    %c0_80 = arith.constant 0 : index
    %c0_81 = arith.constant 0 : index
    %372 = vector.load %arg13[%c0_80, %c0_81] : memref<8x128xf32, #tpu.memory_space<vmem>>, vector<8x128xf32>
    tpu.vector_store %arg13[%c0_80, %c0_81], %363 {strides = array<i32>} : memref<8x128xf32, #tpu.memory_space<vmem>>, vector<8x128xf32>,
    %373 = tpu.concatenate %55, %100, %145, %190, %235, %280, %325, %370 in 0 : vector<8x128xf32>, vector<8x128xf32>, vector<8x128xf32>, vector<8x128xf32>, vector<8x128xf32>, vector<8x128xf32>, vector<8x128xf32>, vector<8x128xf32> -> vector<64x128xf32>
    %c0_82 = arith.constant 0 : index
    %c0_83 = arith.constant 0 : index
    %374 = vector.load %arg9[%c0_82, %c0_83] : memref<128x128xf32, #tpu.memory_space<vmem>>, vector<128x128xf32>
    %cst_84 = arith.constant dense<0.000000e+00> : vector<64x128xf32>
    %375 = tpu.matmul %373, %374, %cst_84 {dimension_numbers = #tpu.dot_dimension_numbers<[1], [0], [0], [1], [0, 0, 1, 1], [], []>} : vector<64x128xf32>, vector<128x128xf32>, vector<64x128xf32> -> vector<64x128xf32>
    %c0_85 = arith.constant 0 : index
    %c0_86 = arith.constant 0 : index
    %376 = vector.load %arg10[%c0_85, %c0_86] : memref<1x128xf32, #tpu.memory_space<vmem>>, vector<1x128xf32>
    %377 = vector.broadcast %376 : vector<1x128xf32> to vector<64x128xf32>
    %378 = arith.addf %375, %377 : vector<64x128xf32>
    %cst_87 = arith.constant dense<0xFF800000> : vector<64xf32>
    %379 = vector.multi_reduction <maximumf>, %378, %cst_87 [1] : vector<64x128xf32> to vector<64xf32>
    %380 = vector.shape_cast %379 : vector<64xf32> to vector<64x1xf32>
    %381 = vector.broadcast %380 : vector<64x1xf32> to vector<64x128xf32>
    %382 = arith.subf %378, %381 : vector<64x128xf32>
    %383 = math.exp %382 : vector<64x128xf32>
    %cst_88 = arith.constant dense<0.000000e+00> : vector<64xf32>
    %384 = vector.multi_reduction <add>, %383, %cst_88 [1] : vector<64x128xf32> to vector<64xf32>
    %385 = vector.shape_cast %384 : vector<64xf32> to vector<64x1xf32>
    %386 = math.log %385 : vector<64x1xf32>
    %387 = vector.broadcast %386 : vector<64x1xf32> to vector<64x128xf32>
    %388 = arith.subf %382, %387 : vector<64x128xf32>
    %389 = vector.shape_cast %388 : vector<64x128xf32> to vector<8x8x128xf32>
    %c0_89 = arith.constant 0 : index
    %c0_90 = arith.constant 0 : index
    %c0_91 = arith.constant 0 : index
    %390 = vector.load %arg11[%c0_89, %c0_90, %c0_91] : memref<8x8x128xf32, #tpu.memory_space<vmem>>, vector<8x8x128xf32>
    tpu.vector_store %arg11[%c0_89, %c0_90, %c0_91], %389 {strides = array<i32>} : memref<8x8x128xf32, #tpu.memory_space<vmem>>, vector<8x8x128xf32>,
    return
  }
  func.func @transform_0(%arg0: i32, %arg1: i32) -> (i32, i32, i32) {
    %c0_i32 = arith.constant 0 : i32
    %c0_i32_0 = arith.constant 0 : i32
    return %arg1, %arg0, %c0_i32 : i32, i32, i32
  }
  func.func @transform_1(%arg0: i32, %arg1: i32) -> (i32, i32, i32) {
    %c0_i32 = arith.constant 0 : i32
    %c0_i32_0 = arith.constant 0 : i32
    return %arg1, %arg0, %c0_i32 : i32, i32, i32
  }
  func.func @transform_2(%arg0: i32, %arg1: i32) -> (i32, i32) {
    %c0_i32 = arith.constant 0 : i32
    %c0_i32_0 = arith.constant 0 : i32
    return %arg0, %c0_i32 : i32, i32
  }
  func.func @transform_3(%arg0: i32, %arg1: i32) -> (i32, i32) {
    %c0_i32 = arith.constant 0 : i32
    %c0_i32_0 = arith.constant 0 : i32
    return %arg0, %c0_i32 : i32, i32
  }
  func.func @transform_4(%arg0: i32, %arg1: i32) -> (i32, i32) {
    %c0_i32 = arith.constant 0 : i32
    %c0_i32_0 = arith.constant 0 : i32
    return %arg0, %c0_i32 : i32, i32
  }
  func.func @transform_5(%arg0: i32, %arg1: i32) -> (i32, i32) {
    %c0_i32 = arith.constant 0 : i32
    %c0_i32_0 = arith.constant 0 : i32
    %c0_i32_1 = arith.constant 0 : i32
    return %c0_i32, %c0_i32_0 : i32, i32
  }
  func.func @transform_6(%arg0: i32, %arg1: i32) -> (i32, i32) {
    %c0_i32 = arith.constant 0 : i32
    %c0_i32_0 = arith.constant 0 : i32
    %c0_i32_1 = arith.constant 0 : i32
    return %c0_i32, %c0_i32_0 : i32, i32
  }
  func.func @transform_7(%arg0: i32, %arg1: i32) -> (i32, i32) {
    %c0_i32 = arith.constant 0 : i32
    %c0_i32_0 = arith.constant 0 : i32
    %c0_i32_1 = arith.constant 0 : i32
    return %c0_i32, %c0_i32_0 : i32, i32
  }
  func.func @transform_8(%arg0: i32, %arg1: i32) -> (i32, i32) {
    %c0_i32 = arith.constant 0 : i32
    %c0_i32_0 = arith.constant 0 : i32
    %c0_i32_1 = arith.constant 0 : i32
    return %c0_i32, %c0_i32_0 : i32, i32
  }
  func.func @transform_9(%arg0: i32, %arg1: i32) -> (i32, i32, i32) {
    %c0_i32 = arith.constant 0 : i32
    %c0_i32_0 = arith.constant 0 : i32
    return %arg1, %arg0, %c0_i32 : i32, i32, i32
  }
}

</mosaic_0001>

<llo_original>
// kernel: _forward_impl.2
$region0: #{_forward_impl.2}
  #allocation0 [shape = 'u32[]', space=smem, size = 0x4, offset = 0x4, fixed_abs, tag = 'smem constant byte address 0x4 - core index']
  #allocation1 [shape = 'u32[144,128]{1,0:T(1,128)}', space=vmem, size = 0x12000, scoped, tag = 'internal scratch']
  %s0 = inlined_call_operand.vmem [shape: bf16[8,8,128], index: 0, kind: input, shape index: {}]
  %s1 = inlined_call_operand.vmem [shape: bf16[8,8,128], index: 1, kind: input, shape index: {}]
  %s2 = inlined_call_operand.vmem [shape: f32[8,8,1], index: 2, kind: input, shape index: {}]
  %s3 = inlined_call_operand.vmem [shape: bf16[128,128], index: 3, kind: input, shape index: {}]
  %s4 = inlined_call_operand.vmem [shape: f32[1,128], index: 4, kind: input, shape index: {}]
  %s5 = inlined_call_operand.vmem [shape: bf16[128,128], index: 5, kind: input, shape index: {}]
  %s6 = inlined_call_operand.vmem [shape: f32[1,128], index: 6, kind: input, shape index: {}]
  %s7 = inlined_call_operand.vmem [shape: f32[128,768], index: 7, kind: input, shape index: {}]
  %s8 = inlined_call_operand.vmem [shape: f32[1,768], index: 8, kind: input, shape index: {}]
  %s9 = inlined_call_operand.vmem [shape: f32[8,128], index: 9, kind: output, shape index: {0}]
  %s10 = inlined_call_operand.vmem [shape: f32[8,128], index: 10, kind: output, shape index: {1}]
  %s11 = inlined_call_operand.vmem [shape: f32[8,512], index: 11, kind: output, shape index: {2}]
  %12 = xla_tuple %s9, %s10, %s11
  %s13 = sld [smem:[#allocation0]]
  $region62: #{_forward_impl.2} parent=0
    _
  %s15 = ssub.s32 1, %s13
  %s16 = scalar_select 0, %s15, %s13
  // Predicated region
  $region2: #{_forward_impl.2} parent=0 // pred_check
    _
  $region3: #{_forward_impl.2} parent=0 // pred_check_branch
    %18 = sbr.rel (0) target = $region5
  $region4: #{_forward_impl.2} parent=0 // pred_region
    _
  $region5: #{_forward_impl.2} parent=0 // pred_fallthru
    _
  // Predicated region
  $region6: #{_forward_impl.2} parent=0 // pred_check
    _
  $region7: #{_forward_impl.2} parent=0 // pred_check_branch
    %20 = sbr.rel (0) target = $region9
  $region8: #{_forward_impl.2} parent=0 // pred_region
    _
  $region9: #{_forward_impl.2} parent=0 // pred_fallthru
    _
  // Predicated region
  $region10: #{_forward_impl.2} parent=0 // pred_check
    _
  $region11: #{_forward_impl.2} parent=0 // pred_check_branch
    %22 = sbr.rel (0) target = $region13
  $region12: #{_forward_impl.2} parent=0 // pred_region
    _
  $region13: #{_forward_impl.2} parent=0 // pred_fallthru
    _
  // Predicated region
  $region14: #{_forward_impl.2} parent=0 // pred_check
    _
  $region15: #{_forward_impl.2} parent=0 // pred_check_branch
    %24 = sbr.rel (0) target = $region17
  $region16: #{_forward_impl.2} parent=0 // pred_region
    _
  $region17: #{_forward_impl.2} parent=0 // pred_fallthru
    _
  // Predicated region
  $region18: #{_forward_impl.2} parent=0 // pred_check
    _
  $region19: #{_forward_impl.2} parent=0 // pred_check_branch
    %26 = sbr.rel (0) target = $region21
  $region20: #{_forward_impl.2} parent=0 // pred_region
    _
  $region21: #{_forward_impl.2} parent=0 // pred_fallthru
    _
  // Predicated region
  $region22: #{_forward_impl.2} parent=0 // pred_check
    _
  $region23: #{_forward_impl.2} parent=0 // pred_check_branch
    %28 = sbr.rel (0) target = $region25
  $region24: #{_forward_impl.2} parent=0 // pred_region
    _
  $region25: #{_forward_impl.2} parent=0 // pred_fallthru
    _
  // Predicated region
  $region26: #{_forward_impl.2} parent=0 // pred_check
    _
  $region27: #{_forward_impl.2} parent=0 // pred_check_branch
    %30 = sbr.rel (0) target = $region29
  $region28: #{_forward_impl.2} parent=0 // pred_region
    _
  $region29: #{_forward_impl.2} parent=0 // pred_fallthru
    _
  // Predicated region
  $region30: #{_forward_impl.2} parent=0 // pred_check
    _
  $region31: #{_forward_impl.2} parent=0 // pred_check_branch
    %32 = sbr.rel (0) target = $region33
  $region32: #{_forward_impl.2} parent=0 // pred_region
    _
  $region33: #{_forward_impl.2} parent=0 // pred_fallthru
    _
  // Predicated region
  $region34: #{_forward_impl.2} parent=0 // pred_check
    _
  $region35: #{_forward_impl.2} parent=0 // pred_check_branch
    %34 = sbr.rel (0) target = $region37
  $region36: #{_forward_impl.2} parent=0 // pred_region
    _
  $region37: #{_forward_impl.2} parent=0 // pred_fallthru
    _
  %v36 = vld [vmem:[%s0] sm:$0xf]
  %v37 = vld [vmem:[%s0 + $0x4] sm:$0xf]
  %v38 = vld [vmem:[%s0 + $0x8] sm:$0xf]
  %v39 = vld [vmem:[%s0 + $0xc] sm:$0xf]
  %v40 = vld [vmem:[%s0 + $0x10] sm:$0xf]
  %v41 = vld [vmem:[%s0 + $0x14] sm:$0xf]
  %v42 = vld [vmem:[%s0 + $0x18] sm:$0xf]
  %v43 = vld [vmem:[%s0 + $0x1c] sm:$0xf]
  %v44 = vld [vmem:[%s1] sm:$0xf]
  %v45 = vld [vmem:[%s1 + $0x4] sm:$0xf]
  %v46 = vld [vmem:[%s1 + $0x8] sm:$0xf]
  %v47 = vld [vmem:[%s1 + $0xc] sm:$0xf]
  %v48 = vld [vmem:[%s1 + $0x10] sm:$0xf]
  %v49 = vld [vmem:[%s1 + $0x14] sm:$0xf]
  %v50 = vld [vmem:[%s1 + $0x18] sm:$0xf]
  %v51 = vld [vmem:[%s1 + $0x1c] sm:$0xf]
  %v52 = vld [vmem:[%s3] sm:$0xf]
  %v53 = vld [vmem:[%s3 + $0x4] sm:$0xf]
  %v54 = vld [vmem:[%s3 + $0x8] sm:$0xf]
  %v55 = vld [vmem:[%s3 + $0xc] sm:$0xf]
  %v56 = vld [vmem:[%s3 + $0x10] sm:$0xf]
  %v57 = vld [vmem:[%s3 + $0x14] sm:$0xf]
  %v58 = vld [vmem:[%s3 + $0x18] sm:$0xf]
  %v59 = vld [vmem:[%s3 + $0x1c] sm:$0xf]
  %v60 = vld [vmem:[%s3 + $0x20] sm:$0xf]
  %v61 = vld [vmem:[%s3 + $0x24] sm:$0xf]
  %v62 = vld [vmem:[%s3 + $0x28] sm:$0xf]
  %v63 = vld [vmem:[%s3 + $0x2c] sm:$0xf]
  %v64 = vld [vmem:[%s3 + $0x30] sm:$0xf]
  %v65 = vld [vmem:[%s3 + $0x34] sm:$0xf]
  %v66 = vld [vmem:[%s3 + $0x38] sm:$0xf]
  %v67 = vld [vmem:[%s3 + $0x3c] sm:$0xf]
  %v68 = vld [vmem:[%s4] sm:$0x1]
  %v70 = vlaneseq
  %v71 = vshrl.u32 %v70, 7
  %v72 = vsub.s32 0, %v71
  %v73 = vrot.slane %v68, %v72
  %v83 = vunpack.c.l.b16 %v36
  %v84 = vunpack.c.l.b16 %v37
  %v85 = vunpack.c.l.b16 %v38
  %v86 = vunpack.c.l.b16 %v39
  %v87 = vunpack.c.l.b16 %v40
  %v88 = vunpack.c.l.b16 %v41
  %v89 = vunpack.c.l.b16 %v42
  %v90 = vunpack.c.l.b16 %v43
  %v91 = vpack.c.b16 %v84, %v83
  %v92 = vpack.c.b16 %v86, %v85
  %v93 = vpack.c.b16 %v88, %v87
  %v94 = vpack.c.b16 %v90, %v89
  %v115 = vunpack.c.l.b16 %v52
  %v116 = vunpack.c.l.b16 %v53
  %v117 = vunpack.c.l.b16 %v54
  %v118 = vunpack.c.l.b16 %v55
  %v119 = vunpack.c.l.b16 %v56
  %v120 = vunpack.c.l.b16 %v57
  %v121 = vunpack.c.l.b16 %v58
  %v122 = vunpack.c.l.b16 %v59
  %v123 = vunpack.c.l.b16 %v60
  %v124 = vunpack.c.l.b16 %v61
  %v125 = vunpack.c.l.b16 %v62
  %v126 = vunpack.c.l.b16 %v63
  %v127 = vunpack.c.l.b16 %v64
  %v128 = vunpack.c.l.b16 %v65
  %v129 = vunpack.c.l.b16 %v66
  %v130 = vunpack.c.l.b16 %v67
  %v131 = vpack.c.b16 %v116, %v115
  %v132 = vpack.c.b16 %v118, %v117
  %v133 = vpack.c.b16 %v120, %v119
  %v134 = vpack.c.b16 %v122, %v121
  %v135 = vpack.c.b16 %v124, %v123
  %v136 = vpack.c.b16 %v126, %v125
  %v137 = vpack.c.b16 %v128, %v127
  %v138 = vpack.c.b16 %v130, %v129
  %147 = vmatprep.subr.bf16.mxu0 0
  %148 = vmatpush1.bf16.msra.mxu0 %v131
  %149 = vmatprep.subr.bf16.mxu0 0
  %150 = vmatpush1.bf16.msra.mxu0 %v132
  %151 = vmatprep.subr.bf16.mxu0 0
  %152 = vmatpush1.bf16.msra.mxu0 %v133
  %153 = vmatprep.subr.bf16.mxu0 0
  %154 = vmatpush1.bf16.msra.mxu0 %v134
  %155 = vmatprep.subr.bf16.mxu0 0
  %156 = vmatpush1.bf16.msra.mxu0 %v135
  %157 = vmatprep.subr.bf16.mxu0 0
  %158 = vmatpush1.bf16.msra.mxu0 %v136
  %159 = vmatprep.subr.bf16.mxu0 0
  %160 = vmatpush1.bf16.msra.mxu0 %v137
  %161 = vmatprep.subr.bf16.mxu0 0
  %162 = vmatpush1.bf16.msra.mxu0 %v138
  %163 = vmatprep.subr.bf16.mxu0 0
  %164 = vmatpush1.bf16.msra.mxu0 0
  %165 = vmatprep.subr.bf16.mxu0 0
  %166 = vmatpush1.bf16.msra.mxu0 0
  %167 = vmatprep.subr.bf16.mxu0 0
  %168 = vmatpush1.bf16.msra.mxu0 0
  %169 = vmatprep.subr.bf16.mxu0 0
  %170 = vmatpush1.bf16.msra.mxu0 0
  %171 = vmatprep.subr.bf16.mxu0 0
  %172 = vmatpush1.bf16.msra.mxu0 0
  %173 = vmatprep.subr.bf16.mxu0 0
  %174 = vmatpush1.bf16.msra.mxu0 0
  %175 = vmatprep.subr.bf16.mxu0 0
  %176 = vmatpush1.bf16.msra.mxu0 0
  %177 = vmatprep.subr.bf16.mxu0 0
  %178 = vmatpush1.bf16.msra.mxu0 0
  %179 = vmatprep.mubr.bf16.mxu0 0
  %180 = vmatmul.mubr.bf16.gmra.mrb[0].mxu0 %v91
  %v181 = vpop.f32.mrb[0].mxu0
  %v182 = vadd.f32 %v73, %v181
  %v183 = vpop.f32.mrb[0].mxu0
  %v184 = vpop.f32.mrb[0].mxu0
  %v185 = vadd.f32 %v73, %v184
  %v186 = vpop.f32.mrb[0].mxu0
  %187 = vmatprep.mubr.bf16.mxu0 0
  %188 = vmatmul.mubr.bf16.gmra.mrb[0].mxu0 %v92
  %v189 = vpop.f32.mrb[0].mxu0
  %v190 = vadd.f32 %v73, %v189
  %v191 = vpop.f32.mrb[0].mxu0
  %v192 = vpop.f32.mrb[0].mxu0
  %v193 = vadd.f32 %v73, %v192
  %v194 = vpop.f32.mrb[0].mxu0
  %195 = vmatprep.mubr.bf16.mxu0 0
  %196 = vmatmul.mubr.bf16.gmra.mrb[0].mxu0 %v93
  %v197 = vpop.f32.mrb[0].mxu0
  %v198 = vadd.f32 %v73, %v197
  %v199 = vpop.f32.mrb[0].mxu0
  %v200 = vpop.f32.mrb[0].mxu0
  %v201 = vadd.f32 %v73, %v200
  %v202 = vpop.f32.mrb[0].mxu0
  %203 = vmatprep.mubr.bf16.mxu0 0
  %204 = vmatmul.mubr.bf16.gmra.mrb[0].mxu0 %v94
  %v205 = vpop.f32.mrb[0].mxu0
  %v206 = vadd.f32 %v73, %v205
  %v207 = vpop.f32.mrb[0].mxu0
  %v208 = vpop.f32.mrb[0].mxu0
  %v209 = vadd.f32 %v73, %v208
  %v210 = vpop.f32.mrb[0].mxu0
  %211 = vdwg.mxu0
  %v212 = vld [vmem:[%s5] sm:$0xf]
  %v213 = vld [vmem:[%s5 + $0x4] sm:$0xf]
  %v214 = vld [vmem:[%s5 + $0x8] sm:$0xf]
  %v215 = vld [vmem:[%s5 + $0xc] sm:$0xf]
  %v216 = vld [vmem:[%s5 + $0x10] sm:$0xf]
  %v217 = vld [vmem:[%s5 + $0x14] sm:$0xf]
  %v218 = vld [vmem:[%s5 + $0x18] sm:$0xf]
  %v219 = vld [vmem:[%s5 + $0x1c] sm:$0xf]
  %v220 = vld [vmem:[%s5 + $0x20] sm:$0xf]
  %v221 = vld [vmem:[%s5 + $0x24] sm:$0xf]
  %v222 = vld [vmem:[%s5 + $0x28] sm:$0xf]
  %v223 = vld [vmem:[%s5 + $0x2c] sm:$0xf]
  %v224 = vld [vmem:[%s5 + $0x30] sm:$0xf]
  %v225 = vld [vmem:[%s5 + $0x34] sm:$0xf]
  %v226 = vld [vmem:[%s5 + $0x38] sm:$0xf]
  %v227 = vld [vmem:[%s5 + $0x3c] sm:$0xf]
  %v236 = vunpack.c.l.b16 %v44
  %v237 = vunpack.c.l.b16 %v45
  %v238 = vunpack.c.l.b16 %v46
  %v239 = vunpack.c.l.b16 %v47
  %v240 = vunpack.c.l.b16 %v48
  %v241 = vunpack.c.l.b16 %v49
  %v242 = vunpack.c.l.b16 %v50
  %v243 = vunpack.c.l.b16 %v51
  %v244 = vpack.c.b16 %v237, %v236
  %v245 = vpack.c.b16 %v239, %v238
  %v246 = vpack.c.b16 %v241, %v240
  %v247 = vpack.c.b16 %v243, %v242
  %v268 = vunpack.c.l.b16 %v212
  %v269 = vunpack.c.l.b16 %v213
  %v270 = vunpack.c.l.b16 %v214
  %v271 = vunpack.c.l.b16 %v215
  %v272 = vunpack.c.l.b16 %v216
  %v273 = vunpack.c.l.b16 %v217
  %v274 = vunpack.c.l.b16 %v218
  %v275 = vunpack.c.l.b16 %v219
  %v276 = vunpack.c.l.b16 %v220
  %v277 = vunpack.c.l.b16 %v221
  %v278 = vunpack.c.l.b16 %v222
  %v279 = vunpack.c.l.b16 %v223
  %v280 = vunpack.c.l.b16 %v224
  %v281 = vunpack.c.l.b16 %v225
  %v282 = vunpack.c.l.b16 %v226
  %v283 = vunpack.c.l.b16 %v227
  %v284 = vpack.c.b16 %v269, %v268
  %v285 = vpack.c.b16 %v271, %v270
  %v286 = vpack.c.b16 %v273, %v272
  %v287 = vpack.c.b16 %v275, %v274
  %v288 = vpack.c.b16 %v277, %v276
  %v289 = vpack.c.b16 %v279, %v278
  %v290 = vpack.c.b16 %v281, %v280
  %v291 = vpack.c.b16 %v283, %v282
  %300 = vmatprep.subr.bf16.mxu0 0
  %301 = vmatpush1.bf16.msra.mxu0 %v284
  %302 = vmatprep.subr.bf16.mxu0 0
  %303 = vmatpush1.bf16.msra.mxu0 %v285
  %304 = vmatprep.subr.bf16.mxu0 0
  %305 = vmatpush1.bf16.msra.mxu0 %v286
  %306 = vmatprep.subr.bf16.mxu0 0
  %307 = vmatpush1.bf16.msra.mxu0 %v287
  %308 = vmatprep.subr.bf16.mxu0 0
  %309 = vmatpush1.bf16.msra.mxu0 %v288
  %310 = vmatprep.subr.bf16.mxu0 0
  %311 = vmatpush1.bf16.msra.mxu0 %v289
  %312 = vmatprep.subr.bf16.mxu0 0
  %313 = vmatpush1.bf16.msra.mxu0 %v290
  %314 = vmatprep.subr.bf16.mxu0 0
  %315 = vmatpush1.bf16.msra.mxu0 %v291
  %316 = vmatprep.subr.bf16.mxu0 0
  %317 = vmatpush1.bf16.msra.mxu0 0
  %318 = vmatprep.subr.bf16.mxu0 0
  %319 = vmatpush1.bf16.msra.mxu0 0
  %320 = vmatprep.subr.bf16.mxu0 0
  %321 = vmatpush1.bf16.msra.mxu0 0
  %322 = vmatprep.subr.bf16.mxu0 0
  %323 = vmatpush1.bf16.msra.mxu0 0
  %324 = vmatprep.subr.bf16.mxu0 0
  %325 = vmatpush1.bf16.msra.mxu0 0
  %326 = vmatprep.subr.bf16.mxu0 0
  %327 = vmatpush1.bf16.msra.mxu0 0
  %328 = vmatprep.subr.bf16.mxu0 0
  %329 = vmatpush1.bf16.msra.mxu0 0
  %330 = vmatprep.subr.bf16.mxu0 0
  %331 = vmatpush1.bf16.msra.mxu0 0
  %332 = vmatprep.mubr.bf16.mxu0 0
  %333 = vmatmul.mubr.bf16.gmra.mrb[0].mxu0 %v244
  %v334 = vpop.f32.mrb[0].mxu0
  %v335 = vadd.f32 0.0, %v334
  %v336 = vpop.f32.mrb[0].mxu0
  %v337 = vpop.f32.mrb[0].mxu0
  %v338 = vadd.f32 0.0, %v337
  %v339 = vpop.f32.mrb[0].mxu0
  %340 = vmatprep.mubr.bf16.mxu0 0
  %341 = vmatmul.mubr.bf16.gmra.mrb[0].mxu0 %v245
  %v342 = vpop.f32.mrb[0].mxu0
  %v343 = vadd.f32 0.0, %v342
  %v344 = vpop.f32.mrb[0].mxu0
  %v345 = vpop.f32.mrb[0].mxu0
  %v346 = vadd.f32 0.0, %v345
  %v347 = vpop.f32.mrb[0].mxu0
  %348 = vmatprep.mubr.bf16.mxu0 0
  %349 = vmatmul.mubr.bf16.gmra.mrb[0].mxu0 %v246
  %v350 = vpop.f32.mrb[0].mxu0
  %v351 = vadd.f32 0.0, %v350
  %v352 = vpop.f32.mrb[0].mxu0
  %v353 = vpop.f32.mrb[0].mxu0
  %v354 = vadd.f32 0.0, %v353
  %v355 = vpop.f32.mrb[0].mxu0
  %356 = vmatprep.mubr.bf16.mxu0 0
  %357 = vmatmul.mubr.bf16.gmra.mrb[0].mxu0 %v247
  %v358 = vpop.f32.mrb[0].mxu0
  %v359 = vadd.f32 0.0, %v358
  %v360 = vpop.f32.mrb[0].mxu0
  %v361 = vpop.f32.mrb[0].mxu0
  %v362 = vadd.f32 0.0, %v361
  %v363 = vpop.f32.mrb[0].mxu0
  %364 = vdwg.mxu0
  %v365 = vadd.f32 %v182, %v335
  %v366 = vadd.f32 %v185, %v338
  %v367 = vadd.f32 %v190, %v343
  %v368 = vadd.f32 %v193, %v346
  %v369 = vadd.f32 %v198, %v351
  %v370 = vadd.f32 %v201, %v354
  %v371 = vadd.f32 %v206, %v359
  %v372 = vadd.f32 %v209, %v362
  %v373 = vld [vmem:[%s6] sm:$0x1]
  %v375 = vlaneseq
  %v376 = vshrl.u32 %v375, 7
  %v377 = vsub.s32 0, %v376
  %v378 = vrot.slane %v373, %v377
  %v380 = vadd.f32 %v365, %v378
  %v381 = vadd.f32 %v366, %v378
  %v382 = vadd.f32 %v367, %v378
  %v383 = vadd.f32 %v368, %v378
  %v384 = vadd.f32 %v369, %v378
  %v385 = vadd.f32 %v370, %v378
  %v386 = vadd.f32 %v371, %v378
  %v387 = vadd.f32 %v372, %v378
  %v388 = vld [vmem:[%s2] sm:$0xff]
  %v389 = vld [vmem:[%s2 + $0x8] sm:$0xff]
  %v390 = vld [vmem:[%s2 + $0x10] sm:$0xff]
  %v391 = vld [vmem:[%s2 + $0x18] sm:$0xff]
  %v392 = vld [vmem:[%s2 + $0x20] sm:$0xff]
  %v393 = vld [vmem:[%s2 + $0x28] sm:$0xff]
  %v394 = vld [vmem:[%s2 + $0x30] sm:$0xff]
  %v395 = vld [vmem:[%s2 + $0x38] sm:$0xff]
  %397 = vset.pattern.permute.xlu0 0
  %398 = vperm.xlu0 %397, %v388
  %v399 = vpop.permute.xlu0 %398
  %402 = vset.pattern.permute.xlu0 0
  %403 = vperm.xlu0 %402, %v389
  %v404 = vpop.permute.xlu0 %403
  %407 = vset.pattern.permute.xlu0 0
  %408 = vperm.xlu0 %407, %v390
  %v409 = vpop.permute.xlu0 %408
  %412 = vset.pattern.permute.xlu0 0
  %413 = vperm.xlu0 %412, %v391
  %v414 = vpop.permute.xlu0 %413
  %417 = vset.pattern.permute.xlu0 0
  %418 = vperm.xlu0 %417, %v392
  %v419 = vpop.permute.xlu0 %418
  %422 = vset.pattern.permute.xlu0 0
  %423 = vperm.xlu0 %422, %v393
  %v424 = vpop.permute.xlu0 %423
  %427 = vset.pattern.permute.xlu0 0
  %428 = vperm.xlu0 %427, %v394
  %v429 = vpop.permute.xlu0 %428
  %432 = vset.pattern.permute.xlu0 0
  %433 = vperm.xlu0 %432, %v395
  %v434 = vpop.permute.xlu0 %433
  %v436 = vmul.f32 %v380, %v399
  %v437 = vmul.f32 %v381, %v404
  %v438 = vmul.f32 %v382, %v409
  %v439 = vmul.f32 %v383, %v414
  %v440 = vmul.f32 %v384, %v419
  %v441 = vmul.f32 %v385, %v424
  %v442 = vmul.f32 %v386, %v429
  %v443 = vmul.f32 %v387, %v434
  %v444 = vrot.slane %v436, 4
  %v445 = vadd.f32 %v436, %v444
  %v446 = vrot.slane %v445, 2
  %v447 = vadd.f32 %v445, %v446
  %v448 = vrot.slane %v447, 1
  %v449 = vadd.f32 %v447, %v448
  %v450 = vrot.slane %v437, 4
  %v451 = vadd.f32 %v437, %v450
  %v452 = vrot.slane %v451, 2
  %v453 = vadd.f32 %v451, %v452
  %v454 = vrot.slane %v453, 1
  %v455 = vadd.f32 %v453, %v454
  %v456 = vrot.slane %v438, 4
  %v457 = vadd.f32 %v438, %v456
  %v458 = vrot.slane %v457, 2
  %v459 = vadd.f32 %v457, %v458
  %v460 = vrot.slane %v459, 1
  %v461 = vadd.f32 %v459, %v460
  %v462 = vrot.slane %v439, 4
  %v463 = vadd.f32 %v439, %v462
  %v464 = vrot.slane %v463, 2
  %v465 = vadd.f32 %v463, %v464
  %v466 = vrot.slane %v465, 1
  %v467 = vadd.f32 %v465, %v466
  %v468 = vrot.slane %v440, 4
  %v469 = vadd.f32 %v440, %v468
  %v470 = vrot.slane %v469, 2
  %v471 = vadd.f32 %v469, %v470
  %v472 = vrot.slane %v471, 1
  %v473 = vadd.f32 %v471, %v472
  %v474 = vrot.slane %v441, 4
  %v475 = vadd.f32 %v441, %v474
  %v476 = vrot.slane %v475, 2
  %v477 = vadd.f32 %v475, %v476
  %v478 = vrot.slane %v477, 1
  %v479 = vadd.f32 %v477, %v478
  %v480 = vrot.slane %v442, 4
  %v481 = vadd.f32 %v442, %v480
  %v482 = vrot.slane %v481, 2
  %v483 = vadd.f32 %v481, %v482
  %v484 = vrot.slane %v483, 1
  %v485 = vadd.f32 %v483, %v484
  %v486 = vrot.slane %v443, 4
  %v487 = vadd.f32 %v443, %v486
  %v488 = vrot.slane %v487, 2
  %v489 = vadd.f32 %v487, %v488
  %v490 = vrot.slane %v489, 1
  %v491 = vadd.f32 %v489, %v490
  %vm492 = vcmask 7168
  %v493 = vsel %vm492, %v388, 0.0
  %v494 = vrot.slane %v493, 4
  %v495 = vadd.f32 %v493, %v494
  %v496 = vrot.slane %v495, 2
  %v497 = vadd.f32 %v495, %v496
  %v498 = vrot.slane %v497, 1
  %v499 = vadd.f32 %v497, %v498
  %v500 = vsel %vm492, %v389, 0.0
  %v501 = vrot.slane %v500, 4
  %v502 = vadd.f32 %v500, %v501
  %v503 = vrot.slane %v502, 2
  %v504 = vadd.f32 %v502, %v503
  %v505 = vrot.slane %v504, 1
  %v506 = vadd.f32 %v504, %v505
  %v507 = vsel %vm492, %v390, 0.0
  %v508 = vrot.slane %v507, 4
  %v509 = vadd.f32 %v507, %v508
  %v510 = vrot.slane %v509, 2
  %v511 = vadd.f32 %v509, %v510
  %v512 = vrot.slane %v511, 1
  %v513 = vadd.f32 %v511, %v512
  %v514 = vsel %vm492, %v391, 0.0
  %v515 = vrot.slane %v514, 4
  %v516 = vadd.f32 %v514, %v515
  %v517 = vrot.slane %v516, 2
  %v518 = vadd.f32 %v516, %v517
  %v519 = vrot.slane %v518, 1
  %v520 = vadd.f32 %v518, %v519
  %v521 = vsel %vm492, %v392, 0.0
  %v522 = vrot.slane %v521, 4
  %v523 = vadd.f32 %v521, %v522
  %v524 = vrot.slane %v523, 2
  %v525 = vadd.f32 %v523, %v524
  %v526 = vrot.slane %v525, 1
  %v527 = vadd.f32 %v525, %v526
  %v528 = vsel %vm492, %v393, 0.0
  %v529 = vrot.slane %v528, 4
  %v530 = vadd.f32 %v528, %v529
  %v531 = vrot.slane %v530, 2
  %v532 = vadd.f32 %v530, %v531
  %v533 = vrot.slane %v532, 1
  %v534 = vadd.f32 %v532, %v533
  %v535 = vsel %vm492, %v394, 0.0
  %v536 = vrot.slane %v535, 4
  %v537 = vadd.f32 %v535, %v536
  %v538 = vrot.slane %v537, 2
  %v539 = vadd.f32 %v537, %v538
  %v540 = vrot.slane %v539, 1
  %v541 = vadd.f32 %v539, %v540
  %v542 = vsel %vm492, %v395, 0.0
  %v543 = vrot.slane %v542, 4
  %v544 = vadd.f32 %v542, %v543
  %v545 = vrot.slane %v544, 2
  %v546 = vadd.f32 %v544, %v545
  %v547 = vrot.slane %v546, 1
  %v548 = vadd.f32 %v546, %v547
  %v549 = vmax.f32 %v499, 1.0
  %v550 = vmax.f32 %v506, 1.0
  %v551 = vmax.f32 %v513, 1.0
  %v552 = vmax.f32 %v520, 1.0
  %v553 = vmax.f32 %v527, 1.0
  %v554 = vmax.f32 %v534, 1.0
  %v555 = vmax.f32 %v541, 1.0
  %v556 = vmax.f32 %v548, 1.0
  %558 = vset.pattern.permute.xlu0 0
  %559 = vperm.xlu0 %558, %v549
  %v560 = vpop.permute.xlu0 %559
  %563 = vset.pattern.permute.xlu0 0
  %564 = vperm.xlu0 %563, %v550
  %v565 = vpop.permute.xlu0 %564
  %568 = vset.pattern.permute.xlu0 0
  %569 = vperm.xlu0 %568, %v551
  %v570 = vpop.permute.xlu0 %569
  %573 = vset.pattern.permute.xlu0 0
  %574 = vperm.xlu0 %573, %v552
  %v575 = vpop.permute.xlu0 %574
  %578 = vset.pattern.permute.xlu0 0
  %579 = vperm.xlu0 %578, %v553
  %v580 = vpop.permute.xlu0 %579
  %583 = vset.pattern.permute.xlu0 0
  %584 = vperm.xlu0 %583, %v554
  %v585 = vpop.permute.xlu0 %584
  %588 = vset.pattern.permute.xlu0 0
  %589 = vperm.xlu0 %588, %v555
  %v590 = vpop.permute.xlu0 %589
  %593 = vset.pattern.permute.xlu0 0
  %594 = vperm.xlu0 %593, %v556
  %v595 = vpop.permute.xlu0 %594
  %v597 = vrcp.pop %v560
  %v598 = vmul.f32 %v449, %v597
  %v599 = vrcp.pop %v565
  %v600 = vmul.f32 %v455, %v599
  %v601 = vrcp.pop %v570
  %v602 = vmul.f32 %v461, %v601
  %v603 = vrcp.pop %v575
  %v604 = vmul.f32 %v467, %v603
  %v605 = vrcp.pop %v580
  %v606 = vmul.f32 %v473, %v605
  %v607 = vrcp.pop %v585
  %v608 = vmul.f32 %v479, %v607
  %v609 = vrcp.pop %v590
  %v610 = vmul.f32 %v485, %v609
  %v611 = vrcp.pop %v595
  %v612 = vmul.f32 %v491, %v611
  %v613 = vld [vmem:[%s7] sm:$0xff]
  %v614 = vld [vmem:[%s7 + $0x8] sm:$0xff]
  %v615 = vld [vmem:[%s7 + $0x10] sm:$0xff]
  %v616 = vld [vmem:[%s7 + $0x18] sm:$0xff]
  %v617 = vld [vmem:[%s7 + $0x20] sm:$0xff]
  %v618 = vld [vmem:[%s7 + $0x28] sm:$0xff]
  %v619 = vld [vmem:[%s7 + $0x30] sm:$0xff]
  %v620 = vld [vmem:[%s7 + $0x38] sm:$0xff]
  %v621 = vld [vmem:[%s7 + $0x40] sm:$0xff]
  %v622 = vld [vmem:[%s7 + $0x48] sm:$0xff]
  %v623 = vld [vmem:[%s7 + $0x50] sm:$0xff]
  %v624 = vld [vmem:[%s7 + $0x58] sm:$0xff]
  %v625 = vld [vmem:[%s7 + $0x60] sm:$0xff]
  %v626 = vld [vmem:[%s7 + $0x68] sm:$0xff]
  %v627 = vld [vmem:[%s7 + $0x70] sm:$0xff]
  %v628 = vld [vmem:[%s7 + $0x78] sm:$0xff]
  %v629 = vld [vmem:[%s7 + $0x80] sm:$0xff]
  %v630 = vld [vmem:[%s7 + $0x88] sm:$0xff]
  %v631 = vld [vmem:[%s7 + $0x90] sm:$0xff]
  %v632 = vld [vmem:[%s7 + $0x98] sm:$0xff]
  %v633 = vld [vmem:[%s7 + $0xa0] sm:$0xff]
  %v634 = vld [vmem:[%s7 + $0xa8] sm:$0xff]
  %v635 = vld [vmem:[%s7 + $0xb0] sm:$0xff]
  %v636 = vld [vmem:[%s7 + $0xb8] sm:$0xff]
  %v637 = vld [vmem:[%s7 + $0xc0] sm:$0xff]
  %v638 = vld [vmem:[%s7 + $0xc8] sm:$0xff]
  %v639 = vld [vmem:[%s7 + $0xd0] sm:$0xff]
  %v640 = vld [vmem:[%s7 + $0xd8] sm:$0xff]
  %v641 = vld [vmem:[%s7 + $0xe0] sm:$0xff]
  %v642 = vld [vmem:[%s7 + $0xe8] sm:$0xff]
  %v643 = vld [vmem:[%s7 + $0xf0] sm:$0xff]
  %v644 = vld [vmem:[%s7 + $0xf8] sm:$0xff]
  %v645 = vld [vmem:[%s7 + $0x100] sm:$0xff]
  %v646 = vld [vmem:[%s7 + $0x108] sm:$0xff]
  %v647 = vld [vmem:[%s7 + $0x110] sm:$0xff]
  %v648 = vld [vmem:[%s7 + $0x118] sm:$0xff]
  %v649 = vld [vmem:[%s7 + $0x120] sm:$0xff]
  %v650 = vld [vmem:[%s7 + $0x128] sm:$0xff]
  %v651 = vld [vmem:[%s7 + $0x130] sm:$0xff]
  %v652 = vld [vmem:[%s7 + $0x138] sm:$0xff]
  %v653 = vld [vmem:[%s7 + $0x140] sm:$0xff]
  %v654 = vld [vmem:[%s7 + $0x148] sm:$0xff]
  %v655 = vld [vmem:[%s7 + $0x150] sm:$0xff]
  %v656 = vld [vmem:[%s7 + $0x158] sm:$0xff]
  %v657 = vld [vmem:[%s7 + $0x160] sm:$0xff]
  %v658 = vld [vmem:[%s7 + $0x168] sm:$0xff]
  %v659 = vld [vmem:[%s7 + $0x170] sm:$0xff]
  %v660 = vld [vmem:[%s7 + $0x178] sm:$0xff]
  %v661 = vld [vmem:[%s7 + $0x180] sm:$0xff]
  %v662 = vld [vmem:[%s7 + $0x188] sm:$0xff]
  %v663 = vld [vmem:[%s7 + $0x190] sm:$0xff]
  %v664 = vld [vmem:[%s7 + $0x198] sm:$0xff]
  %v665 = vld [vmem:[%s7 + $0x1a0] sm:$0xff]
  %v666 = vld [vmem:[%s7 + $0x1a8] sm:$0xff]
  %v667 = vld [vmem:[%s7 + $0x1b0] sm:$0xff]
  %v668 = vld [vmem:[%s7 + $0x1b8] sm:$0xff]
  %v669 = vld [vmem:[%s7 + $0x1c0] sm:$0xff]
  %v670 = vld [vmem:[%s7 + $0x1c8] sm:$0xff]
  %v671 = vld [vmem:[%s7 + $0x1d0] sm:$0xff]
  %v672 = vld [vmem:[%s7 + $0x1d8] sm:$0xff]
  %v673 = vld [vmem:[%s7 + $0x1e0] sm:$0xff]
  %v674 = vld [vmem:[%s7 + $0x1e8] sm:$0xff]
  %v675 = vld [vmem:[%s7 + $0x1f0] sm:$0xff]
  %v676 = vld [vmem:[%s7 + $0x1f8] sm:$0xff]
  %v677 = vld [vmem:[%s7 + $0x200] sm:$0xff]
  %v678 = vld [vmem:[%s7 + $0x208] sm:$0xff]
  %v679 = vld [vmem:[%s7 + $0x210] sm:$0xff]
  %v680 = vld [vmem:[%s7 + $0x218] sm:$0xff]
  %v681 = vld [vmem:[%s7 + $0x220] sm:$0xff]
  %v682 = vld [vmem:[%s7 + $0x228] sm:$0xff]
  %v683 = vld [vmem:[%s7 + $0x230] sm:$0xff]
  %v684 = vld [vmem:[%s7 + $0x238] sm:$0xff]
  %v685 = vld [vmem:[%s7 + $0x240] sm:$0xff]
  %v686 = vld [vmem:[%s7 + $0x248] sm:$0xff]
  %v687 = vld [vmem:[%s7 + $0x250] sm:$0xff]
  %v688 = vld [vmem:[%s7 + $0x258] sm:$0xff]
  %v689 = vld [vmem:[%s7 + $0x260] sm:$0xff]
  %v690 = vld [vmem:[%s7 + $0x268] sm:$0xff]
  %v691 = vld [vmem:[%s7 + $0x270] sm:$0xff]
  %v692 = vld [vmem:[%s7 + $0x278] sm:$0xff]
  %v693 = vld [vmem:[%s7 + $0x280] sm:$0xff]
  %v694 = vld [vmem:[%s7 + $0x288] sm:$0xff]
  %v695 = vld [vmem:[%s7 + $0x290] sm:$0xff]
  %v696 = vld [vmem:[%s7 + $0x298] sm:$0xff]
  %v697 = vld [vmem:[%s7 + $0x2a0] sm:$0xff]
  %v698 = vld [vmem:[%s7 + $0x2a8] sm:$0xff]
  %v699 = vld [vmem:[%s7 + $0x2b0] sm:$0xff]
  %v700 = vld [vmem:[%s7 + $0x2b8] sm:$0xff]
  %v701 = vld [vmem:[%s7 + $0x2c0] sm:$0xff]
  %v702 = vld [vmem:[%s7 + $0x2c8] sm:$0xff]
  %v703 = vld [vmem:[%s7 + $0x2d0] sm:$0xff]
  %v704 = vld [vmem:[%s7 + $0x2d8] sm:$0xff]
  %v705 = vld [vmem:[%s7 + $0x2e0] sm:$0xff]
  %v706 = vld [vmem:[%s7 + $0x2e8] sm:$0xff]
  %v707 = vld [vmem:[%s7 + $0x2f0] sm:$0xff]
  %v708 = vld [vmem:[%s7 + $0x2f8] sm:$0xff]
  %v709 = vld [vmem:[%s8] sm:$0x3f]
  %v711 = vlaneseq
  %v712 = vshrl.u32 %v711, 7
  %v713 = vsub.s32 0, %v712
  %v714 = vrot.slane %v709, %v713
  %v715 = vlaneseq
  %v716 = vshrl.u32 %v715, 7
  %v717 = vsub.s32 1, %v716
  %v718 = vrot.slane %v709, %v717
  %v719 = vlaneseq
  %v720 = vshrl.u32 %v719, 7
  %v721 = vsub.s32 2, %v720
  %v722 = vrot.slane %v709, %v721
  %v723 = vlaneseq
  %v724 = vshrl.u32 %v723, 7
  %v725 = vsub.s32 3, %v724
  %v726 = vrot.slane %v709, %v725
  %v727 = vlaneseq
  %v728 = vshrl.u32 %v727, 7
  %v729 = vsub.s32 4, %v728
  %v730 = vrot.slane %v709, %v729
  %v731 = vlaneseq
  %v732 = vshrl.u32 %v731, 7
  %v733 = vsub.s32 5, %v732
  %v734 = vrot.slane %v709, %v733
  %vm749 = vcmask 1041409
  %v750 = vsel %vm749, %v600, %v598
  %vm751 = vcmask 1042434
  %v752 = vsel %vm751, %v602, %v750
  %vm753 = vcmask 1043459
  %v754 = vsel %vm753, %v604, %v752
  %vm755 = vcmask 1044484
  %v756 = vsel %vm755, %v606, %v754
  %vm757 = vcmask 1045509
  %v758 = vsel %vm757, %v608, %v756
  %vm759 = vcmask 1046534
  %v760 = vsel %vm759, %v610, %v758
  %vm761 = vcmask 1047559
  %v762 = vsel %vm761, %v612, %v760
  %764 = vmatprep.subr.mxu0 %v614
  %765 = vmatpush1.msra.mxu0 %v613
  %766 = vmatprep.subr.mxu0 %v620
  %767 = vmatpush1.msra.mxu0 %v619
  %768 = vmatprep.subr.mxu0 %v626
  %769 = vmatpush1.msra.mxu0 %v625
  %770 = vmatprep.subr.mxu0 %v632
  %771 = vmatpush1.msra.mxu0 %v631
  %772 = vmatprep.subr.mxu0 %v638
  %773 = vmatpush1.msra.mxu0 %v637
  %774 = vmatprep.subr.mxu0 %v644
  %775 = vmatpush1.msra.mxu0 %v643
  %776 = vmatprep.subr.mxu0 %v650
  %777 = vmatpush1.msra.mxu0 %v649
  %778 = vmatprep.subr.mxu0 %v656
  %779 = vmatpush1.msra.mxu0 %v655
  %780 = vmatprep.subr.mxu0 %v662
  %781 = vmatpush1.msra.mxu0 %v661
  %782 = vmatprep.subr.mxu0 %v668
  %783 = vmatpush1.msra.mxu0 %v667
  %784 = vmatprep.subr.mxu0 %v674
  %785 = vmatpush1.msra.mxu0 %v673
  %786 = vmatprep.subr.mxu0 %v680
  %787 = vmatpush1.msra.mxu0 %v679
  %788 = vmatprep.subr.mxu0 %v686
  %789 = vmatpush1.msra.mxu0 %v685
  %790 = vmatprep.subr.mxu0 %v692
  %791 = vmatpush1.msra.mxu0 %v691
  %792 = vmatprep.subr.mxu0 %v698
  %793 = vmatpush1.msra.mxu0 %v697
  %794 = vmatprep.subr.mxu0 %v704
  %795 = vmatpush1.msra.mxu0 %v703
  %796 = vmatprep.subr.mxu0 0.0
  %797 = vmatpush1.msra.mxu0 0.0
  %798 = vmatprep.subr.mxu0 0.0
  %799 = vmatpush1.msra.mxu0 0.0
  %800 = vmatprep.subr.mxu0 0.0
  %801 = vmatpush1.msra.mxu0 0.0
  %802 = vmatprep.subr.mxu0 0.0
  %803 = vmatpush1.msra.mxu0 0.0
  %804 = vmatprep.subr.mxu0 0.0
  %805 = vmatpush1.msra.mxu0 0.0
  %806 = vmatprep.subr.mxu0 0.0
  %807 = vmatpush1.msra.mxu0 0.0
  %808 = vmatprep.subr.mxu0 0.0
  %809 = vmatpush1.msra.mxu0 0.0
  %810 = vmatprep.subr.mxu0 0.0
  %811 = vmatpush1.msra.mxu0 0.0
  %812 = vmatprep.subr.mxu0 0.0
  %813 = vmatpush1.msra.mxu0 0.0
  %814 = vmatprep.subr.mxu0 0.0
  %815 = vmatpush1.msra.mxu0 0.0
  %816 = vmatprep.subr.mxu0 0.0
  %817 = vmatpush1.msra.mxu0 0.0
  %818 = vmatprep.subr.mxu0 0.0
  %819 = vmatpush1.msra.mxu0 0.0
  %820 = vmatprep.subr.mxu0 0.0
  %821 = vmatpush1.msra.mxu0 0.0
  %822 = vmatprep.subr.mxu0 0.0
  %823 = vmatpush1.msra.mxu0 0.0
  %824 = vmatprep.subr.mxu0 0.0
  %825 = vmatpush1.msra.mxu0 0.0
  %826 = vmatprep.subr.mxu0 0.0
  %827 = vmatpush1.msra.mxu0 0.0
  %828 = vmatprep.mubr.f32.mxu0 0.0
  %829 = vmatmul.mubr.f32.gmra.mrb[0].mxu0 %v762
  %v830 = vpop.f32.mrb[0].mxu0
  %v831 = vadd.f32 %v714, %v830
  %v832 = vpop.f32.mrb[0].mxu0
  %v833 = vadd.f32 %v718, %v832
  %834 = vdwg.mxu0
  %835 = vmatprep.subr.mxu0 %v616
  %836 = vmatpush1.msra.mxu0 %v615
  %837 = vmatprep.subr.mxu0 %v622
  %838 = vmatpush1.msra.mxu0 %v621
  %839 = vmatprep.subr.mxu0 %v628
  %840 = vmatpush1.msra.mxu0 %v627
  %841 = vmatprep.subr.mxu0 %v634
  %842 = vmatpush1.msra.mxu0 %v633
  %843 = vmatprep.subr.mxu0 %v640
  %844 = vmatpush1.msra.mxu0 %v639
  %845 = vmatprep.subr.mxu0 %v646
  %846 = vmatpush1.msra.mxu0 %v645
  %847 = vmatprep.subr.mxu0 %v652
  %848 = vmatpush1.msra.mxu0 %v651
  %849 = vmatprep.subr.mxu0 %v658
  %850 = vmatpush1.msra.mxu0 %v657
  %851 = vmatprep.subr.mxu0 %v664
  %852 = vmatpush1.msra.mxu0 %v663
  %853 = vmatprep.subr.mxu0 %v670
  %854 = vmatpush1.msra.mxu0 %v669
  %855 = vmatprep.subr.mxu0 %v676
  %856 = vmatpush1.msra.mxu0 %v675
  %857 = vmatprep.subr.mxu0 %v682
  %858 = vmatpush1.msra.mxu0 %v681
  %859 = vmatprep.subr.mxu0 %v688
  %860 = vmatpush1.msra.mxu0 %v687
  %861 = vmatprep.subr.mxu0 %v694
  %862 = vmatpush1.msra.mxu0 %v693
  %863 = vmatprep.subr.mxu0 %v700
  %864 = vmatpush1.msra.mxu0 %v699
  %865 = vmatprep.subr.mxu0 %v706
  %866 = vmatpush1.msra.mxu0 %v705
  %867 = vmatprep.subr.mxu0 0.0
  %868 = vmatpush1.msra.mxu0 0.0
  %869 = vmatprep.subr.mxu0 0.0
  %870 = vmatpush1.msra.mxu0 0.0
  %871 = vmatprep.subr.mxu0 0.0
  %872 = vmatpush1.msra.mxu0 0.0
  %873 = vmatprep.subr.mxu0 0.0
  %874 = vmatpush1.msra.mxu0 0.0
  %875 = vmatprep.subr.mxu0 0.0
  %876 = vmatpush1.msra.mxu0 0.0
  %877 = vmatprep.subr.mxu0 0.0
  %878 = vmatpush1.msra.mxu0 0.0
  %879 = vmatprep.subr.mxu0 0.0
  %880 = vmatpush1.msra.mxu0 0.0
  %881 = vmatprep.subr.mxu0 0.0
  %882 = vmatpush1.msra.mxu0 0.0
  %883 = vmatprep.subr.mxu0 0.0
  %884 = vmatpush1.msra.mxu0 0.0
  %885 = vmatprep.subr.mxu0 0.0
  %886 = vmatpush1.msra.mxu0 0.0
  %887 = vmatprep.subr.mxu0 0.0
  %888 = vmatpush1.msra.mxu0 0.0
  %889 = vmatprep.subr.mxu0 0.0
  %890 = vmatpush1.msra.mxu0 0.0
  %891 = vmatprep.subr.mxu0 0.0
  %892 = vmatpush1.msra.mxu0 0.0
  %893 = vmatprep.subr.mxu0 0.0
  %894 = vmatpush1.msra.mxu0 0.0
  %895 = vmatprep.subr.mxu0 0.0
  %896 = vmatpush1.msra.mxu0 0.0
  %897 = vmatprep.subr.mxu0 0.0
  %898 = vmatpush1.msra.mxu0 0.0
  %899 = vmatprep.mubr.f32.mxu0 0.0
  %900 = vmatmul.mubr.f32.gmra.mrb[0].mxu0 %v762
  %v901 = vpop.f32.mrb[0].mxu0
  %v902 = vadd.f32 %v722, %v901
  %v903 = vpop.f32.mrb[0].mxu0
  %v904 = vadd.f32 %v726, %v903
  %905 = vdwg.mxu0
  %906 = vmatprep.subr.mxu0 %v618
  %907 = vmatpush1.msra.mxu0 %v617
  %908 = vmatprep.subr.mxu0 %v624
  %909 = vmatpush1.msra.mxu0 %v623
  %910 = vmatprep.subr.mxu0 %v630
  %911 = vmatpush1.msra.mxu0 %v629
  %912 = vmatprep.subr.mxu0 %v636
  %913 = vmatpush1.msra.mxu0 %v635
  %914 = vmatprep.subr.mxu0 %v642
  %915 = vmatpush1.msra.mxu0 %v641
  %916 = vmatprep.subr.mxu0 %v648
  %917 = vmatpush1.msra.mxu0 %v647
  %918 = vmatprep.subr.mxu0 %v654
  %919 = vmatpush1.msra.mxu0 %v653
  %920 = vmatprep.subr.mxu0 %v660
  %921 = vmatpush1.msra.mxu0 %v659
  %922 = vmatprep.subr.mxu0 %v666
  %923 = vmatpush1.msra.mxu0 %v665
  %924 = vmatprep.subr.mxu0 %v672
  %925 = vmatpush1.msra.mxu0 %v671
  %926 = vmatprep.subr.mxu0 %v678
  %927 = vmatpush1.msra.mxu0 %v677
  %928 = vmatprep.subr.mxu0 %v684
  %929 = vmatpush1.msra.mxu0 %v683
  %930 = vmatprep.subr.mxu0 %v690
  %931 = vmatpush1.msra.mxu0 %v689
  %932 = vmatprep.subr.mxu0 %v696
  %933 = vmatpush1.msra.mxu0 %v695
  %934 = vmatprep.subr.mxu0 %v702
  %935 = vmatpush1.msra.mxu0 %v701
  %936 = vmatprep.subr.mxu0 %v708
  %937 = vmatpush1.msra.mxu0 %v707
  %938 = vmatprep.subr.mxu0 0.0
  %939 = vmatpush1.msra.mxu0 0.0
  %940 = vmatprep.subr.mxu0 0.0
  %941 = vmatpush1.msra.mxu0 0.0
  %942 = vmatprep.subr.mxu0 0.0
  %943 = vmatpush1.msra.mxu0 0.0
  %944 = vmatprep.subr.mxu0 0.0
  %945 = vmatpush1.msra.mxu0 0.0
  %946 = vmatprep.subr.mxu0 0.0
  %947 = vmatpush1.msra.mxu0 0.0
  %948 = vmatprep.subr.mxu0 0.0
  %949 = vmatpush1.msra.mxu0 0.0
  %950 = vmatprep.subr.mxu0 0.0
  %951 = vmatpush1.msra.mxu0 0.0
  %952 = vmatprep.subr.mxu0 0.0
  %953 = vmatpush1.msra.mxu0 0.0
  %954 = vmatprep.subr.mxu0 0.0
  %955 = vmatpush1.msra.mxu0 0.0
  %956 = vmatprep.subr.mxu0 0.0
  %957 = vmatpush1.msra.mxu0 0.0
  %958 = vmatprep.subr.mxu0 0.0
  %959 = vmatpush1.msra.mxu0 0.0
  %960 = vmatprep.subr.mxu0 0.0
  %961 = vmatpush1.msra.mxu0 0.0
  %962 = vmatprep.subr.mxu0 0.0
  %963 = vmatpush1.msra.mxu0 0.0
  %964 = vmatprep.subr.mxu0 0.0
  %965 = vmatpush1.msra.mxu0 0.0
  %966 = vmatprep.subr.mxu0 0.0
  %967 = vmatpush1.msra.mxu0 0.0
  %968 = vmatprep.subr.mxu0 0.0
  %969 = vmatpush1.msra.mxu0 0.0
  %970 = vmatprep.mubr.f32.mxu0 0.0
  %971 = vmatmul.mubr.f32.gmra.mrb[0].mxu0 %v762
  %v972 = vpop.f32.mrb[0].mxu0
  %v973 = vadd.f32 %v730, %v972
  %v974 = vpop.f32.mrb[0].mxu0
  %v975 = vadd.f32 %v734, %v974
  %976 = vdwg.mxu0
  %977 = vst [vmem:[%s9] sm:$0xff] %v831
  %978 = vst [vmem:[%s10] sm:$0xff] %v833
  %979 = vst [vmem:[%s11] sm:$0xff] %v902
  %980 = vst [vmem:[%s11 + $0x8] sm:$0xff] %v904
  %981 = vst [vmem:[%s11 + $0x10] sm:$0xff] %v973
  %982 = vst [vmem:[%s11 + $0x18] sm:$0xff] %v975
  // Predicated region
  $region38: #{_forward_impl.2} parent=0 // pred_check
    _
  $region39: #{_forward_impl.2} parent=0 // pred_check_branch
    %984 = sbr.rel (0) target = $region41
  $region40: #{_forward_impl.2} parent=0 // pred_region
    _
  $region41: #{_forward_impl.2} parent=0 // pred_fallthru
    _
  // Predicated region
  $region42: #{_forward_impl.2} parent=0 // pred_check
    _
  $region43: #{_forward_impl.2} parent=0 // pred_check_branch
    %986 = sbr.rel (0) target = $region45
  $region44: #{_forward_impl.2} parent=0 // pred_region
    _
  $region45: #{_forward_impl.2} parent=0 // pred_fallthru
    _
  // Predicated region
  $region46: #{_forward_impl.2} parent=0 // pred_check
    _
  $region47: #{_forward_impl.2} parent=0 // pred_check_branch
    %988 = sbr.rel (0) target = $region49
  $region48: #{_forward_impl.2} parent=0 // pred_region
    _
  $region49: #{_forward_impl.2} parent=0 // pred_fallthru
    _
  // Predicated region
  $region50: #{_forward_impl.2} parent=0 // pred_check
    _
  $region51: #{_forward_impl.2} parent=0 // pred_check_branch
    %990 = sbr.rel (0) target = $region53
  $region52: #{_forward_impl.2} parent=0 // pred_region
    _
  $region53: #{_forward_impl.2} parent=0 // pred_fallthru
    _
  // Predicated region
  $region54: #{_forward_impl.2} parent=0 // pred_check
    _
  $region55: #{_forward_impl.2} parent=0 // pred_check_branch
    %992 = sbr.rel (0) target = $region57
  $region56: #{_forward_impl.2} parent=0 // pred_region
    _
  $region57: #{_forward_impl.2} parent=0 // pred_fallthru
    _
  // Predicated region
  $region58: #{_forward_impl.2} parent=0 // pred_check
    _
  $region59: #{_forward_impl.2} parent=0 // pred_check_branch
    %994 = sbr.rel (0) target = $region61
  $region60: #{_forward_impl.2} parent=0 // pred_region
    _
  $region61: #{_forward_impl.2} parent=0 // pred_fallthru
    _

// kernel: _forward_impl.3
$region0: #{_forward_impl.3}
  #allocation0 [shape = 'u32[]', space=smem, size = 0x4, offset = 0x4, fixed_abs, tag = 'smem constant byte address 0x4 - core index']
  #allocation1 [shape = 'u32[144,128]{1,0:T(1,128)}', space=vmem, size = 0x12000, scoped, tag = 'internal scratch']
  #allocation2 [shape = 'f32[8,128]{1,0:T(8,128)}', space=vmem, size = 0x1000, scoped, tag = 'scratch operand']
  #allocation3 [shape = 'f32[8,128]{1,0:T(8,128)}', space=vmem, size = 0x1000, scoped, tag = 'scratch operand']
  %s0 = inlined_call_operand.vmem [shape: f32[8,8,32], index: 0, kind: input, shape index: {}]
  %s1 = inlined_call_operand.vmem [shape: f32[8,8,1], index: 1, kind: input, shape index: {}]
  %s2 = inlined_call_operand.vmem [shape: f32[8,128], index: 2, kind: input, shape index: {}]
  %s3 = inlined_call_operand.vmem [shape: f32[8,128], index: 3, kind: input, shape index: {}]
  %s4 = inlined_call_operand.vmem [shape: f32[8,512], index: 4, kind: input, shape index: {}]
  %s5 = inlined_call_operand.vmem [shape: f32[32,512], index: 5, kind: input, shape index: {}]
  %s6 = inlined_call_operand.vmem [shape: f32[128,512], index: 6, kind: input, shape index: {}]
  %s7 = inlined_call_operand.vmem [shape: f32[128,128], index: 7, kind: input, shape index: {}]
  %s8 = inlined_call_operand.vmem [shape: f32[1,128], index: 8, kind: input, shape index: {}]
  %s9 = inlined_call_operand.vmem [shape: f32[8,8,128], index: 9, kind: output, shape index: {}]
  %s10 = sld [smem:[#allocation0]]
  $region50: #{_forward_impl.3} parent=0
    _
  %s12 = ssub.s32 1, %s10
  %s13 = scalar_select 0, %s12, %s10
  // Predicated region
  $region2: #{_forward_impl.3} parent=0 // pred_check
    _
  $region3: #{_forward_impl.3} parent=0 // pred_check_branch
    %15 = sbr.rel (0) target = $region5
  $region4: #{_forward_impl.3} parent=0 // pred_region
    _
  $region5: #{_forward_impl.3} parent=0 // pred_fallthru
    _
  // Predicated region
  $region6: #{_forward_impl.3} parent=0 // pred_check
    _
  $region7: #{_forward_impl.3} parent=0 // pred_check_branch
    %17 = sbr.rel (0) target = $region9
  $region8: #{_forward_impl.3} parent=0 // pred_region
    _
  $region9: #{_forward_impl.3} parent=0 // pred_fallthru
    _
  // Predicated region
  $region10: #{_forward_impl.3} parent=0 // pred_check
    _
  $region11: #{_forward_impl.3} parent=0 // pred_check_branch
    %19 = sbr.rel (0) target = $region13
  $region12: #{_forward_impl.3} parent=0 // pred_region
    _
  $region13: #{_forward_impl.3} parent=0 // pred_fallthru
    _
  // Predicated region
  $region14: #{_forward_impl.3} parent=0 // pred_check
    _
  $region15: #{_forward_impl.3} parent=0 // pred_check_branch
    %21 = sbr.rel (0) target = $region17
  $region16: #{_forward_impl.3} parent=0 // pred_region
    _
  $region17: #{_forward_impl.3} parent=0 // pred_fallthru
    _
  // Predicated region
  $region18: #{_forward_impl.3} parent=0 // pred_check
    _
  $region19: #{_forward_impl.3} parent=0 // pred_check_branch
    %23 = sbr.rel (0) target = $region21
  $region20: #{_forward_impl.3} parent=0 // pred_region
    _
  $region21: #{_forward_impl.3} parent=0 // pred_fallthru
    _
  // Predicated region
  $region22: #{_forward_impl.3} parent=0 // pred_check
    _
  $region23: #{_forward_impl.3} parent=0 // pred_check_branch
    %25 = sbr.rel (0) target = $region25
  $region24: #{_forward_impl.3} parent=0 // pred_region
    _
  $region25: #{_forward_impl.3} parent=0 // pred_fallthru
    _
  // Predicated region
  $region26: #{_forward_impl.3} parent=0 // pred_check
    _
  $region27: #{_forward_impl.3} parent=0 // pred_check_branch
    %27 = sbr.rel (0) target = $region29
  $region28: #{_forward_impl.3} parent=0 // pred_region
    _
  $region29: #{_forward_impl.3} parent=0 // pred_fallthru
    _
  // Predicated region
  $region30: #{_forward_impl.3} parent=0 // pred_check
    _
  $region31: #{_forward_impl.3} parent=0 // pred_check_branch
    %29 = sbr.rel (0) target = $region33
  $region32: #{_forward_impl.3} parent=0 // pred_region
    _
  $region33: #{_forward_impl.3} parent=0 // pred_fallthru
    _
  // Predicated region
  $region34: #{_forward_impl.3} parent=0 // pred_check
    _
  $region35: #{_forward_impl.3} parent=0 // pred_check_branch
    %31 = sbr.rel (0) target = $region37
  $region36: #{_forward_impl.3} parent=0 // pred_region
    _
  $region37: #{_forward_impl.3} parent=0 // pred_fallthru
    _
  %p32 = scmp.eq.s32.totalorder 0, 0
  // Predicated region
  $region38: #{_forward_impl.3} parent=0 // pred_check
    %p33 = pneg %p32
  $region39: #{_forward_impl.3} parent=0 // pred_check_branch
    %35 = sbr.rel (%p33) target = $region41
  $region40: #{_forward_impl.3} parent=0 // pred_region
    %v36 = vld [vmem:[%s2] sm:$0xff]
    %37 = vst [vmem:[#allocation2] sm:$0xff] %v36
    %v38 = vld [vmem:[%s3] sm:$0xff]
    %39 = vst [vmem:[#allocation3] sm:$0xff] %v38
  $region41: #{_forward_impl.3} parent=0 // pred_fallthru
    _
  %v40 = vld [vmem:[%s4] sm:$0xff]
  %v41 = vld [vmem:[%s4 + $0x8] sm:$0xff]
  %v42 = vld [vmem:[%s4 + $0x10] sm:$0xff]
  %v43 = vld [vmem:[%s4 + $0x18] sm:$0xff]
  %v44 = vld [vmem:[%s6] sm:$0xff]
  %v45 = vld [vmem:[%s6 + $0x8] sm:$0xff]
  %v46 = vld [vmem:[%s6 + $0x10] sm:$0xff]
  %v47 = vld [vmem:[%s6 + $0x18] sm:$0xff]
  %v48 = vld [vmem:[%s6 + $0x20] sm:$0xff]
  %v49 = vld [vmem:[%s6 + $0x28] sm:$0xff]
  %v50 = vld [vmem:[%s6 + $0x30] sm:$0xff]
  %v51 = vld [vmem:[%s6 + $0x38] sm:$0xff]
  %v52 = vld [vmem:[%s6 + $0x40] sm:$0xff]
  %v53 = vld [vmem:[%s6 + $0x48] sm:$0xff]
  %v54 = vld [vmem:[%s6 + $0x50] sm:$0xff]
  %v55 = vld [vmem:[%s6 + $0x58] sm:$0xff]
  %v56 = vld [vmem:[%s6 + $0x60] sm:$0xff]
  %v57 = vld [vmem:[%s6 + $0x68] sm:$0xff]
  %v58 = vld [vmem:[%s6 + $0x70] sm:$0xff]
  %v59 = vld [vmem:[%s6 + $0x78] sm:$0xff]
  %v60 = vld [vmem:[%s6 + $0x80] sm:$0xff]
  %v61 = vld [vmem:[%s6 + $0x88] sm:$0xff]
  %v62 = vld [vmem:[%s6 + $0x90] sm:$0xff]
  %v63 = vld [vmem:[%s6 + $0x98] sm:$0xff]
  %v64 = vld [vmem:[%s6 + $0xa0] sm:$0xff]
  %v65 = vld [vmem:[%s6 + $0xa8] sm:$0xff]
  %v66 = vld [vmem:[%s6 + $0xb0] sm:$0xff]
  %v67 = vld [vmem:[%s6 + $0xb8] sm:$0xff]
  %v68 = vld [vmem:[%s6 + $0xc0] sm:$0xff]
  %v69 = vld [vmem:[%s6 + $0xc8] sm:$0xff]
  %v70 = vld [vmem:[%s6 + $0xd0] sm:$0xff]
  %v71 = vld [vmem:[%s6 + $0xd8] sm:$0xff]
  %v72 = vld [vmem:[%s6 + $0xe0] sm:$0xff]
  %v73 = vld [vmem:[%s6 + $0xe8] sm:$0xff]
  %v74 = vld [vmem:[%s6 + $0xf0] sm:$0xff]
  %v75 = vld [vmem:[%s6 + $0xf8] sm:$0xff]
  %v76 = vld [vmem:[%s6 + $0x100] sm:$0xff]
  %v77 = vld [vmem:[%s6 + $0x108] sm:$0xff]
  %v78 = vld [vmem:[%s6 + $0x110] sm:$0xff]
  %v79 = vld [vmem:[%s6 + $0x118] sm:$0xff]
  %v80 = vld [vmem:[%s6 + $0x120] sm:$0xff]
  %v81 = vld [vmem:[%s6 + $0x128] sm:$0xff]
  %v82 = vld [vmem:[%s6 + $0x130] sm:$0xff]
  %v83 = vld [vmem:[%s6 + $0x138] sm:$0xff]
  %v84 = vld [vmem:[%s6 + $0x140] sm:$0xff]
  %v85 = vld [vmem:[%s6 + $0x148] sm:$0xff]
  %v86 = vld [vmem:[%s6 + $0x150] sm:$0xff]
  %v87 = vld [vmem:[%s6 + $0x158] sm:$0xff]
  %v88 = vld [vmem:[%s6 + $0x160] sm:$0xff]
  %v89 = vld [vmem:[%s6 + $0x168] sm:$0xff]
  %v90 = vld [vmem:[%s6 + $0x170] sm:$0xff]
  %v91 = vld [vmem:[%s6 + $0x178] sm:$0xff]
  %v92 = vld [vmem:[%s6 + $0x180] sm:$0xff]
  %v93 = vld [vmem:[%s6 + $0x188] sm:$0xff]
  %v94 = vld [vmem:[%s6 + $0x190] sm:$0xff]
  %v95 = vld [vmem:[%s6 + $0x198] sm:$0xff]
  %v96 = vld [vmem:[%s6 + $0x1a0] sm:$0xff]
  %v97 = vld [vmem:[%s6 + $0x1a8] sm:$0xff]
  %v98 = vld [vmem:[%s6 + $0x1b0] sm:$0xff]
  %v99 = vld [vmem:[%s6 + $0x1b8] sm:$0xff]
  %v100 = vld [vmem:[%s6 + $0x1c0] sm:$0xff]
  %v101 = vld [vmem:[%s6 + $0x1c8] sm:$0xff]
  %v102 = vld [vmem:[%s6 + $0x1d0] sm:$0xff]
  %v103 = vld [vmem:[%s6 + $0x1d8] sm:$0xff]
  %v104 = vld [vmem:[%s6 + $0x1e0] sm:$0xff]
  %v105 = vld [vmem:[%s6 + $0x1e8] sm:$0xff]
  %v106 = vld [vmem:[%s6 + $0x1f0] sm:$0xff]
  %v107 = vld [vmem:[%s6 + $0x1f8] sm:$0xff]
  %v108 = vld [vmem:[%s0] sm:$0xff]
  %v109 = vld [vmem:[%s0 + $0x8] sm:$0xff]
  %v110 = vld [vmem:[%s0 + $0x10] sm:$0xff]
  %v111 = vld [vmem:[%s0 + $0x18] sm:$0xff]
  %v112 = vld [vmem:[%s0 + $0x20] sm:$0xff]
  %v113 = vld [vmem:[%s0 + $0x28] sm:$0xff]
  %v114 = vld [vmem:[%s0 + $0x30] sm:$0xff]
  %v115 = vld [vmem:[%s0 + $0x38] sm:$0xff]
  %v116 = vld [vmem:[%s5] sm:$0xff]
  %v117 = vld [vmem:[%s5 + $0x8] sm:$0xff]
  %v118 = vld [vmem:[%s5 + $0x10] sm:$0xff]
  %v119 = vld [vmem:[%s5 + $0x18] sm:$0xff]
  %v120 = vld [vmem:[%s5 + $0x20] sm:$0xff]
  %v121 = vld [vmem:[%s5 + $0x28] sm:$0xff]
  %v122 = vld [vmem:[%s5 + $0x30] sm:$0xff]
  %v123 = vld [vmem:[%s5 + $0x38] sm:$0xff]
  %v124 = vld [vmem:[%s5 + $0x40] sm:$0xff]
  %v125 = vld [vmem:[%s5 + $0x48] sm:$0xff]
  %v126 = vld [vmem:[%s5 + $0x50] sm:$0xff]
  %v127 = vld [vmem:[%s5 + $0x58] sm:$0xff]
  %v128 = vld [vmem:[%s5 + $0x60] sm:$0xff]
  %v129 = vld [vmem:[%s5 + $0x68] sm:$0xff]
  %v130 = vld [vmem:[%s5 + $0x70] sm:$0xff]
  %v131 = vld [vmem:[%s5 + $0x78] sm:$0xff]
  %vm132 = vcmask 261120
  %v134 = vsel %vm132, %v108, 0
  %v137 = vsel %vm132, %v109, 0
  %v140 = vsel %vm132, %v110, 0
  %v143 = vsel %vm132, %v111, 0
  %v146 = vsel %vm132, %v112, 0
  %v149 = vsel %vm132, %v113, 0
  %v152 = vsel %vm132, %v114, 0
  %v155 = vsel %vm132, %v115, 0
  %157 = vmatprep.subr.mxu0 %v117
  %158 = vmatpush1.msra.mxu0 %v116
  %159 = vmatprep.subr.mxu0 %v121
  %160 = vmatpush1.msra.mxu0 %v120
  %161 = vmatprep.subr.mxu0 %v125
  %162 = vmatpush1.msra.mxu0 %v124
  %163 = vmatprep.subr.mxu0 %v129
  %164 = vmatpush1.msra.mxu0 %v128
  %165 = vmatprep.subr.mxu0 0.0
  %166 = vmatpush1.msra.mxu0 0.0
  %167 = vmatprep.subr.mxu0 0.0
  %168 = vmatpush1.msra.mxu0 0.0
  %169 = vmatprep.subr.mxu0 0.0
  %170 = vmatpush1.msra.mxu0 0.0
  %171 = vmatprep.subr.mxu0 0.0
  %172 = vmatpush1.msra.mxu0 0.0
  %173 = vmatprep.subr.mxu0 0.0
  %174 = vmatpush1.msra.mxu0 0.0
  %175 = vmatprep.subr.mxu0 0.0
  %176 = vmatpush1.msra.mxu0 0.0
  %177 = vmatprep.subr.mxu0 0.0
  %178 = vmatpush1.msra.mxu0 0.0
  %179 = vmatprep.subr.mxu0 0.0
  %180 = vmatpush1.msra.mxu0 0.0
  %181 = vmatprep.subr.mxu0 0.0
  %182 = vmatpush1.msra.mxu0 0.0
  %183 = vmatprep.subr.mxu0 0.0
  %184 = vmatpush1.msra.mxu0 0.0
  %185 = vmatprep.subr.mxu0 0.0
  %186 = vmatpush1.msra.mxu0 0.0
  %187 = vmatprep.subr.mxu0 0.0
  %188 = vmatpush1.msra.mxu0 0.0
  %189 = vmatprep.subr.mxu0 0.0
  %190 = vmatpush1.msra.mxu0 0.0
  %191 = vmatprep.subr.mxu0 0.0
  %192 = vmatpush1.msra.mxu0 0.0
  %193 = vmatprep.subr.mxu0 0.0
  %194 = vmatpush1.msra.mxu0 0.0
  %195 = vmatprep.subr.mxu0 0.0
  %196 = vmatpush1.msra.mxu0 0.0
  %197 = vmatprep.subr.mxu0 0.0
  %198 = vmatpush1.msra.mxu0 0.0
  %199 = vmatprep.subr.mxu0 0.0
  %200 = vmatpush1.msra.mxu0 0.0
  %201 = vmatprep.subr.mxu0 0.0
  %202 = vmatpush1.msra.mxu0 0.0
  %203 = vmatprep.subr.mxu0 0.0
  %204 = vmatpush1.msra.mxu0 0.0
  %205 = vmatprep.subr.mxu0 0.0
  %206 = vmatpush1.msra.mxu0 0.0
  %207 = vmatprep.subr.mxu0 0.0
  %208 = vmatpush1.msra.mxu0 0.0
  %209 = vmatprep.subr.mxu0 0.0
  %210 = vmatpush1.msra.mxu0 0.0
  %211 = vmatprep.subr.mxu0 0.0
  %212 = vmatpush1.msra.mxu0 0.0
  %213 = vmatprep.subr.mxu0 0.0
  %214 = vmatpush1.msra.mxu0 0.0
  %215 = vmatprep.subr.mxu0 0.0
  %216 = vmatpush1.msra.mxu0 0.0
  %217 = vmatprep.subr.mxu0 0.0
  %218 = vmatpush1.msra.mxu0 0.0
  %219 = vmatprep.subr.mxu0 0.0
  %220 = vmatpush1.msra.mxu0 0.0
  %221 = vmatprep.mubr.f32.mxu0 0.0
  %222 = vmatmul.mubr.f32.gmra.mrb[0].mxu0 %v134
  %v223 = vpop.f32.mrb[0].mxu0
  %v224 = vadd.f32 0.0, %v223
  %v225 = vpop.f32.mrb[0].mxu0
  %v226 = vadd.f32 0.0, %v225
  %227 = vmatprep.mubr.f32.mxu0 0.0
  %228 = vmatmul.mubr.f32.gmra.mrb[0].mxu0 %v137
  %v229 = vpop.f32.mrb[0].mxu0
  %v230 = vadd.f32 0.0, %v229
  %v231 = vpop.f32.mrb[0].mxu0
  %v232 = vadd.f32 0.0, %v231
  %233 = vmatprep.mubr.f32.mxu0 0.0
  %234 = vmatmul.mubr.f32.gmra.mrb[0].mxu0 %v140
  %v235 = vpop.f32.mrb[0].mxu0
  %v236 = vadd.f32 0.0, %v235
  %v237 = vpop.f32.mrb[0].mxu0
  %v238 = vadd.f32 0.0, %v237
  %239 = vmatprep.mubr.f32.mxu0 0.0
  %240 = vmatmul.mubr.f32.gmra.mrb[0].mxu0 %v143
  %v241 = vpop.f32.mrb[0].mxu0
  %v242 = vadd.f32 0.0, %v241
  %v243 = vpop.f32.mrb[0].mxu0
  %v244 = vadd.f32 0.0, %v243
  %245 = vmatprep.mubr.f32.mxu0 0.0
  %246 = vmatmul.mubr.f32.gmra.mrb[0].mxu0 %v146
  %v247 = vpop.f32.mrb[0].mxu0
  %v248 = vadd.f32 0.0, %v247
  %v249 = vpop.f32.mrb[0].mxu0
  %v250 = vadd.f32 0.0, %v249
  %251 = vmatprep.mubr.f32.mxu0 0.0
  %252 = vmatmul.mubr.f32.gmra.mrb[0].mxu0 %v149
  %v253 = vpop.f32.mrb[0].mxu0
  %v254 = vadd.f32 0.0, %v253
  %v255 = vpop.f32.mrb[0].mxu0
  %v256 = vadd.f32 0.0, %v255
  %257 = vmatprep.mubr.f32.mxu0 0.0
  %258 = vmatmul.mubr.f32.gmra.mrb[0].mxu0 %v152
  %v259 = vpop.f32.mrb[0].mxu0
  %v260 = vadd.f32 0.0, %v259
  %v261 = vpop.f32.mrb[0].mxu0
  %v262 = vadd.f32 0.0, %v261
  %263 = vmatprep.mubr.f32.mxu0 0.0
  %264 = vmatmul.mubr.f32.gmra.mrb[0].mxu0 %v155
  %v265 = vpop.f32.mrb[0].mxu0
  %v266 = vadd.f32 0.0, %v265
  %v267 = vpop.f32.mrb[0].mxu0
  %v268 = vadd.f32 0.0, %v267
  %269 = vdwg.mxu0
  %270 = vmatprep.subr.mxu0 %v119
  %271 = vmatpush1.msra.mxu0 %v118
  %272 = vmatprep.subr.mxu0 %v123
  %273 = vmatpush1.msra.mxu0 %v122
  %274 = vmatprep.subr.mxu0 %v127
  %275 = vmatpush1.msra.mxu0 %v126
  %276 = vmatprep.subr.mxu0 %v131
  %277 = vmatpush1.msra.mxu0 %v130
  %278 = vmatprep.subr.mxu0 0.0
  %279 = vmatpush1.msra.mxu0 0.0
  %280 = vmatprep.subr.mxu0 0.0
  %281 = vmatpush1.msra.mxu0 0.0
  %282 = vmatprep.subr.mxu0 0.0
  %283 = vmatpush1.msra.mxu0 0.0
  %284 = vmatprep.subr.mxu0 0.0
  %285 = vmatpush1.msra.mxu0 0.0
  %286 = vmatprep.subr.mxu0 0.0
  %287 = vmatpush1.msra.mxu0 0.0
  %288 = vmatprep.subr.mxu0 0.0
  %289 = vmatpush1.msra.mxu0 0.0
  %290 = vmatprep.subr.mxu0 0.0
  %291 = vmatpush1.msra.mxu0 0.0
  %292 = vmatprep.subr.mxu0 0.0
  %293 = vmatpush1.msra.mxu0 0.0
  %294 = vmatprep.subr.mxu0 0.0
  %295 = vmatpush1.msra.mxu0 0.0
  %296 = vmatprep.subr.mxu0 0.0
  %297 = vmatpush1.msra.mxu0 0.0
  %298 = vmatprep.subr.mxu0 0.0
  %299 = vmatpush1.msra.mxu0 0.0
  %300 = vmatprep.subr.mxu0 0.0
  %301 = vmatpush1.msra.mxu0 0.0
  %302 = vmatprep.subr.mxu0 0.0
  %303 = vmatpush1.msra.mxu0 0.0
  %304 = vmatprep.subr.mxu0 0.0
  %305 = vmatpush1.msra.mxu0 0.0
  %306 = vmatprep.subr.mxu0 0.0
  %307 = vmatpush1.msra.mxu0 0.0
  %308 = vmatprep.subr.mxu0 0.0
  %309 = vmatpush1.msra.mxu0 0.0
  %310 = vmatprep.subr.mxu0 0.0
  %311 = vmatpush1.msra.mxu0 0.0
  %312 = vmatprep.subr.mxu0 0.0
  %313 = vmatpush1.msra.mxu0 0.0
  %314 = vmatprep.subr.mxu0 0.0
  %315 = vmatpush1.msra.mxu0 0.0
  %316 = vmatprep.subr.mxu0 0.0
  %317 = vmatpush1.msra.mxu0 0.0
  %318 = vmatprep.subr.mxu0 0.0
  %319 = vmatpush1.msra.mxu0 0.0
  %320 = vmatprep.subr.mxu0 0.0
  %321 = vmatpush1.msra.mxu0 0.0
  %322 = vmatprep.subr.mxu0 0.0
  %323 = vmatpush1.msra.mxu0 0.0
  %324 = vmatprep.subr.mxu0 0.0
  %325 = vmatpush1.msra.mxu0 0.0
  %326 = vmatprep.subr.mxu0 0.0
  %327 = vmatpush1.msra.mxu0 0.0
  %328 = vmatprep.subr.mxu0 0.0
  %329 = vmatpush1.msra.mxu0 0.0
  %330 = vmatprep.subr.mxu0 0.0
  %331 = vmatpush1.msra.mxu0 0.0
  %332 = vmatprep.subr.mxu0 0.0
  %333 = vmatpush1.msra.mxu0 0.0
  %334 = vmatprep.mubr.f32.mxu0 0.0
  %335 = vmatmul.mubr.f32.gmra.mrb[0].mxu0 %v134
  %v336 = vpop.f32.mrb[0].mxu0
  %v337 = vadd.f32 0.0, %v336
  %v338 = vpop.f32.mrb[0].mxu0
  %v339 = vadd.f32 0.0, %v338
  %340 = vmatprep.mubr.f32.mxu0 0.0
  %341 = vmatmul.mubr.f32.gmra.mrb[0].mxu0 %v137
  %v342 = vpop.f32.mrb[0].mxu0
  %v343 = vadd.f32 0.0, %v342
  %v344 = vpop.f32.mrb[0].mxu0
  %v345 = vadd.f32 0.0, %v344
  %346 = vmatprep.mubr.f32.mxu0 0.0
  %347 = vmatmul.mubr.f32.gmra.mrb[0].mxu0 %v140
  %v348 = vpop.f32.mrb[0].mxu0
  %v349 = vadd.f32 0.0, %v348
  %v350 = vpop.f32.mrb[0].mxu0
  %v351 = vadd.f32 0.0, %v350
  %352 = vmatprep.mubr.f32.mxu0 0.0
  %353 = vmatmul.mubr.f32.gmra.mrb[0].mxu0 %v143
  %v354 = vpop.f32.mrb[0].mxu0
  %v355 = vadd.f32 0.0, %v354
  %v356 = vpop.f32.mrb[0].mxu0
  %v357 = vadd.f32 0.0, %v356
  %358 = vmatprep.mubr.f32.mxu0 0.0
  %359 = vmatmul.mubr.f32.gmra.mrb[0].mxu0 %v146
  %v360 = vpop.f32.mrb[0].mxu0
  %v361 = vadd.f32 0.0, %v360
  %v362 = vpop.f32.mrb[0].mxu0
  %v363 = vadd.f32 0.0, %v362
  %364 = vmatprep.mubr.f32.mxu0 0.0
  %365 = vmatmul.mubr.f32.gmra.mrb[0].mxu0 %v149
  %v366 = vpop.f32.mrb[0].mxu0
  %v367 = vadd.f32 0.0, %v366
  %v368 = vpop.f32.mrb[0].mxu0
  %v369 = vadd.f32 0.0, %v368
  %370 = vmatprep.mubr.f32.mxu0 0.0
  %371 = vmatmul.mubr.f32.gmra.mrb[0].mxu0 %v152
  %v372 = vpop.f32.mrb[0].mxu0
  %v373 = vadd.f32 0.0, %v372
  %v374 = vpop.f32.mrb[0].mxu0
  %v375 = vadd.f32 0.0, %v374
  %376 = vmatprep.mubr.f32.mxu0 0.0
  %377 = vmatmul.mubr.f32.gmra.mrb[0].mxu0 %v155
  %v378 = vpop.f32.mrb[0].mxu0
  %v379 = vadd.f32 0.0, %v378
  %v380 = vpop.f32.mrb[0].mxu0
  %v381 = vadd.f32 0.0, %v380
  %382 = vdwg.mxu0
  %v383 = vld [vmem:[#allocation2] sm:$0xff]
  %v384 = vld [vmem:[#allocation3] sm:$0xff]
  %v385 = vld [vmem:[%s1] sm:$0xff]
  %v386 = vadd.f32 %v224, %v40
  %v387 = vadd.f32 %v226, %v41
  %v388 = vadd.f32 %v337, %v42
  %v389 = vadd.f32 %v339, %v43
  %390 = vmatprep.subr.mxu0 %v45
  %391 = vmatpush1.msra.mxu0 %v44
  %392 = vmatprep.subr.mxu0 %v49
  %393 = vmatpush1.msra.mxu0 %v48
  %394 = vmatprep.subr.mxu0 %v53
  %395 = vmatpush1.msra.mxu0 %v52
  %396 = vmatprep.subr.mxu0 %v57
  %397 = vmatpush1.msra.mxu0 %v56
  %398 = vmatprep.subr.mxu0 %v61
  %399 = vmatpush1.msra.mxu0 %v60
  %400 = vmatprep.subr.mxu0 %v65
  %401 = vmatpush1.msra.mxu0 %v64
  %402 = vmatprep.subr.mxu0 %v69
  %403 = vmatpush1.msra.mxu0 %v68
  %404 = vmatprep.subr.mxu0 %v73
  %405 = vmatpush1.msra.mxu0 %v72
  %406 = vmatprep.subr.mxu0 %v77
  %407 = vmatpush1.msra.mxu0 %v76
  %408 = vmatprep.subr.mxu0 %v81
  %409 = vmatpush1.msra.mxu0 %v80
  %410 = vmatprep.subr.mxu0 %v85
  %411 = vmatpush1.msra.mxu0 %v84
  %412 = vmatprep.subr.mxu0 %v89
  %413 = vmatpush1.msra.mxu0 %v88
  %414 = vmatprep.subr.mxu0 %v93
  %415 = vmatpush1.msra.mxu0 %v92
  %416 = vmatprep.subr.mxu0 %v97
  %417 = vmatpush1.msra.mxu0 %v96
  %418 = vmatprep.subr.mxu0 %v101
  %419 = vmatpush1.msra.mxu0 %v100
  %420 = vmatprep.subr.mxu0 %v105
  %421 = vmatpush1.msra.mxu0 %v104
  %422 = vmatprep.subr.mxu0 0.0
  %423 = vmatpush1.msra.mxu0 0.0
  %424 = vmatprep.subr.mxu0 0.0
  %425 = vmatpush1.msra.mxu0 0.0
  %426 = vmatprep.subr.mxu0 0.0
  %427 = vmatpush1.msra.mxu0 0.0
  %428 = vmatprep.subr.mxu0 0.0
  %429 = vmatpush1.msra.mxu0 0.0
  %430 = vmatprep.subr.mxu0 0.0
  %431 = vmatpush1.msra.mxu0 0.0
  %432 = vmatprep.subr.mxu0 0.0
  %433 = vmatpush1.msra.mxu0 0.0
  %434 = vmatprep.subr.mxu0 0.0
  %435 = vmatpush1.msra.mxu0 0.0
  %436 = vmatprep.subr.mxu0 0.0
  %437 = vmatpush1.msra.mxu0 0.0
  %438 = vmatprep.subr.mxu0 0.0
  %439 = vmatpush1.msra.mxu0 0.0
  %440 = vmatprep.subr.mxu0 0.0
  %441 = vmatpush1.msra.mxu0 0.0
  %442 = vmatprep.subr.mxu0 0.0
  %443 = vmatpush1.msra.mxu0 0.0
  %444 = vmatprep.subr.mxu0 0.0
  %445 = vmatpush1.msra.mxu0 0.0
  %446 = vmatprep.subr.mxu0 0.0
  %447 = vmatpush1.msra.mxu0 0.0
  %448 = vmatprep.subr.mxu0 0.0
  %449 = vmatpush1.msra.mxu0 0.0
  %450 = vmatprep.subr.mxu0 0.0
  %451 = vmatpush1.msra.mxu0 0.0
  %452 = vmatprep.subr.mxu0 0.0
  %453 = vmatpush1.msra.mxu0 0.0
  %454 = vmatprep.mubr.f32.mxu0 0.0
  %455 = vmatmul.mubr.f32.gmra.mrb[0].mxu0 %v383
  %v456 = vpop.f32.mrb[0].mxu0
  %v457 = vadd.f32 0.0, %v456
  %v458 = vpop.f32.mrb[0].mxu0
  %v459 = vadd.f32 0.0, %v458
  %460 = vdwg.mxu0
  %461 = vmatprep.subr.mxu0 %v47
  %462 = vmatpush1.msra.mxu0 %v46
  %463 = vmatprep.subr.mxu0 %v51
  %464 = vmatpush1.msra.mxu0 %v50
  %465 = vmatprep.subr.mxu0 %v55
  %466 = vmatpush1.msra.mxu0 %v54
  %467 = vmatprep.subr.mxu0 %v59
  %468 = vmatpush1.msra.mxu0 %v58
  %469 = vmatprep.subr.mxu0 %v63
  %470 = vmatpush1.msra.mxu0 %v62
  %471 = vmatprep.subr.mxu0 %v67
  %472 = vmatpush1.msra.mxu0 %v66
  %473 = vmatprep.subr.mxu0 %v71
  %474 = vmatpush1.msra.mxu0 %v70
  %475 = vmatprep.subr.mxu0 %v75
  %476 = vmatpush1.msra.mxu0 %v74
  %477 = vmatprep.subr.mxu0 %v79
  %478 = vmatpush1.msra.mxu0 %v78
  %479 = vmatprep.subr.mxu0 %v83
  %480 = vmatpush1.msra.mxu0 %v82
  %481 = vmatprep.subr.mxu0 %v87
  %482 = vmatpush1.msra.mxu0 %v86
  %483 = vmatprep.subr.mxu0 %v91
  %484 = vmatpush1.msra.mxu0 %v90
  %485 = vmatprep.subr.mxu0 %v95
  %486 = vmatpush1.msra.mxu0 %v94
  %487 = vmatprep.subr.mxu0 %v99
  %488 = vmatpush1.msra.mxu0 %v98
  %489 = vmatprep.subr.mxu0 %v103
  %490 = vmatpush1.msra.mxu0 %v102
  %491 = vmatprep.subr.mxu0 %v107
  %492 = vmatpush1.msra.mxu0 %v106
  %493 = vmatprep.subr.mxu0 0.0
  %494 = vmatpush1.msra.mxu0 0.0
  %495 = vmatprep.subr.mxu0 0.0
  %496 = vmatpush1.msra.mxu0 0.0
  %497 = vmatprep.subr.mxu0 0.0
  %498 = vmatpush1.msra.mxu0 0.0
  %499 = vmatprep.subr.mxu0 0.0
  %500 = vmatpush1.msra.mxu0 0.0
  %501 = vmatprep.subr.mxu0 0.0
  %502 = vmatpush1.msra.mxu0 0.0
  %503 = vmatprep.subr.mxu0 0.0
  %504 = vmatpush1.msra.mxu0 0.0
  %505 = vmatprep.subr.mxu0 0.0
  %506 = vmatpush1.msra.mxu0 0.0
  %507 = vmatprep.subr.mxu0 0.0
  %508 = vmatpush1.msra.mxu0 0.0
  %509 = vmatprep.subr.mxu0 0.0
  %510 = vmatpush1.msra.mxu0 0.0
  %511 = vmatprep.subr.mxu0 0.0
  %512 = vmatpush1.msra.mxu0 0.0
  %513 = vmatprep.subr.mxu0 0.0
  %514 = vmatpush1.msra.mxu0 0.0
  %515 = vmatprep.subr.mxu0 0.0
  %516 = vmatpush1.msra.mxu0 0.0
  %517 = vmatprep.subr.mxu0 0.0
  %518 = vmatpush1.msra.mxu0 0.0
  %519 = vmatprep.subr.mxu0 0.0
  %520 = vmatpush1.msra.mxu0 0.0
  %521 = vmatprep.subr.mxu0 0.0
  %522 = vmatpush1.msra.mxu0 0.0
  %523 = vmatprep.subr.mxu0 0.0
  %524 = vmatpush1.msra.mxu0 0.0
  %525 = vmatprep.mubr.f32.mxu0 0.0
  %526 = vmatmul.mubr.f32.gmra.mrb[0].mxu0 %v383
  %v527 = vpop.f32.mrb[0].mxu0
  %v528 = vadd.f32 0.0, %v527
  %v529 = vpop.f32.mrb[0].mxu0
  %v530 = vadd.f32 0.0, %v529
  %531 = vdwg.mxu0
  %v532 = vadd.f32 %v386, %v457
  %v533 = vadd.f32 %v387, %v459
  %v534 = vadd.f32 %v388, %v528
  %v535 = vadd.f32 %v389, %v530
  %v536 = vxor.u32 %v532, 2147483648
  %v537 = vmul.f32 %v536, 1.442695
  %v538 = vpow.pop %v537
  %v539 = vadd.f32 %v538, 1.0
  %v540 = vrcp.pop %v539
  %v541 = vmul.f32 1.0, %v540
  %v542 = vxor.u32 %v533, 2147483648
  %v543 = vmul.f32 %v542, 1.442695
  %v544 = vpow.pop %v543
  %v545 = vadd.f32 %v544, 1.0
  %v546 = vrcp.pop %v545
  %v547 = vmul.f32 1.0, %v546
  %v548 = vtanh.pop %v534
  %v549 = vxor.u32 %v535, 2147483648
  %v550 = vmul.f32 %v549, 1.442695
  %v551 = vpow.pop %v550
  %v552 = vadd.f32 %v551, 1.0
  %v553 = vrcp.pop %v552
  %v554 = vmul.f32 1.0, %v553
  %v555 = vmul.f32 %v547, %v384
  %v556 = vmul.f32 %v541, %v548
  %v557 = vadd.f32 %v555, %v556
  %v558 = vtanh.pop %v557
  %v559 = vmul.f32 %v554, %v558
  %561 = vset.pattern.permute.xlu0 0
  %562 = vperm.xlu0 %561, %v385
  %v563 = vpop.permute.xlu0 %562
  %v565 = vmul.f32 %v563, %v557
  %v566 = vsub.f32 1.0, %v385
  %568 = vset.pattern.permute.xlu0 0
  %569 = vperm.xlu0 %568, %v566
  %v570 = vpop.permute.xlu0 %569
  %v572 = vmul.f32 %v570, %v384
  %v573 = vadd.f32 %v565, %v572
  %v574 = vmul.f32 %v563, %v559
  %v575 = vmul.f32 %v570, %v383
  %v576 = vadd.f32 %v574, %v575
  %s577 = scalar_lea.vmem %s1, 8
  %v578 = vld [vmem:[%s577] sm:$0xff]
  %v579 = vadd.f32 %v230, %v40
  %v580 = vadd.f32 %v232, %v41
  %v581 = vadd.f32 %v343, %v42
  %v582 = vadd.f32 %v345, %v43
  %583 = vmatprep.subr.mxu0 %v45
  %584 = vmatpush1.msra.mxu0 %v44
  %585 = vmatprep.subr.mxu0 %v49
  %586 = vmatpush1.msra.mxu0 %v48
  %587 = vmatprep.subr.mxu0 %v53
  %588 = vmatpush1.msra.mxu0 %v52
  %589 = vmatprep.subr.mxu0 %v57
  %590 = vmatpush1.msra.mxu0 %v56
  %591 = vmatprep.subr.mxu0 %v61
  %592 = vmatpush1.msra.mxu0 %v60
  %593 = vmatprep.subr.mxu0 %v65
  %594 = vmatpush1.msra.mxu0 %v64
  %595 = vmatprep.subr.mxu0 %v69
  %596 = vmatpush1.msra.mxu0 %v68
  %597 = vmatprep.subr.mxu0 %v73
  %598 = vmatpush1.msra.mxu0 %v72
  %599 = vmatprep.subr.mxu0 %v77
  %600 = vmatpush1.msra.mxu0 %v76
  %601 = vmatprep.subr.mxu0 %v81
  %602 = vmatpush1.msra.mxu0 %v80
  %603 = vmatprep.subr.mxu0 %v85
  %604 = vmatpush1.msra.mxu0 %v84
  %605 = vmatprep.subr.mxu0 %v89
  %606 = vmatpush1.msra.mxu0 %v88
  %607 = vmatprep.subr.mxu0 %v93
  %608 = vmatpush1.msra.mxu0 %v92
  %609 = vmatprep.subr.mxu0 %v97
  %610 = vmatpush1.msra.mxu0 %v96
  %611 = vmatprep.subr.mxu0 %v101
  %612 = vmatpush1.msra.mxu0 %v100
  %613 = vmatprep.subr.mxu0 %v105
  %614 = vmatpush1.msra.mxu0 %v104
  %615 = vmatprep.subr.mxu0 0.0
  %616 = vmatpush1.msra.mxu0 0.0
  %617 = vmatprep.subr.mxu0 0.0
  %618 = vmatpush1.msra.mxu0 0.0
  %619 = vmatprep.subr.mxu0 0.0
  %620 = vmatpush1.msra.mxu0 0.0
  %621 = vmatprep.subr.mxu0 0.0
  %622 = vmatpush1.msra.mxu0 0.0
  %623 = vmatprep.subr.mxu0 0.0
  %624 = vmatpush1.msra.mxu0 0.0
  %625 = vmatprep.subr.mxu0 0.0
  %626 = vmatpush1.msra.mxu0 0.0
  %627 = vmatprep.subr.mxu0 0.0
  %628 = vmatpush1.msra.mxu0 0.0
  %629 = vmatprep.subr.mxu0 0.0
  %630 = vmatpush1.msra.mxu0 0.0
  %631 = vmatprep.subr.mxu0 0.0
  %632 = vmatpush1.msra.mxu0 0.0
  %633 = vmatprep.subr.mxu0 0.0
  %634 = vmatpush1.msra.mxu0 0.0
  %635 = vmatprep.subr.mxu0 0.0
  %636 = vmatpush1.msra.mxu0 0.0
  %637 = vmatprep.subr.mxu0 0.0
  %638 = vmatpush1.msra.mxu0 0.0
  %639 = vmatprep.subr.mxu0 0.0
  %640 = vmatpush1.msra.mxu0 0.0
  %641 = vmatprep.subr.mxu0 0.0
  %642 = vmatpush1.msra.mxu0 0.0
  %643 = vmatprep.subr.mxu0 0.0
  %644 = vmatpush1.msra.mxu0 0.0
  %645 = vmatprep.subr.mxu0 0.0
  %646 = vmatpush1.msra.mxu0 0.0
  %647 = vmatprep.mubr.f32.mxu0 0.0
  %648 = vmatmul.mubr.f32.gmra.mrb[0].mxu0 %v576
  %v649 = vpop.f32.mrb[0].mxu0
  %v650 = vadd.f32 0.0, %v649
  %v651 = vpop.f32.mrb[0].mxu0
  %v652 = vadd.f32 0.0, %v651
  %653 = vdwg.mxu0
  %654 = vmatprep.subr.mxu0 %v47
  %655 = vmatpush1.msra.mxu0 %v46
  %656 = vmatprep.subr.mxu0 %v51
  %657 = vmatpush1.msra.mxu0 %v50
  %658 = vmatprep.subr.mxu0 %v55
  %659 = vmatpush1.msra.mxu0 %v54
  %660 = vmatprep.subr.mxu0 %v59
  %661 = vmatpush1.msra.mxu0 %v58
  %662 = vmatprep.subr.mxu0 %v63
  %663 = vmatpush1.msra.mxu0 %v62
  %664 = vmatprep.subr.mxu0 %v67
  %665 = vmatpush1.msra.mxu0 %v66
  %666 = vmatprep.subr.mxu0 %v71
  %667 = vmatpush1.msra.mxu0 %v70
  %668 = vmatprep.subr.mxu0 %v75
  %669 = vmatpush1.msra.mxu0 %v74
  %670 = vmatprep.subr.mxu0 %v79
  %671 = vmatpush1.msra.mxu0 %v78
  %672 = vmatprep.subr.mxu0 %v83
  %673 = vmatpush1.msra.mxu0 %v82
  %674 = vmatprep.subr.mxu0 %v87
  %675 = vmatpush1.msra.mxu0 %v86
  %676 = vmatprep.subr.mxu0 %v91
  %677 = vmatpush1.msra.mxu0 %v90
  %678 = vmatprep.subr.mxu0 %v95
  %679 = vmatpush1.msra.mxu0 %v94
  %680 = vmatprep.subr.mxu0 %v99
  %681 = vmatpush1.msra.mxu0 %v98
  %682 = vmatprep.subr.mxu0 %v103
  %683 = vmatpush1.msra.mxu0 %v102
  %684 = vmatprep.subr.mxu0 %v107
  %685 = vmatpush1.msra.mxu0 %v106
  %686 = vmatprep.subr.mxu0 0.0
  %687 = vmatpush1.msra.mxu0 0.0
  %688 = vmatprep.subr.mxu0 0.0
  %689 = vmatpush1.msra.mxu0 0.0
  %690 = vmatprep.subr.mxu0 0.0
  %691 = vmatpush1.msra.mxu0 0.0
  %692 = vmatprep.subr.mxu0 0.0
  %693 = vmatpush1.msra.mxu0 0.0
  %694 = vmatprep.subr.mxu0 0.0
  %695 = vmatpush1.msra.mxu0 0.0
  %696 = vmatprep.subr.mxu0 0.0
  %697 = vmatpush1.msra.mxu0 0.0
  %698 = vmatprep.subr.mxu0 0.0
  %699 = vmatpush1.msra.mxu0 0.0
  %700 = vmatprep.subr.mxu0 0.0
  %701 = vmatpush1.msra.mxu0 0.0
  %702 = vmatprep.subr.mxu0 0.0
  %703 = vmatpush1.msra.mxu0 0.0
  %704 = vmatprep.subr.mxu0 0.0
  %705 = vmatpush1.msra.mxu0 0.0
  %706 = vmatprep.subr.mxu0 0.0
  %707 = vmatpush1.msra.mxu0 0.0
  %708 = vmatprep.subr.mxu0 0.0
  %709 = vmatpush1.msra.mxu0 0.0
  %710 = vmatprep.subr.mxu0 0.0
  %711 = vmatpush1.msra.mxu0 0.0
  %712 = vmatprep.subr.mxu0 0.0
  %713 = vmatpush1.msra.mxu0 0.0
  %714 = vmatprep.subr.mxu0 0.0
  %715 = vmatpush1.msra.mxu0 0.0
  %716 = vmatprep.subr.mxu0 0.0
  %717 = vmatpush1.msra.mxu0 0.0
  %718 = vmatprep.mubr.f32.mxu0 0.0
  %719 = vmatmul.mubr.f32.gmra.mrb[0].mxu0 %v576
  %v720 = vpop.f32.mrb[0].mxu0
  %v721 = vadd.f32 0.0, %v720
  %v722 = vpop.f32.mrb[0].mxu0
  %v723 = vadd.f32 0.0, %v722
  %724 = vdwg.mxu0
  %v725 = vadd.f32 %v579, %v650
  %v726 = vadd.f32 %v580, %v652
  %v727 = vadd.f32 %v581, %v721
  %v728 = vadd.f32 %v582, %v723
  %v729 = vxor.u32 %v725, 2147483648
  %v730 = vmul.f32 %v729, 1.442695
  %v731 = vpow.pop %v730
  %v732 = vadd.f32 %v731, 1.0
  %v733 = vrcp.pop %v732
  %v734 = vmul.f32 1.0, %v733
  %v735 = vxor.u32 %v726, 2147483648
  %v736 = vmul.f32 %v735, 1.442695
  %v737 = vpow.pop %v736
  %v738 = vadd.f32 %v737, 1.0
  %v739 = vrcp.pop %v738
  %v740 = vmul.f32 1.0, %v739
  %v741 = vtanh.pop %v727
  %v742 = vxor.u32 %v728, 2147483648
  %v743 = vmul.f32 %v742, 1.442695
  %v744 = vpow.pop %v743
  %v745 = vadd.f32 %v744, 1.0
  %v746 = vrcp.pop %v745
  %v747 = vmul.f32 1.0, %v746
  %v748 = vmul.f32 %v740, %v573
  %v749 = vmul.f32 %v734, %v741
  %v750 = vadd.f32 %v748, %v749
  %v751 = vtanh.pop %v750
  %v752 = vmul.f32 %v747, %v751
  %754 = vset.pattern.permute.xlu0 0
  %755 = vperm.xlu0 %754, %v578
  %v756 = vpop.permute.xlu0 %755
  %v758 = vmul.f32 %v756, %v750
  %v759 = vsub.f32 1.0, %v578
  %761 = vset.pattern.permute.xlu0 0
  %762 = vperm.xlu0 %761, %v759
  %v763 = vpop.permute.xlu0 %762
  %v765 = vmul.f32 %v763, %v573
  %v766 = vadd.f32 %v758, %v765
  %v767 = vmul.f32 %v756, %v752
  %v768 = vmul.f32 %v763, %v576
  %v769 = vadd.f32 %v767, %v768
  %s770 = scalar_lea.vmem %s1, 16
  %v771 = vld [vmem:[%s770] sm:$0xff]
  %v772 = vadd.f32 %v236, %v40
  %v773 = vadd.f32 %v238, %v41
  %v774 = vadd.f32 %v349, %v42
  %v775 = vadd.f32 %v351, %v43
  %776 = vmatprep.subr.mxu0 %v45
  %777 = vmatpush1.msra.mxu0 %v44
  %778 = vmatprep.subr.mxu0 %v49
  %779 = vmatpush1.msra.mxu0 %v48
  %780 = vmatprep.subr.mxu0 %v53
  %781 = vmatpush1.msra.mxu0 %v52
  %782 = vmatprep.subr.mxu0 %v57
  %783 = vmatpush1.msra.mxu0 %v56
  %784 = vmatprep.subr.mxu0 %v61
  %785 = vmatpush1.msra.mxu0 %v60
  %786 = vmatprep.subr.mxu0 %v65
  %787 = vmatpush1.msra.mxu0 %v64
  %788 = vmatprep.subr.mxu0 %v69
  %789 = vmatpush1.msra.mxu0 %v68
  %790 = vmatprep.subr.mxu0 %v73
  %791 = vmatpush1.msra.mxu0 %v72
  %792 = vmatprep.subr.mxu0 %v77
  %793 = vmatpush1.msra.mxu0 %v76
  %794 = vmatprep.subr.mxu0 %v81
  %795 = vmatpush1.msra.mxu0 %v80
  %796 = vmatprep.subr.mxu0 %v85
  %797 = vmatpush1.msra.mxu0 %v84
  %798 = vmatprep.subr.mxu0 %v89
  %799 = vmatpush1.msra.mxu0 %v88
  %800 = vmatprep.subr.mxu0 %v93
  %801 = vmatpush1.msra.mxu0 %v92
  %802 = vmatprep.subr.mxu0 %v97
  %803 = vmatpush1.msra.mxu0 %v96
  %804 = vmatprep.subr.mxu0 %v101
  %805 = vmatpush1.msra.mxu0 %v100
  %806 = vmatprep.subr.mxu0 %v105
  %807 = vmatpush1.msra.mxu0 %v104
  %808 = vmatprep.subr.mxu0 0.0
  %809 = vmatpush1.msra.mxu0 0.0
  %810 = vmatprep.subr.mxu0 0.0
  %811 = vmatpush1.msra.mxu0 0.0
  %812 = vmatprep.subr.mxu0 0.0
  %813 = vmatpush1.msra.mxu0 0.0
  %814 = vmatprep.subr.mxu0 0.0
  %815 = vmatpush1.msra.mxu0 0.0
  %816 = vmatprep.subr.mxu0 0.0
  %817 = vmatpush1.msra.mxu0 0.0
  %818 = vmatprep.subr.mxu0 0.0
  %819 = vmatpush1.msra.mxu0 0.0
  %820 = vmatprep.subr.mxu0 0.0
  %821 = vmatpush1.msra.mxu0 0.0
  %822 = vmatprep.subr.mxu0 0.0
  %823 = vmatpush1.msra.mxu0 0.0
  %824 = vmatprep.subr.mxu0 0.0
  %825 = vmatpush1.msra.mxu0 0.0
  %826 = vmatprep.subr.mxu0 0.0
  %827 = vmatpush1.msra.mxu0 0.0
  %828 = vmatprep.subr.mxu0 0.0
  %829 = vmatpush1.msra.mxu0 0.0
  %830 = vmatprep.subr.mxu0 0.0
  %831 = vmatpush1.msra.mxu0 0.0
  %832 = vmatprep.subr.mxu0 0.0
  %833 = vmatpush1.msra.mxu0 0.0
  %834 = vmatprep.subr.mxu0 0.0
  %835 = vmatpush1.msra.mxu0 0.0
  %836 = vmatprep.subr.mxu0 0.0
  %837 = vmatpush1.msra.mxu0 0.0
  %838 = vmatprep.subr.mxu0 0.0
  %839 = vmatpush1.msra.mxu0 0.0
  %840 = vmatprep.mubr.f32.mxu0 0.0
  %841 = vmatmul.mubr.f32.gmra.mrb[0].mxu0 %v769
  %v842 = vpop.f32.mrb[0].mxu0
  %v843 = vadd.f32 0.0, %v842
  %v844 = vpop.f32.mrb[0].mxu0
  %v845 = vadd.f32 0.0, %v844
  %846 = vdwg.mxu0
  %847 = vmatprep.subr.mxu0 %v47
  %848 = vmatpush1.msra.mxu0 %v46
  %849 = vmatprep.subr.mxu0 %v51
  %850 = vmatpush1.msra.mxu0 %v50
  %851 = vmatprep.subr.mxu0 %v55
  %852 = vmatpush1.msra.mxu0 %v54
  %853 = vmatprep.subr.mxu0 %v59
  %854 = vmatpush1.msra.mxu0 %v58
  %855 = vmatprep.subr.mxu0 %v63
  %856 = vmatpush1.msra.mxu0 %v62
  %857 = vmatprep.subr.mxu0 %v67
  %858 = vmatpush1.msra.mxu0 %v66
  %859 = vmatprep.subr.mxu0 %v71
  %860 = vmatpush1.msra.mxu0 %v70
  %861 = vmatprep.subr.mxu0 %v75
  %862 = vmatpush1.msra.mxu0 %v74
  %863 = vmatprep.subr.mxu0 %v79
  %864 = vmatpush1.msra.mxu0 %v78
  %865 = vmatprep.subr.mxu0 %v83
  %866 = vmatpush1.msra.mxu0 %v82
  %867 = vmatprep.subr.mxu0 %v87
  %868 = vmatpush1.msra.mxu0 %v86
  %869 = vmatprep.subr.mxu0 %v91
  %870 = vmatpush1.msra.mxu0 %v90
  %871 = vmatprep.subr.mxu0 %v95
  %872 = vmatpush1.msra.mxu0 %v94
  %873 = vmatprep.subr.mxu0 %v99
  %874 = vmatpush1.msra.mxu0 %v98
  %875 = vmatprep.subr.mxu0 %v103
  %876 = vmatpush1.msra.mxu0 %v102
  %877 = vmatprep.subr.mxu0 %v107
  %878 = vmatpush1.msra.mxu0 %v106
  %879 = vmatprep.subr.mxu0 0.0
  %880 = vmatpush1.msra.mxu0 0.0
  %881 = vmatprep.subr.mxu0 0.0
  %882 = vmatpush1.msra.mxu0 0.0
  %883 = vmatprep.subr.mxu0 0.0
  %884 = vmatpush1.msra.mxu0 0.0
  %885 = vmatprep.subr.mxu0 0.0
  %886 = vmatpush1.msra.mxu0 0.0
  %887 = vmatprep.subr.mxu0 0.0
  %888 = vmatpush1.msra.mxu0 0.0
  %889 = vmatprep.subr.mxu0 0.0
  %890 = vmatpush1.msra.mxu0 0.0
  %891 = vmatprep.subr.mxu0 0.0
  %892 = vmatpush1.msra.mxu0 0.0
  %893 = vmatprep.subr.mxu0 0.0
  %894 = vmatpush1.msra.mxu0 0.0
  %895 = vmatprep.subr.mxu0 0.0
  %896 = vmatpush1.msra.mxu0 0.0
  %897 = vmatprep.subr.mxu0 0.0
  %898 = vmatpush1.msra.mxu0 0.0
  %899 = vmatprep.subr.mxu0 0.0
  %900 = vmatpush1.msra.mxu0 0.0
  %901 = vmatprep.subr.mxu0 0.0
  %902 = vmatpush1.msra.mxu0 0.0
  %903 = vmatprep.subr.mxu0 0.0
  %904 = vmatpush1.msra.mxu0 0.0
  %905 = vmatprep.subr.mxu0 0.0
  %906 = vmatpush1.msra.mxu0 0.0
  %907 = vmatprep.subr.mxu0 0.0
  %908 = vmatpush1.msra.mxu0 0.0
  %909 = vmatprep.subr.mxu0 0.0
  %910 = vmatpush1.msra.mxu0 0.0
  %911 = vmatprep.mubr.f32.mxu0 0.0
  %912 = vmatmul.mubr.f32.gmra.mrb[0].mxu0 %v769
  %v913 = vpop.f32.mrb[0].mxu0
  %v914 = vadd.f32 0.0, %v913
  %v915 = vpop.f32.mrb[0].mxu0
  %v916 = vadd.f32 0.0, %v915
  %917 = vdwg.mxu0
  %v918 = vadd.f32 %v772, %v843
  %v919 = vadd.f32 %v773, %v845
  %v920 = vadd.f32 %v774, %v914
  %v921 = vadd.f32 %v775, %v916
  %v922 = vxor.u32 %v918, 2147483648
  %v923 = vmul.f32 %v922, 1.442695
  %v924 = vpow.pop %v923
  %v925 = vadd.f32 %v924, 1.0
  %v926 = vrcp.pop %v925
  %v927 = vmul.f32 1.0, %v926
  %v928 = vxor.u32 %v919, 2147483648
  %v929 = vmul.f32 %v928, 1.442695
  %v930 = vpow.pop %v929
  %v931 = vadd.f32 %v930, 1.0
  %v932 = vrcp.pop %v931
  %v933 = vmul.f32 1.0, %v932
  %v934 = vtanh.pop %v920
  %v935 = vxor.u32 %v921, 2147483648
  %v936 = vmul.f32 %v935, 1.442695
  %v937 = vpow.pop %v936
  %v938 = vadd.f32 %v937, 1.0
  %v939 = vrcp.pop %v938
  %v940 = vmul.f32 1.0, %v939
  %v941 = vmul.f32 %v933, %v766
  %v942 = vmul.f32 %v927, %v934
  %v943 = vadd.f32 %v941, %v942
  %v944 = vtanh.pop %v943
  %v945 = vmul.f32 %v940, %v944
  %947 = vset.pattern.permute.xlu0 0
  %948 = vperm.xlu0 %947, %v771
  %v949 = vpop.permute.xlu0 %948
  %v951 = vmul.f32 %v949, %v943
  %v952 = vsub.f32 1.0, %v771
  %954 = vset.pattern.permute.xlu0 0
  %955 = vperm.xlu0 %954, %v952
  %v956 = vpop.permute.xlu0 %955
  %v958 = vmul.f32 %v956, %v766
  %v959 = vadd.f32 %v951, %v958
  %v960 = vmul.f32 %v949, %v945
  %v961 = vmul.f32 %v956, %v769
  %v962 = vadd.f32 %v960, %v961
  %s963 = scalar_lea.vmem %s1, 24
  %v964 = vld [vmem:[%s963] sm:$0xff]
  %v965 = vadd.f32 %v242, %v40
  %v966 = vadd.f32 %v244, %v41
  %v967 = vadd.f32 %v355, %v42
  %v968 = vadd.f32 %v357, %v43
  %969 = vmatprep.subr.mxu0 %v45
  %970 = vmatpush1.msra.mxu0 %v44
  %971 = vmatprep.subr.mxu0 %v49
  %972 = vmatpush1.msra.mxu0 %v48
  %973 = vmatprep.subr.mxu0 %v53
  %974 = vmatpush1.msra.mxu0 %v52
  %975 = vmatprep.subr.mxu0 %v57
  %976 = vmatpush1.msra.mxu0 %v56
  %977 = vmatprep.subr.mxu0 %v61
  %978 = vmatpush1.msra.mxu0 %v60
  %979 = vmatprep.subr.mxu0 %v65
  %980 = vmatpush1.msra.mxu0 %v64
  %981 = vmatprep.subr.mxu0 %v69
  %982 = vmatpush1.msra.mxu0 %v68
  %983 = vmatprep.subr.mxu0 %v73
  %984 = vmatpush1.msra.mxu0 %v72
  %985 = vmatprep.subr.mxu0 %v77
  %986 = vmatpush1.msra.mxu0 %v76
  %987 = vmatprep.subr.mxu0 %v81
  %988 = vmatpush1.msra.mxu0 %v80
  %989 = vmatprep.subr.mxu0 %v85
  %990 = vmatpush1.msra.mxu0 %v84
  %991 = vmatprep.subr.mxu0 %v89
  %992 = vmatpush1.msra.mxu0 %v88
  %993 = vmatprep.subr.mxu0 %v93
  %994 = vmatpush1.msra.mxu0 %v92
  %995 = vmatprep.subr.mxu0 %v97
  %996 = vmatpush1.msra.mxu0 %v96
  %997 = vmatprep.subr.mxu0 %v101
  %998 = vmatpush1.msra.mxu0 %v100
  %999 = vmatprep.subr.mxu0 %v105
  %1000 = vmatpush1.msra.mxu0 %v104
  %1001 = vmatprep.subr.mxu0 0.0
  %1002 = vmatpush1.msra.mxu0 0.0
  %1003 = vmatprep.subr.mxu0 0.0
  %1004 = vmatpush1.msra.mxu0 0.0
  %1005 = vmatprep.subr.mxu0 0.0
  %1006 = vmatpush1.msra.mxu0 0.0
  %1007 = vmatprep.subr.mxu0 0.0
  %1008 = vmatpush1.msra.mxu0 0.0
  %1009 = vmatprep.subr.mxu0 0.0
  %1010 = vmatpush1.msra.mxu0 0.0
  %1011 = vmatprep.subr.mxu0 0.0
  %1012 = vmatpush1.msra.mxu0 0.0
  %1013 = vmatprep.subr.mxu0 0.0
  %1014 = vmatpush1.msra.mxu0 0.0
  %1015 = vmatprep.subr.mxu0 0.0
  %1016 = vmatpush1.msra.mxu0 0.0
  %1017 = vmatprep.subr.mxu0 0.0
  %1018 = vmatpush1.msra.mxu0 0.0
  %1019 = vmatprep.subr.mxu0 0.0
  %1020 = vmatpush1.msra.mxu0 0.0
  %1021 = vmatprep.subr.mxu0 0.0
  %1022 = vmatpush1.msra.mxu0 0.0
  %1023 = vmatprep.subr.mxu0 0.0
  %1024 = vmatpush1.msra.mxu0 0.0
  %1025 = vmatprep.subr.mxu0 0.0
  %1026 = vmatpush1.msra.mxu0 0.0
  %1027 = vmatprep.subr.mxu0 0.0
  %1028 = vmatpush1.msra.mxu0 0.0
  %1029 = vmatprep.subr.mxu0 0.0
  %1030 = vmatpush1.msra.mxu0 0.0
  %1031 = vmatprep.subr.mxu0 0.0
  %1032 = vmatpush1.msra.mxu0 0.0
  %1033 = vmatprep.mubr.f32.mxu0 0.0
  %1034 = vmatmul.mubr.f32.gmra.mrb[0].mxu0 %v962
  %v1035 = vpop.f32.mrb[0].mxu0
  %v1036 = vadd.f32 0.0, %v1035
  %v1037 = vpop.f32.mrb[0].mxu0
  %v1038 = vadd.f32 0.0, %v1037
  %1039 = vdwg.mxu0
  %1040 = vmatprep.subr.mxu0 %v47
  %1041 = vmatpush1.msra.mxu0 %v46
  %1042 = vmatprep.subr.mxu0 %v51
  %1043 = vmatpush1.msra.mxu0 %v50
  %1044 = vmatprep.subr.mxu0 %v55
  %1045 = vmatpush1.msra.mxu0 %v54
  %1046 = vmatprep.subr.mxu0 %v59
  %1047 = vmatpush1.msra.mxu0 %v58
  %1048 = vmatprep.subr.mxu0 %v63
  %1049 = vmatpush1.msra.mxu0 %v62
  %1050 = vmatprep.subr.mxu0 %v67
  %1051 = vmatpush1.msra.mxu0 %v66
  %1052 = vmatprep.subr.mxu0 %v71
  %1053 = vmatpush1.msra.mxu0 %v70
  %1054 = vmatprep.subr.mxu0 %v75
  %1055 = vmatpush1.msra.mxu0 %v74
  %1056 = vmatprep.subr.mxu0 %v79
  %1057 = vmatpush1.msra.mxu0 %v78
  %1058 = vmatprep.subr.mxu0 %v83
  %1059 = vmatpush1.msra.mxu0 %v82
  %1060 = vmatprep.subr.mxu0 %v87
  %1061 = vmatpush1.msra.mxu0 %v86
  %1062 = vmatprep.subr.mxu0 %v91
  %1063 = vmatpush1.msra.mxu0 %v90
  %1064 = vmatprep.subr.mxu0 %v95
  %1065 = vmatpush1.msra.mxu0 %v94
  %1066 = vmatprep.subr.mxu0 %v99
  %1067 = vmatpush1.msra.mxu0 %v98
  %1068 = vmatprep.subr.mxu0 %v103
  %1069 = vmatpush1.msra.mxu0 %v102
  %1070 = vmatprep.subr.mxu0 %v107
  %1071 = vmatpush1.msra.mxu0 %v106
  %1072 = vmatprep.subr.mxu0 0.0
  %1073 = vmatpush1.msra.mxu0 0.0
  %1074 = vmatprep.subr.mxu0 0.0
  %1075 = vmatpush1.msra.mxu0 0.0
  %1076 = vmatprep.subr.mxu0 0.0
  %1077 = vmatpush1.msra.mxu0 0.0
  %1078 = vmatprep.subr.mxu0 0.0
  %1079 = vmatpush1.msra.mxu0 0.0
  %1080 = vmatprep.subr.mxu0 0.0
  %1081 = vmatpush1.msra.mxu0 0.0
  %1082 = vmatprep.subr.mxu0 0.0
  %1083 = vmatpush1.msra.mxu0 0.0
  %1084 = vmatprep.subr.mxu0 0.0
  %1085 = vmatpush1.msra.mxu0 0.0
  %1086 = vmatprep.subr.mxu0 0.0
  %1087 = vmatpush1.msra.mxu0 0.0
  %1088 = vmatprep.subr.mxu0 0.0
  %1089 = vmatpush1.msra.mxu0 0.0
  %1090 = vmatprep.subr.mxu0 0.0
  %1091 = vmatpush1.msra.mxu0 0.0
  %1092 = vmatprep.subr.mxu0 0.0
  %1093 = vmatpush1.msra.mxu0 0.0
  %1094 = vmatprep.subr.mxu0 0.0
  %1095 = vmatpush1.msra.mxu0 0.0
  %1096 = vmatprep.subr.mxu0 0.0
  %1097 = vmatpush1.msra.mxu0 0.0
  %1098 = vmatprep.subr.mxu0 0.0
  %1099 = vmatpush1.msra.mxu0 0.0
  %1100 = vmatprep.subr.mxu0 0.0
  %1101 = vmatpush1.msra.mxu0 0.0
  %1102 = vmatprep.subr.mxu0 0.0
  %1103 = vmatpush1.msra.mxu0 0.0
  %1104 = vmatprep.mubr.f32.mxu0 0.0
  %1105 = vmatmul.mubr.f32.gmra.mrb[0].mxu0 %v962
  %v1106 = vpop.f32.mrb[0].mxu0
  %v1107 = vadd.f32 0.0, %v1106
  %v1108 = vpop.f32.mrb[0].mxu0
  %v1109 = vadd.f32 0.0, %v1108
  %1110 = vdwg.mxu0
  %v1111 = vadd.f32 %v965, %v1036
  %v1112 = vadd.f32 %v966, %v1038
  %v1113 = vadd.f32 %v967, %v1107
  %v1114 = vadd.f32 %v968, %v1109
  %v1115 = vxor.u32 %v1111, 2147483648
  %v1116 = vmul.f32 %v1115, 1.442695
  %v1117 = vpow.pop %v1116
  %v1118 = vadd.f32 %v1117, 1.0
  %v1119 = vrcp.pop %v1118
  %v1120 = vmul.f32 1.0, %v1119
  %v1121 = vxor.u32 %v1112, 2147483648
  %v1122 = vmul.f32 %v1121, 1.442695
  %v1123 = vpow.pop %v1122
  %v1124 = vadd.f32 %v1123, 1.0
  %v1125 = vrcp.pop %v1124
  %v1126 = vmul.f32 1.0, %v1125
  %v1127 = vtanh.pop %v1113
  %v1128 = vxor.u32 %v1114, 2147483648
  %v1129 = vmul.f32 %v1128, 1.442695
  %v1130 = vpow.pop %v1129
  %v1131 = vadd.f32 %v1130, 1.0
  %v1132 = vrcp.pop %v1131
  %v1133 = vmul.f32 1.0, %v1132
  %v1134 = vmul.f32 %v1126, %v959
  %v1135 = vmul.f32 %v1120, %v1127
  %v1136 = vadd.f32 %v1134, %v1135
  %v1137 = vtanh.pop %v1136
  %v1138 = vmul.f32 %v1133, %v1137
  %1140 = vset.pattern.permute.xlu0 0
  %1141 = vperm.xlu0 %1140, %v964
  %v1142 = vpop.permute.xlu0 %1141
  %v1144 = vmul.f32 %v1142, %v1136
  %v1145 = vsub.f32 1.0, %v964
  %1147 = vset.pattern.permute.xlu0 0
  %1148 = vperm.xlu0 %1147, %v1145
  %v1149 = vpop.permute.xlu0 %1148
  %v1151 = vmul.f32 %v1149, %v959
  %v1152 = vadd.f32 %v1144, %v1151
  %v1153 = vmul.f32 %v1142, %v1138
  %v1154 = vmul.f32 %v1149, %v962
  %v1155 = vadd.f32 %v1153, %v1154
  %s1156 = scalar_lea.vmem %s1, 32
  %v1157 = vld [vmem:[%s1156] sm:$0xff]
  %v1158 = vadd.f32 %v248, %v40
  %v1159 = vadd.f32 %v250, %v41
  %v1160 = vadd.f32 %v361, %v42
  %v1161 = vadd.f32 %v363, %v43
  %1162 = vmatprep.subr.mxu0 %v45
  %1163 = vmatpush1.msra.mxu0 %v44
  %1164 = vmatprep.subr.mxu0 %v49
  %1165 = vmatpush1.msra.mxu0 %v48
  %1166 = vmatprep.subr.mxu0 %v53
  %1167 = vmatpush1.msra.mxu0 %v52
  %1168 = vmatprep.subr.mxu0 %v57
  %1169 = vmatpush1.msra.mxu0 %v56
  %1170 = vmatprep.subr.mxu0 %v61
  %1171 = vmatpush1.msra.mxu0 %v60
  %1172 = vmatprep.subr.mxu0 %v65
  %1173 = vmatpush1.msra.mxu0 %v64
  %1174 = vmatprep.subr.mxu0 %v69
  %1175 = vmatpush1.msra.mxu0 %v68
  %1176 = vmatprep.subr.mxu0 %v73
  %1177 = vmatpush1.msra.mxu0 %v72
  %1178 = vmatprep.subr.mxu0 %v77
  %1179 = vmatpush1.msra.mxu0 %v76
  %1180 = vmatprep.subr.mxu0 %v81
  %1181 = vmatpush1.msra.mxu0 %v80
  %1182 = vmatprep.subr.mxu0 %v85
  %1183 = vmatpush1.msra.mxu0 %v84
  %1184 = vmatprep.subr.mxu0 %v89
  %1185 = vmatpush1.msra.mxu0 %v88
  %1186 = vmatprep.subr.mxu0 %v93
  %1187 = vmatpush1.msra.mxu0 %v92
  %1188 = vmatprep.subr.mxu0 %v97
  %1189 = vmatpush1.msra.mxu0 %v96
  %1190 = vmatprep.subr.mxu0 %v101
  %1191 = vmatpush1.msra.mxu0 %v100
  %1192 = vmatprep.subr.mxu0 %v105
  %1193 = vmatpush1.msra.mxu0 %v104
  %1194 = vmatprep.subr.mxu0 0.0
  %1195 = vmatpush1.msra.mxu0 0.0
  %1196 = vmatprep.subr.mxu0 0.0
  %1197 = vmatpush1.msra.mxu0 0.0
  %1198 = vmatprep.subr.mxu0 0.0
  %1199 = vmatpush1.msra.mxu0 0.0
  %1200 = vmatprep.subr.mxu0 0.0
  %1201 = vmatpush1.msra.mxu0 0.0
  %1202 = vmatprep.subr.mxu0 0.0
  %1203 = vmatpush1.msra.mxu0 0.0
  %1204 = vmatprep.subr.mxu0 0.0
  %1205 = vmatpush1.msra.mxu0 0.0
  %1206 = vmatprep.subr.mxu0 0.0
  %1207 = vmatpush1.msra.mxu0 0.0
  %1208 = vmatprep.subr.mxu0 0.0
  %1209 = vmatpush1.msra.mxu0 0.0
  %1210 = vmatprep.subr.mxu0 0.0
  %1211 = vmatpush1.msra.mxu0 0.0
  %1212 = vmatprep.subr.mxu0 0.0
  %1213 = vmatpush1.msra.mxu0 0.0
  %1214 = vmatprep.subr.mxu0 0.0
  %1215 = vmatpush1.msra.mxu0 0.0
  %1216 = vmatprep.subr.mxu0 0.0
  %1217 = vmatpush1.msra.mxu0 0.0
  %1218 = vmatprep.subr.mxu0 0.0
  %1219 = vmatpush1.msra.mxu0 0.0
  %1220 = vmatprep.subr.mxu0 0.0
  %1221 = vmatpush1.msra.mxu0 0.0
  %1222 = vmatprep.subr.mxu0 0.0
  %1223 = vmatpush1.msra.mxu0 0.0
  %1224 = vmatprep.subr.mxu0 0.0
  %1225 = vmatpush1.msra.mxu0 0.0
  %1226 = vmatprep.mubr.f32.mxu0 0.0
  %1227 = vmatmul.mubr.f32.gmra.mrb[0].mxu0 %v1155
  %v1228 = vpop.f32.mrb[0].mxu0
  %v1229 = vadd.f32 0.0, %v1228
  %v1230 = vpop.f32.mrb[0].mxu0
  %v1231 = vadd.f32 0.0, %v1230
  %1232 = vdwg.mxu0
  %1233 = vmatprep.subr.mxu0 %v47
  %1234 = vmatpush1.msra.mxu0 %v46
  %1235 = vmatprep.subr.mxu0 %v51
  %1236 = vmatpush1.msra.mxu0 %v50
  %1237 = vmatprep.subr.mxu0 %v55
  %1238 = vmatpush1.msra.mxu0 %v54
  %1239 = vmatprep.subr.mxu0 %v59
  %1240 = vmatpush1.msra.mxu0 %v58
  %1241 = vmatprep.subr.mxu0 %v63
  %1242 = vmatpush1.msra.mxu0 %v62
  %1243 = vmatprep.subr.mxu0 %v67
  %1244 = vmatpush1.msra.mxu0 %v66
  %1245 = vmatprep.subr.mxu0 %v71
  %1246 = vmatpush1.msra.mxu0 %v70
  %1247 = vmatprep.subr.mxu0 %v75
  %1248 = vmatpush1.msra.mxu0 %v74
  %1249 = vmatprep.subr.mxu0 %v79
  %1250 = vmatpush1.msra.mxu0 %v78
  %1251 = vmatprep.subr.mxu0 %v83
  %1252 = vmatpush1.msra.mxu0 %v82
  %1253 = vmatprep.subr.mxu0 %v87
  %1254 = vmatpush1.msra.mxu0 %v86
  %1255 = vmatprep.subr.mxu0 %v91
  %1256 = vmatpush1.msra.mxu0 %v90
  %1257 = vmatprep.subr.mxu0 %v95
  %1258 = vmatpush1.msra.mxu0 %v94
  %1259 = vmatprep.subr.mxu0 %v99
  %1260 = vmatpush1.msra.mxu0 %v98
  %1261 = vmatprep.subr.mxu0 %v103
  %1262 = vmatpush1.msra.mxu0 %v102
  %1263 = vmatprep.subr.mxu0 %v107
  %1264 = vmatpush1.msra.mxu0 %v106
  %1265 = vmatprep.subr.mxu0 0.0
  %1266 = vmatpush1.msra.mxu0 0.0
  %1267 = vmatprep.subr.mxu0 0.0
  %1268 = vmatpush1.msra.mxu0 0.0
  %1269 = vmatprep.subr.mxu0 0.0
  %1270 = vmatpush1.msra.mxu0 0.0
  %1271 = vmatprep.subr.mxu0 0.0
  %1272 = vmatpush1.msra.mxu0 0.0
  %1273 = vmatprep.subr.mxu0 0.0
  %1274 = vmatpush1.msra.mxu0 0.0
  %1275 = vmatprep.subr.mxu0 0.0
  %1276 = vmatpush1.msra.mxu0 0.0
  %1277 = vmatprep.subr.mxu0 0.0
  %1278 = vmatpush1.msra.mxu0 0.0
  %1279 = vmatprep.subr.mxu0 0.0
  %1280 = vmatpush1.msra.mxu0 0.0
  %1281 = vmatprep.subr.mxu0 0.0
  %1282 = vmatpush1.msra.mxu0 0.0
  %1283 = vmatprep.subr.mxu0 0.0
  %1284 = vmatpush1.msra.mxu0 0.0
  %1285 = vmatprep.subr.mxu0 0.0
  %1286 = vmatpush1.msra.mxu0 0.0
  %1287 = vmatprep.subr.mxu0 0.0
  %1288 = vmatpush1.msra.mxu0 0.0
  %1289 = vmatprep.subr.mxu0 0.0
  %1290 = vmatpush1.msra.mxu0 0.0
  %1291 = vmatprep.subr.mxu0 0.0
  %1292 = vmatpush1.msra.mxu0 0.0
  %1293 = vmatprep.subr.mxu0 0.0
  %1294 = vmatpush1.msra.mxu0 0.0
  %1295 = vmatprep.subr.mxu0 0.0
  %1296 = vmatpush1.msra.mxu0 0.0
  %1297 = vmatprep.mubr.f32.mxu0 0.0
  %1298 = vmatmul.mubr.f32.gmra.mrb[0].mxu0 %v1155
  %v1299 = vpop.f32.mrb[0].mxu0
  %v1300 = vadd.f32 0.0, %v1299
  %v1301 = vpop.f32.mrb[0].mxu0
  %v1302 = vadd.f32 0.0, %v1301
  %1303 = vdwg.mxu0
  %v1304 = vadd.f32 %v1158, %v1229
  %v1305 = vadd.f32 %v1159, %v1231
  %v1306 = vadd.f32 %v1160, %v1300
  %v1307 = vadd.f32 %v1161, %v1302
  %v1308 = vxor.u32 %v1304, 2147483648
  %v1309 = vmul.f32 %v1308, 1.442695
  %v1310 = vpow.pop %v1309
  %v1311 = vadd.f32 %v1310, 1.0
  %v1312 = vrcp.pop %v1311
  %v1313 = vmul.f32 1.0, %v1312
  %v1314 = vxor.u32 %v1305, 2147483648
  %v1315 = vmul.f32 %v1314, 1.442695
  %v1316 = vpow.pop %v1315
  %v1317 = vadd.f32 %v1316, 1.0
  %v1318 = vrcp.pop %v1317
  %v1319 = vmul.f32 1.0, %v1318
  %v1320 = vtanh.pop %v1306
  %v1321 = vxor.u32 %v1307, 2147483648
  %v1322 = vmul.f32 %v1321, 1.442695
  %v1323 = vpow.pop %v1322
  %v1324 = vadd.f32 %v1323, 1.0
  %v1325 = vrcp.pop %v1324
  %v1326 = vmul.f32 1.0, %v1325
  %v1327 = vmul.f32 %v1319, %v1152
  %v1328 = vmul.f32 %v1313, %v1320
  %v1329 = vadd.f32 %v1327, %v1328
  %v1330 = vtanh.pop %v1329
  %v1331 = vmul.f32 %v1326, %v1330
  %1333 = vset.pattern.permute.xlu0 0
  %1334 = vperm.xlu0 %1333, %v1157
  %v1335 = vpop.permute.xlu0 %1334
  %v1337 = vmul.f32 %v1335, %v1329
  %v1338 = vsub.f32 1.0, %v1157
  %1340 = vset.pattern.permute.xlu0 0
  %1341 = vperm.xlu0 %1340, %v1338
  %v1342 = vpop.permute.xlu0 %1341
  %v1344 = vmul.f32 %v1342, %v1152
  %v1345 = vadd.f32 %v1337, %v1344
  %v1346 = vmul.f32 %v1335, %v1331
  %v1347 = vmul.f32 %v1342, %v1155
  %v1348 = vadd.f32 %v1346, %v1347
  %s1349 = scalar_lea.vmem %s1, 40
  %v1350 = vld [vmem:[%s1349] sm:$0xff]
  %v1351 = vadd.f32 %v254, %v40
  %v1352 = vadd.f32 %v256, %v41
  %v1353 = vadd.f32 %v367, %v42
  %v1354 = vadd.f32 %v369, %v43
  %1355 = vmatprep.subr.mxu0 %v45
  %1356 = vmatpush1.msra.mxu0 %v44
  %1357 = vmatprep.subr.mxu0 %v49
  %1358 = vmatpush1.msra.mxu0 %v48
  %1359 = vmatprep.subr.mxu0 %v53
  %1360 = vmatpush1.msra.mxu0 %v52
  %1361 = vmatprep.subr.mxu0 %v57
  %1362 = vmatpush1.msra.mxu0 %v56
  %1363 = vmatprep.subr.mxu0 %v61
  %1364 = vmatpush1.msra.mxu0 %v60
  %1365 = vmatprep.subr.mxu0 %v65
  %1366 = vmatpush1.msra.mxu0 %v64
  %1367 = vmatprep.subr.mxu0 %v69
  %1368 = vmatpush1.msra.mxu0 %v68
  %1369 = vmatprep.subr.mxu0 %v73
  %1370 = vmatpush1.msra.mxu0 %v72
  %1371 = vmatprep.subr.mxu0 %v77
  %1372 = vmatpush1.msra.mxu0 %v76
  %1373 = vmatprep.subr.mxu0 %v81
  %1374 = vmatpush1.msra.mxu0 %v80
  %1375 = vmatprep.subr.mxu0 %v85
  %1376 = vmatpush1.msra.mxu0 %v84
  %1377 = vmatprep.subr.mxu0 %v89
  %1378 = vmatpush1.msra.mxu0 %v88
  %1379 = vmatprep.subr.mxu0 %v93
  %1380 = vmatpush1.msra.mxu0 %v92
  %1381 = vmatprep.subr.mxu0 %v97
  %1382 = vmatpush1.msra.mxu0 %v96
  %1383 = vmatprep.subr.mxu0 %v101
  %1384 = vmatpush1.msra.mxu0 %v100
  %1385 = vmatprep.subr.mxu0 %v105
  %1386 = vmatpush1.msra.mxu0 %v104
  %1387 = vmatprep.subr.mxu0 0.0
  %1388 = vmatpush1.msra.mxu0 0.0
  %1389 = vmatprep.subr.mxu0 0.0
  %1390 = vmatpush1.msra.mxu0 0.0
  %1391 = vmatprep.subr.mxu0 0.0
  %1392 = vmatpush1.msra.mxu0 0.0
  %1393 = vmatprep.subr.mxu0 0.0
  %1394 = vmatpush1.msra.mxu0 0.0
  %1395 = vmatprep.subr.mxu0 0.0
  %1396 = vmatpush1.msra.mxu0 0.0
  %1397 = vmatprep.subr.mxu0 0.0
  %1398 = vmatpush1.msra.mxu0 0.0
  %1399 = vmatprep.subr.mxu0 0.0
  %1400 = vmatpush1.msra.mxu0 0.0
  %1401 = vmatprep.subr.mxu0 0.0
  %1402 = vmatpush1.msra.mxu0 0.0
  %1403 = vmatprep.subr.mxu0 0.0
  %1404 = vmatpush1.msra.mxu0 0.0
  %1405 = vmatprep.subr.mxu0 0.0
  %1406 = vmatpush1.msra.mxu0 0.0
  %1407 = vmatprep.subr.mxu0 0.0
  %1408 = vmatpush1.msra.mxu0 0.0
  %1409 = vmatprep.subr.mxu0 0.0
  %1410 = vmatpush1.msra.mxu0 0.0
  %1411 = vmatprep.subr.mxu0 0.0
  %1412 = vmatpush1.msra.mxu0 0.0
  %1413 = vmatprep.subr.mxu0 0.0
  %1414 = vmatpush1.msra.mxu0 0.0
  %1415 = vmatprep.subr.mxu0 0.0
  %1416 = vmatpush1.msra.mxu0 0.0
  %1417 = vmatprep.subr.mxu0 0.0
  %1418 = vmatpush1.msra.mxu0 0.0
  %1419 = vmatprep.mubr.f32.mxu0 0.0
  %1420 = vmatmul.mubr.f32.gmra.mrb[0].mxu0 %v1348
  %v1421 = vpop.f32.mrb[0].mxu0
  %v1422 = vadd.f32 0.0, %v1421
  %v1423 = vpop.f32.mrb[0].mxu0
  %v1424 = vadd.f32 0.0, %v1423
  %1425 = vdwg.mxu0
  %1426 = vmatprep.subr.mxu0 %v47
  %1427 = vmatpush1.msra.mxu0 %v46
  %1428 = vmatprep.subr.mxu0 %v51
  %1429 = vmatpush1.msra.mxu0 %v50
  %1430 = vmatprep.subr.mxu0 %v55
  %1431 = vmatpush1.msra.mxu0 %v54
  %1432 = vmatprep.subr.mxu0 %v59
  %1433 = vmatpush1.msra.mxu0 %v58
  %1434 = vmatprep.subr.mxu0 %v63
  %1435 = vmatpush1.msra.mxu0 %v62
  %1436 = vmatprep.subr.mxu0 %v67
  %1437 = vmatpush1.msra.mxu0 %v66
  %1438 = vmatprep.subr.mxu0 %v71
  %1439 = vmatpush1.msra.mxu0 %v70
  %1440 = vmatprep.subr.mxu0 %v75
  %1441 = vmatpush1.msra.mxu0 %v74
  %1442 = vmatprep.subr.mxu0 %v79
  %1443 = vmatpush1.msra.mxu0 %v78
  %1444 = vmatprep.subr.mxu0 %v83
  %1445 = vmatpush1.msra.mxu0 %v82
  %1446 = vmatprep.subr.mxu0 %v87
  %1447 = vmatpush1.msra.mxu0 %v86
  %1448 = vmatprep.subr.mxu0 %v91
  %1449 = vmatpush1.msra.mxu0 %v90
  %1450 = vmatprep.subr.mxu0 %v95
  %1451 = vmatpush1.msra.mxu0 %v94
  %1452 = vmatprep.subr.mxu0 %v99
  %1453 = vmatpush1.msra.mxu0 %v98
  %1454 = vmatprep.subr.mxu0 %v103
  %1455 = vmatpush1.msra.mxu0 %v102
  %1456 = vmatprep.subr.mxu0 %v107
  %1457 = vmatpush1.msra.mxu0 %v106
  %1458 = vmatprep.subr.mxu0 0.0
  %1459 = vmatpush1.msra.mxu0 0.0
  %1460 = vmatprep.subr.mxu0 0.0
  %1461 = vmatpush1.msra.mxu0 0.0
  %1462 = vmatprep.subr.mxu0 0.0
  %1463 = vmatpush1.msra.mxu0 0.0
  %1464 = vmatprep.subr.mxu0 0.0
  %1465 = vmatpush1.msra.mxu0 0.0
  %1466 = vmatprep.subr.mxu0 0.0
  %1467 = vmatpush1.msra.mxu0 0.0
  %1468 = vmatprep.subr.mxu0 0.0
  %1469 = vmatpush1.msra.mxu0 0.0
  %1470 = vmatprep.subr.mxu0 0.0
  %1471 = vmatpush1.msra.mxu0 0.0
  %1472 = vmatprep.subr.mxu0 0.0
  %1473 = vmatpush1.msra.mxu0 0.0
  %1474 = vmatprep.subr.mxu0 0.0
  %1475 = vmatpush1.msra.mxu0 0.0
  %1476 = vmatprep.subr.mxu0 0.0
  %1477 = vmatpush1.msra.mxu0 0.0
  %1478 = vmatprep.subr.mxu0 0.0
  %1479 = vmatpush1.msra.mxu0 0.0
  %1480 = vmatprep.subr.mxu0 0.0
  %1481 = vmatpush1.msra.mxu0 0.0
  %1482 = vmatprep.subr.mxu0 0.0
  %1483 = vmatpush1.msra.mxu0 0.0
  %1484 = vmatprep.subr.mxu0 0.0
  %1485 = vmatpush1.msra.mxu0 0.0
  %1486 = vmatprep.subr.mxu0 0.0
  %1487 = vmatpush1.msra.mxu0 0.0
  %1488 = vmatprep.subr.mxu0 0.0
  %1489 = vmatpush1.msra.mxu0 0.0
  %1490 = vmatprep.mubr.f32.mxu0 0.0
  %1491 = vmatmul.mubr.f32.gmra.mrb[0].mxu0 %v1348
  %v1492 = vpop.f32.mrb[0].mxu0
  %v1493 = vadd.f32 0.0, %v1492
  %v1494 = vpop.f32.mrb[0].mxu0
  %v1495 = vadd.f32 0.0, %v1494
  %1496 = vdwg.mxu0
  %v1497 = vadd.f32 %v1351, %v1422
  %v1498 = vadd.f32 %v1352, %v1424
  %v1499 = vadd.f32 %v1353, %v1493
  %v1500 = vadd.f32 %v1354, %v1495
  %v1501 = vxor.u32 %v1497, 2147483648
  %v1502 = vmul.f32 %v1501, 1.442695
  %v1503 = vpow.pop %v1502
  %v1504 = vadd.f32 %v1503, 1.0
  %v1505 = vrcp.pop %v1504
  %v1506 = vmul.f32 1.0, %v1505
  %v1507 = vxor.u32 %v1498, 2147483648
  %v1508 = vmul.f32 %v1507, 1.442695
  %v1509 = vpow.pop %v1508
  %v1510 = vadd.f32 %v1509, 1.0
  %v1511 = vrcp.pop %v1510
  %v1512 = vmul.f32 1.0, %v1511
  %v1513 = vtanh.pop %v1499
  %v1514 = vxor.u32 %v1500, 2147483648
  %v1515 = vmul.f32 %v1514, 1.442695
  %v1516 = vpow.pop %v1515
  %v1517 = vadd.f32 %v1516, 1.0
  %v1518 = vrcp.pop %v1517
  %v1519 = vmul.f32 1.0, %v1518
  %v1520 = vmul.f32 %v1512, %v1345
  %v1521 = vmul.f32 %v1506, %v1513
  %v1522 = vadd.f32 %v1520, %v1521
  %v1523 = vtanh.pop %v1522
  %v1524 = vmul.f32 %v1519, %v1523
  %1526 = vset.pattern.permute.xlu0 0
  %1527 = vperm.xlu0 %1526, %v1350
  %v1528 = vpop.permute.xlu0 %1527
  %v1530 = vmul.f32 %v1528, %v1522
  %v1531 = vsub.f32 1.0, %v1350
  %1533 = vset.pattern.permute.xlu0 0
  %1534 = vperm.xlu0 %1533, %v1531
  %v1535 = vpop.permute.xlu0 %1534
  %v1537 = vmul.f32 %v1535, %v1345
  %v1538 = vadd.f32 %v1530, %v1537
  %v1539 = vmul.f32 %v1528, %v1524
  %v1540 = vmul.f32 %v1535, %v1348
  %v1541 = vadd.f32 %v1539, %v1540
  %s1542 = scalar_lea.vmem %s1, 48
  %v1543 = vld [vmem:[%s1542] sm:$0xff]
  %v1544 = vadd.f32 %v260, %v40
  %v1545 = vadd.f32 %v262, %v41
  %v1546 = vadd.f32 %v373, %v42
  %v1547 = vadd.f32 %v375, %v43
  %1548 = vmatprep.subr.mxu0 %v45
  %1549 = vmatpush1.msra.mxu0 %v44
  %1550 = vmatprep.subr.mxu0 %v49
  %1551 = vmatpush1.msra.mxu0 %v48
  %1552 = vmatprep.subr.mxu0 %v53
  %1553 = vmatpush1.msra.mxu0 %v52
  %1554 = vmatprep.subr.mxu0 %v57
  %1555 = vmatpush1.msra.mxu0 %v56
  %1556 = vmatprep.subr.mxu0 %v61
  %1557 = vmatpush1.msra.mxu0 %v60
  %1558 = vmatprep.subr.mxu0 %v65
  %1559 = vmatpush1.msra.mxu0 %v64
  %1560 = vmatprep.subr.mxu0 %v69
  %1561 = vmatpush1.msra.mxu0 %v68
  %1562 = vmatprep.subr.mxu0 %v73
  %1563 = vmatpush1.msra.mxu0 %v72
  %1564 = vmatprep.subr.mxu0 %v77
  %1565 = vmatpush1.msra.mxu0 %v76
  %1566 = vmatprep.subr.mxu0 %v81
  %1567 = vmatpush1.msra.mxu0 %v80
  %1568 = vmatprep.subr.mxu0 %v85
  %1569 = vmatpush1.msra.mxu0 %v84
  %1570 = vmatprep.subr.mxu0 %v89
  %1571 = vmatpush1.msra.mxu0 %v88
  %1572 = vmatprep.subr.mxu0 %v93
  %1573 = vmatpush1.msra.mxu0 %v92
  %1574 = vmatprep.subr.mxu0 %v97
  %1575 = vmatpush1.msra.mxu0 %v96
  %1576 = vmatprep.subr.mxu0 %v101
  %1577 = vmatpush1.msra.mxu0 %v100
  %1578 = vmatprep.subr.mxu0 %v105
  %1579 = vmatpush1.msra.mxu0 %v104
  %1580 = vmatprep.subr.mxu0 0.0
  %1581 = vmatpush1.msra.mxu0 0.0
  %1582 = vmatprep.subr.mxu0 0.0
  %1583 = vmatpush1.msra.mxu0 0.0
  %1584 = vmatprep.subr.mxu0 0.0
  %1585 = vmatpush1.msra.mxu0 0.0
  %1586 = vmatprep.subr.mxu0 0.0
  %1587 = vmatpush1.msra.mxu0 0.0
  %1588 = vmatprep.subr.mxu0 0.0
  %1589 = vmatpush1.msra.mxu0 0.0
  %1590 = vmatprep.subr.mxu0 0.0
  %1591 = vmatpush1.msra.mxu0 0.0
  %1592 = vmatprep.subr.mxu0 0.0
  %1593 = vmatpush1.msra.mxu0 0.0
  %1594 = vmatprep.subr.mxu0 0.0
  %1595 = vmatpush1.msra.mxu0 0.0
  %1596 = vmatprep.subr.mxu0 0.0
  %1597 = vmatpush1.msra.mxu0 0.0
  %1598 = vmatprep.subr.mxu0 0.0
  %1599 = vmatpush1.msra.mxu0 0.0
  %1600 = vmatprep.subr.mxu0 0.0
  %1601 = vmatpush1.msra.mxu0 0.0
  %1602 = vmatprep.subr.mxu0 0.0
  %1603 = vmatpush1.msra.mxu0 0.0
  %1604 = vmatprep.subr.mxu0 0.0
  %1605 = vmatpush1.msra.mxu0 0.0
  %1606 = vmatprep.subr.mxu0 0.0
  %1607 = vmatpush1.msra.mxu0 0.0
  %1608 = vmatprep.subr.mxu0 0.0
  %1609 = vmatpush1.msra.mxu0 0.0
  %1610 = vmatprep.subr.mxu0 0.0
  %1611 = vmatpush1.msra.mxu0 0.0
  %1612 = vmatprep.mubr.f32.mxu0 0.0
  %1613 = vmatmul.mubr.f32.gmra.mrb[0].mxu0 %v1541
  %v1614 = vpop.f32.mrb[0].mxu0
  %v1615 = vadd.f32 0.0, %v1614
  %v1616 = vpop.f32.mrb[0].mxu0
  %v1617 = vadd.f32 0.0, %v1616
  %1618 = vdwg.mxu0
  %1619 = vmatprep.subr.mxu0 %v47
  %1620 = vmatpush1.msra.mxu0 %v46
  %1621 = vmatprep.subr.mxu0 %v51
  %1622 = vmatpush1.msra.mxu0 %v50
  %1623 = vmatprep.subr.mxu0 %v55
  %1624 = vmatpush1.msra.mxu0 %v54
  %1625 = vmatprep.subr.mxu0 %v59
  %1626 = vmatpush1.msra.mxu0 %v58
  %1627 = vmatprep.subr.mxu0 %v63
  %1628 = vmatpush1.msra.mxu0 %v62
  %1629 = vmatprep.subr.mxu0 %v67
  %1630 = vmatpush1.msra.mxu0 %v66
  %1631 = vmatprep.subr.mxu0 %v71
  %1632 = vmatpush1.msra.mxu0 %v70
  %1633 = vmatprep.subr.mxu0 %v75
  %1634 = vmatpush1.msra.mxu0 %v74
  %1635 = vmatprep.subr.mxu0 %v79
  %1636 = vmatpush1.msra.mxu0 %v78
  %1637 = vmatprep.subr.mxu0 %v83
  %1638 = vmatpush1.msra.mxu0 %v82
  %1639 = vmatprep.subr.mxu0 %v87
  %1640 = vmatpush1.msra.mxu0 %v86
  %1641 = vmatprep.subr.mxu0 %v91
  %1642 = vmatpush1.msra.mxu0 %v90
  %1643 = vmatprep.subr.mxu0 %v95
  %1644 = vmatpush1.msra.mxu0 %v94
  %1645 = vmatprep.subr.mxu0 %v99
  %1646 = vmatpush1.msra.mxu0 %v98
  %1647 = vmatprep.subr.mxu0 %v103
  %1648 = vmatpush1.msra.mxu0 %v102
  %1649 = vmatprep.subr.mxu0 %v107
  %1650 = vmatpush1.msra.mxu0 %v106
  %1651 = vmatprep.subr.mxu0 0.0
  %1652 = vmatpush1.msra.mxu0 0.0
  %1653 = vmatprep.subr.mxu0 0.0
  %1654 = vmatpush1.msra.mxu0 0.0
  %1655 = vmatprep.subr.mxu0 0.0
  %1656 = vmatpush1.msra.mxu0 0.0
  %1657 = vmatprep.subr.mxu0 0.0
  %1658 = vmatpush1.msra.mxu0 0.0
  %1659 = vmatprep.subr.mxu0 0.0
  %1660 = vmatpush1.msra.mxu0 0.0
  %1661 = vmatprep.subr.mxu0 0.0
  %1662 = vmatpush1.msra.mxu0 0.0
  %1663 = vmatprep.subr.mxu0 0.0
  %1664 = vmatpush1.msra.mxu0 0.0
  %1665 = vmatprep.subr.mxu0 0.0
  %1666 = vmatpush1.msra.mxu0 0.0
  %1667 = vmatprep.subr.mxu0 0.0
  %1668 = vmatpush1.msra.mxu0 0.0
  %1669 = vmatprep.subr.mxu0 0.0
  %1670 = vmatpush1.msra.mxu0 0.0
  %1671 = vmatprep.subr.mxu0 0.0
  %1672 = vmatpush1.msra.mxu0 0.0
  %1673 = vmatprep.subr.mxu0 0.0
  %1674 = vmatpush1.msra.mxu0 0.0
  %1675 = vmatprep.subr.mxu0 0.0
  %1676 = vmatpush1.msra.mxu0 0.0
  %1677 = vmatprep.subr.mxu0 0.0
  %1678 = vmatpush1.msra.mxu0 0.0
  %1679 = vmatprep.subr.mxu0 0.0
  %1680 = vmatpush1.msra.mxu0 0.0
  %1681 = vmatprep.subr.mxu0 0.0
  %1682 = vmatpush1.msra.mxu0 0.0
  %1683 = vmatprep.mubr.f32.mxu0 0.0
  %1684 = vmatmul.mubr.f32.gmra.mrb[0].mxu0 %v1541
  %v1685 = vpop.f32.mrb[0].mxu0
  %v1686 = vadd.f32 0.0, %v1685
  %v1687 = vpop.f32.mrb[0].mxu0
  %v1688 = vadd.f32 0.0, %v1687
  %1689 = vdwg.mxu0
  %v1690 = vadd.f32 %v1544, %v1615
  %v1691 = vadd.f32 %v1545, %v1617
  %v1692 = vadd.f32 %v1546, %v1686
  %v1693 = vadd.f32 %v1547, %v1688
  %v1694 = vxor.u32 %v1690, 2147483648
  %v1695 = vmul.f32 %v1694, 1.442695
  %v1696 = vpow.pop %v1695
  %v1697 = vadd.f32 %v1696, 1.0
  %v1698 = vrcp.pop %v1697
  %v1699 = vmul.f32 1.0, %v1698
  %v1700 = vxor.u32 %v1691, 2147483648
  %v1701 = vmul.f32 %v1700, 1.442695
  %v1702 = vpow.pop %v1701
  %v1703 = vadd.f32 %v1702, 1.0
  %v1704 = vrcp.pop %v1703
  %v1705 = vmul.f32 1.0, %v1704
  %v1706 = vtanh.pop %v1692
  %v1707 = vxor.u32 %v1693, 2147483648
  %v1708 = vmul.f32 %v1707, 1.442695
  %v1709 = vpow.pop %v1708
  %v1710 = vadd.f32 %v1709, 1.0
  %v1711 = vrcp.pop %v1710
  %v1712 = vmul.f32 1.0, %v1711
  %v1713 = vmul.f32 %v1705, %v1538
  %v1714 = vmul.f32 %v1699, %v1706
  %v1715 = vadd.f32 %v1713, %v1714
  %v1716 = vtanh.pop %v1715
  %v1717 = vmul.f32 %v1712, %v1716
  %1719 = vset.pattern.permute.xlu0 0
  %1720 = vperm.xlu0 %1719, %v1543
  %v1721 = vpop.permute.xlu0 %1720
  %v1723 = vmul.f32 %v1721, %v1715
  %v1724 = vsub.f32 1.0, %v1543
  %1726 = vset.pattern.permute.xlu0 0
  %1727 = vperm.xlu0 %1726, %v1724
  %v1728 = vpop.permute.xlu0 %1727
  %v1730 = vmul.f32 %v1728, %v1538
  %v1731 = vadd.f32 %v1723, %v1730
  %v1732 = vmul.f32 %v1721, %v1717
  %v1733 = vmul.f32 %v1728, %v1541
  %v1734 = vadd.f32 %v1732, %v1733
  %s1735 = scalar_lea.vmem %s1, 56
  %v1736 = vld [vmem:[%s1735] sm:$0xff]
  %v1737 = vadd.f32 %v266, %v40
  %v1738 = vadd.f32 %v268, %v41
  %v1739 = vadd.f32 %v379, %v42
  %v1740 = vadd.f32 %v381, %v43
  %1741 = vmatprep.subr.mxu0 %v45
  %1742 = vmatpush1.msra.mxu0 %v44
  %1743 = vmatprep.subr.mxu0 %v49
  %1744 = vmatpush1.msra.mxu0 %v48
  %1745 = vmatprep.subr.mxu0 %v53
  %1746 = vmatpush1.msra.mxu0 %v52
  %1747 = vmatprep.subr.mxu0 %v57
  %1748 = vmatpush1.msra.mxu0 %v56
  %1749 = vmatprep.subr.mxu0 %v61
  %1750 = vmatpush1.msra.mxu0 %v60
  %1751 = vmatprep.subr.mxu0 %v65
  %1752 = vmatpush1.msra.mxu0 %v64
  %1753 = vmatprep.subr.mxu0 %v69
  %1754 = vmatpush1.msra.mxu0 %v68
  %1755 = vmatprep.subr.mxu0 %v73
  %1756 = vmatpush1.msra.mxu0 %v72
  %1757 = vmatprep.subr.mxu0 %v77
  %1758 = vmatpush1.msra.mxu0 %v76
  %1759 = vmatprep.subr.mxu0 %v81
  %1760 = vmatpush1.msra.mxu0 %v80
  %1761 = vmatprep.subr.mxu0 %v85
  %1762 = vmatpush1.msra.mxu0 %v84
  %1763 = vmatprep.subr.mxu0 %v89
  %1764 = vmatpush1.msra.mxu0 %v88
  %1765 = vmatprep.subr.mxu0 %v93
  %1766 = vmatpush1.msra.mxu0 %v92
  %1767 = vmatprep.subr.mxu0 %v97
  %1768 = vmatpush1.msra.mxu0 %v96
  %1769 = vmatprep.subr.mxu0 %v101
  %1770 = vmatpush1.msra.mxu0 %v100
  %1771 = vmatprep.subr.mxu0 %v105
  %1772 = vmatpush1.msra.mxu0 %v104
  %1773 = vmatprep.subr.mxu0 0.0
  %1774 = vmatpush1.msra.mxu0 0.0
  %1775 = vmatprep.subr.mxu0 0.0
  %1776 = vmatpush1.msra.mxu0 0.0
  %1777 = vmatprep.subr.mxu0 0.0
  %1778 = vmatpush1.msra.mxu0 0.0
  %1779 = vmatprep.subr.mxu0 0.0
  %1780 = vmatpush1.msra.mxu0 0.0
  %1781 = vmatprep.subr.mxu0 0.0
  %1782 = vmatpush1.msra.mxu0 0.0
  %1783 = vmatprep.subr.mxu0 0.0
  %1784 = vmatpush1.msra.mxu0 0.0
  %1785 = vmatprep.subr.mxu0 0.0
  %1786 = vmatpush1.msra.mxu0 0.0
  %1787 = vmatprep.subr.mxu0 0.0
  %1788 = vmatpush1.msra.mxu0 0.0
  %1789 = vmatprep.subr.mxu0 0.0
  %1790 = vmatpush1.msra.mxu0 0.0
  %1791 = vmatprep.subr.mxu0 0.0
  %1792 = vmatpush1.msra.mxu0 0.0
  %1793 = vmatprep.subr.mxu0 0.0
  %1794 = vmatpush1.msra.mxu0 0.0
  %1795 = vmatprep.subr.mxu0 0.0
  %1796 = vmatpush1.msra.mxu0 0.0
  %1797 = vmatprep.subr.mxu0 0.0
  %1798 = vmatpush1.msra.mxu0 0.0
  %1799 = vmatprep.subr.mxu0 0.0
  %1800 = vmatpush1.msra.mxu0 0.0
  %1801 = vmatprep.subr.mxu0 0.0
  %1802 = vmatpush1.msra.mxu0 0.0
  %1803 = vmatprep.subr.mxu0 0.0
  %1804 = vmatpush1.msra.mxu0 0.0
  %1805 = vmatprep.mubr.f32.mxu0 0.0
  %1806 = vmatmul.mubr.f32.gmra.mrb[0].mxu0 %v1734
  %v1807 = vpop.f32.mrb[0].mxu0
  %v1808 = vadd.f32 0.0, %v1807
  %v1809 = vpop.f32.mrb[0].mxu0
  %v1810 = vadd.f32 0.0, %v1809
  %1811 = vdwg.mxu0
  %1812 = vmatprep.subr.mxu0 %v47
  %1813 = vmatpush1.msra.mxu0 %v46
  %1814 = vmatprep.subr.mxu0 %v51
  %1815 = vmatpush1.msra.mxu0 %v50
  %1816 = vmatprep.subr.mxu0 %v55
  %1817 = vmatpush1.msra.mxu0 %v54
  %1818 = vmatprep.subr.mxu0 %v59
  %1819 = vmatpush1.msra.mxu0 %v58
  %1820 = vmatprep.subr.mxu0 %v63
  %1821 = vmatpush1.msra.mxu0 %v62
  %1822 = vmatprep.subr.mxu0 %v67
  %1823 = vmatpush1.msra.mxu0 %v66
  %1824 = vmatprep.subr.mxu0 %v71
  %1825 = vmatpush1.msra.mxu0 %v70
  %1826 = vmatprep.subr.mxu0 %v75
  %1827 = vmatpush1.msra.mxu0 %v74
  %1828 = vmatprep.subr.mxu0 %v79
  %1829 = vmatpush1.msra.mxu0 %v78
  %1830 = vmatprep.subr.mxu0 %v83
  %1831 = vmatpush1.msra.mxu0 %v82
  %1832 = vmatprep.subr.mxu0 %v87
  %1833 = vmatpush1.msra.mxu0 %v86
  %1834 = vmatprep.subr.mxu0 %v91
  %1835 = vmatpush1.msra.mxu0 %v90
  %1836 = vmatprep.subr.mxu0 %v95
  %1837 = vmatpush1.msra.mxu0 %v94
  %1838 = vmatprep.subr.mxu0 %v99
  %1839 = vmatpush1.msra.mxu0 %v98
  %1840 = vmatprep.subr.mxu0 %v103
  %1841 = vmatpush1.msra.mxu0 %v102
  %1842 = vmatprep.subr.mxu0 %v107
  %1843 = vmatpush1.msra.mxu0 %v106
  %1844 = vmatprep.subr.mxu0 0.0
  %1845 = vmatpush1.msra.mxu0 0.0
  %1846 = vmatprep.subr.mxu0 0.0
  %1847 = vmatpush1.msra.mxu0 0.0
  %1848 = vmatprep.subr.mxu0 0.0
  %1849 = vmatpush1.msra.mxu0 0.0
  %1850 = vmatprep.subr.mxu0 0.0
  %1851 = vmatpush1.msra.mxu0 0.0
  %1852 = vmatprep.subr.mxu0 0.0
  %1853 = vmatpush1.msra.mxu0 0.0
  %1854 = vmatprep.subr.mxu0 0.0
  %1855 = vmatpush1.msra.mxu0 0.0
  %1856 = vmatprep.subr.mxu0 0.0
  %1857 = vmatpush1.msra.mxu0 0.0
  %1858 = vmatprep.subr.mxu0 0.0
  %1859 = vmatpush1.msra.mxu0 0.0
  %1860 = vmatprep.subr.mxu0 0.0
  %1861 = vmatpush1.msra.mxu0 0.0
  %1862 = vmatprep.subr.mxu0 0.0
  %1863 = vmatpush1.msra.mxu0 0.0
  %1864 = vmatprep.subr.mxu0 0.0
  %1865 = vmatpush1.msra.mxu0 0.0
  %1866 = vmatprep.subr.mxu0 0.0
  %1867 = vmatpush1.msra.mxu0 0.0
  %1868 = vmatprep.subr.mxu0 0.0
  %1869 = vmatpush1.msra.mxu0 0.0
  %1870 = vmatprep.subr.mxu0 0.0
  %1871 = vmatpush1.msra.mxu0 0.0
  %1872 = vmatprep.subr.mxu0 0.0
  %1873 = vmatpush1.msra.mxu0 0.0
  %1874 = vmatprep.subr.mxu0 0.0
  %1875 = vmatpush1.msra.mxu0 0.0
  %1876 = vmatprep.mubr.f32.mxu0 0.0
  %1877 = vmatmul.mubr.f32.gmra.mrb[0].mxu0 %v1734
  %v1878 = vpop.f32.mrb[0].mxu0
  %v1879 = vadd.f32 0.0, %v1878
  %v1880 = vpop.f32.mrb[0].mxu0
  %v1881 = vadd.f32 0.0, %v1880
  %1882 = vdwg.mxu0
  %v1883 = vadd.f32 %v1737, %v1808
  %v1884 = vadd.f32 %v1738, %v1810
  %v1885 = vadd.f32 %v1739, %v1879
  %v1886 = vadd.f32 %v1740, %v1881
  %v1887 = vxor.u32 %v1883, 2147483648
  %v1888 = vmul.f32 %v1887, 1.442695
  %v1889 = vpow.pop %v1888
  %v1890 = vadd.f32 %v1889, 1.0
  %v1891 = vrcp.pop %v1890
  %v1892 = vmul.f32 1.0, %v1891
  %v1893 = vxor.u32 %v1884, 2147483648
  %v1894 = vmul.f32 %v1893, 1.442695
  %v1895 = vpow.pop %v1894
  %v1896 = vadd.f32 %v1895, 1.0
  %v1897 = vrcp.pop %v1896
  %v1898 = vmul.f32 1.0, %v1897
  %v1899 = vtanh.pop %v1885
  %v1900 = vxor.u32 %v1886, 2147483648
  %v1901 = vmul.f32 %v1900, 1.442695
  %v1902 = vpow.pop %v1901
  %v1903 = vadd.f32 %v1902, 1.0
  %v1904 = vrcp.pop %v1903
  %v1905 = vmul.f32 1.0, %v1904
  %v1906 = vmul.f32 %v1898, %v1731
  %v1907 = vmul.f32 %v1892, %v1899
  %v1908 = vadd.f32 %v1906, %v1907
  %v1909 = vtanh.pop %v1908
  %v1910 = vmul.f32 %v1905, %v1909
  %1912 = vset.pattern.permute.xlu0 0
  %1913 = vperm.xlu0 %1912, %v1736
  %v1914 = vpop.permute.xlu0 %1913
  %v1916 = vmul.f32 %v1914, %v1908
  %v1917 = vsub.f32 1.0, %v1736
  %1919 = vset.pattern.permute.xlu0 0
  %1920 = vperm.xlu0 %1919, %v1917
  %v1921 = vpop.permute.xlu0 %1920
  %v1923 = vmul.f32 %v1921, %v1731
  %v1924 = vadd.f32 %v1916, %v1923
  %v1925 = vmul.f32 %v1914, %v1910
  %v1926 = vmul.f32 %v1921, %v1734
  %v1927 = vadd.f32 %v1925, %v1926
  %1928 = vst [vmem:[#allocation2] sm:$0xff] %v1927
  %1929 = vst [vmem:[#allocation3] sm:$0xff] %v1924
  %v1930 = vld [vmem:[%s7] sm:$0xff]
  %v1931 = vld [vmem:[%s7 + $0x8] sm:$0xff]
  %v1932 = vld [vmem:[%s7 + $0x10] sm:$0xff]
  %v1933 = vld [vmem:[%s7 + $0x18] sm:$0xff]
  %v1934 = vld [vmem:[%s7 + $0x20] sm:$0xff]
  %v1935 = vld [vmem:[%s7 + $0x28] sm:$0xff]
  %v1936 = vld [vmem:[%s7 + $0x30] sm:$0xff]
  %v1937 = vld [vmem:[%s7 + $0x38] sm:$0xff]
  %v1938 = vld [vmem:[%s7 + $0x40] sm:$0xff]
  %v1939 = vld [vmem:[%s7 + $0x48] sm:$0xff]
  %v1940 = vld [vmem:[%s7 + $0x50] sm:$0xff]
  %v1941 = vld [vmem:[%s7 + $0x58] sm:$0xff]
  %v1942 = vld [vmem:[%s7 + $0x60] sm:$0xff]
  %v1943 = vld [vmem:[%s7 + $0x68] sm:$0xff]
  %v1944 = vld [vmem:[%s7 + $0x70] sm:$0xff]
  %v1945 = vld [vmem:[%s7 + $0x78] sm:$0xff]
  %v1946 = vld [vmem:[%s8] sm:$0x1]
  %v1948 = vlaneseq
  %v1949 = vshrl.u32 %v1948, 7
  %v1950 = vsub.s32 0, %v1949
  %v1951 = vrot.slane %v1946, %v1950
  %1953 = vmatprep.subr.mxu0 0.0
  %1954 = vmatpush1.msra.mxu0 %v1930
  %1955 = vmatprep.subr.mxu0 0.0
  %1956 = vmatpush1.msra.mxu0 %v1931
  %1957 = vmatprep.subr.mxu0 0.0
  %1958 = vmatpush1.msra.mxu0 %v1932
  %1959 = vmatprep.subr.mxu0 0.0
  %1960 = vmatpush1.msra.mxu0 %v1933
  %1961 = vmatprep.subr.mxu0 0.0
  %1962 = vmatpush1.msra.mxu0 %v1934
  %1963 = vmatprep.subr.mxu0 0.0
  %1964 = vmatpush1.msra.mxu0 %v1935
  %1965 = vmatprep.subr.mxu0 0.0
  %1966 = vmatpush1.msra.mxu0 %v1936
  %1967 = vmatprep.subr.mxu0 0.0
  %1968 = vmatpush1.msra.mxu0 %v1937
  %1969 = vmatprep.subr.mxu0 0.0
  %1970 = vmatpush1.msra.mxu0 %v1938
  %1971 = vmatprep.subr.mxu0 0.0
  %1972 = vmatpush1.msra.mxu0 %v1939
  %1973 = vmatprep.subr.mxu0 0.0
  %1974 = vmatpush1.msra.mxu0 %v1940
  %1975 = vmatprep.subr.mxu0 0.0
  %1976 = vmatpush1.msra.mxu0 %v1941
  %1977 = vmatprep.subr.mxu0 0.0
  %1978 = vmatpush1.msra.mxu0 %v1942
  %1979 = vmatprep.subr.mxu0 0.0
  %1980 = vmatpush1.msra.mxu0 %v1943
  %1981 = vmatprep.subr.mxu0 0.0
  %1982 = vmatpush1.msra.mxu0 %v1944
  %1983 = vmatprep.subr.mxu0 0.0
  %1984 = vmatpush1.msra.mxu0 %v1945
  %1985 = vmatprep.subr.mxu0 0.0
  %1986 = vmatpush1.msra.mxu0 0.0
  %1987 = vmatprep.subr.mxu0 0.0
  %1988 = vmatpush1.msra.mxu0 0.0
  %1989 = vmatprep.subr.mxu0 0.0
  %1990 = vmatpush1.msra.mxu0 0.0
  %1991 = vmatprep.subr.mxu0 0.0
  %1992 = vmatpush1.msra.mxu0 0.0
  %1993 = vmatprep.subr.mxu0 0.0
  %1994 = vmatpush1.msra.mxu0 0.0
  %1995 = vmatprep.subr.mxu0 0.0
  %1996 = vmatpush1.msra.mxu0 0.0
  %1997 = vmatprep.subr.mxu0 0.0
  %1998 = vmatpush1.msra.mxu0 0.0
  %1999 = vmatprep.subr.mxu0 0.0
  %2000 = vmatpush1.msra.mxu0 0.0
  %2001 = vmatprep.subr.mxu0 0.0
  %2002 = vmatpush1.msra.mxu0 0.0
  %2003 = vmatprep.subr.mxu0 0.0
  %2004 = vmatpush1.msra.mxu0 0.0
  %2005 = vmatprep.subr.mxu0 0.0
  %2006 = vmatpush1.msra.mxu0 0.0
  %2007 = vmatprep.subr.mxu0 0.0
  %2008 = vmatpush1.msra.mxu0 0.0
  %2009 = vmatprep.subr.mxu0 0.0
  %2010 = vmatpush1.msra.mxu0 0.0
  %2011 = vmatprep.subr.mxu0 0.0
  %2012 = vmatpush1.msra.mxu0 0.0
  %2013 = vmatprep.subr.mxu0 0.0
  %2014 = vmatpush1.msra.mxu0 0.0
  %2015 = vmatprep.subr.mxu0 0.0
  %2016 = vmatpush1.msra.mxu0 0.0
  %2017 = vmatprep.mubr.f32.mxu0 0.0
  %2018 = vmatmul.mubr.f32.gmra.mrb[0].mxu0 %v576
  %v2019 = vpop.f32.mrb[0].mxu0
  %v2020 = vadd.f32 %v1951, %v2019
  %v2021 = vpop.f32.mrb[0].mxu0
  %2022 = vmatprep.mubr.f32.mxu0 0.0
  %2023 = vmatmul.mubr.f32.gmra.mrb[0].mxu0 %v769
  %v2024 = vpop.f32.mrb[0].mxu0
  %v2025 = vadd.f32 %v1951, %v2024
  %v2026 = vpop.f32.mrb[0].mxu0
  %2027 = vmatprep.mubr.f32.mxu0 0.0
  %2028 = vmatmul.mubr.f32.gmra.mrb[0].mxu0 %v962
  %v2029 = vpop.f32.mrb[0].mxu0
  %v2030 = vadd.f32 %v1951, %v2029
  %v2031 = vpop.f32.mrb[0].mxu0
  %2032 = vmatprep.mubr.f32.mxu0 0.0
  %2033 = vmatmul.mubr.f32.gmra.mrb[0].mxu0 %v1155
  %v2034 = vpop.f32.mrb[0].mxu0
  %v2035 = vadd.f32 %v1951, %v2034
  %v2036 = vpop.f32.mrb[0].mxu0
  %2037 = vmatprep.mubr.f32.mxu0 0.0
  %2038 = vmatmul.mubr.f32.gmra.mrb[0].mxu0 %v1348
  %v2039 = vpop.f32.mrb[0].mxu0
  %v2040 = vadd.f32 %v1951, %v2039
  %v2041 = vpop.f32.mrb[0].mxu0
  %2042 = vmatprep.mubr.f32.mxu0 0.0
  %2043 = vmatmul.mubr.f32.gmra.mrb[0].mxu0 %v1541
  %v2044 = vpop.f32.mrb[0].mxu0
  %v2045 = vadd.f32 %v1951, %v2044
  %v2046 = vpop.f32.mrb[0].mxu0
  %2047 = vmatprep.mubr.f32.mxu0 0.0
  %2048 = vmatmul.mubr.f32.gmra.mrb[0].mxu0 %v1734
  %v2049 = vpop.f32.mrb[0].mxu0
  %v2050 = vadd.f32 %v1951, %v2049
  %v2051 = vpop.f32.mrb[0].mxu0
  %2052 = vmatprep.mubr.f32.mxu0 0.0
  %2053 = vmatmul.mubr.f32.gmra.mrb[0].mxu0 %v1927
  %v2054 = vpop.f32.mrb[0].mxu0
  %v2055 = vadd.f32 %v1951, %v2054
  %v2056 = vpop.f32.mrb[0].mxu0
  %2057 = vdwg.mxu0
  %2058 = vmax.xlane.f32.xlu0 %v2020
  %v2059 = vpop.xlane.xlu0 %2058
  %2060 = vmax.xlane.f32.xlu0 %v2025
  %v2061 = vpop.xlane.xlu0 %2060
  %2062 = vmax.xlane.f32.xlu0 %v2030
  %v2063 = vpop.xlane.xlu0 %2062
  %2064 = vmax.xlane.f32.xlu0 %v2035
  %v2065 = vpop.xlane.xlu0 %2064
  %2066 = vmax.xlane.f32.xlu0 %v2040
  %v2067 = vpop.xlane.xlu0 %2066
  %2068 = vmax.xlane.f32.xlu0 %v2045
  %v2069 = vpop.xlane.xlu0 %2068
  %2070 = vmax.xlane.f32.xlu0 %v2050
  %v2071 = vpop.xlane.xlu0 %2070
  %2072 = vmax.xlane.f32.xlu0 %v2055
  %v2073 = vpop.xlane.xlu0 %2072
  %v2074 = vsub.f32 %v2020, %v2059
  %v2075 = vsub.f32 %v2025, %v2061
  %v2076 = vsub.f32 %v2030, %v2063
  %v2077 = vsub.f32 %v2035, %v2065
  %v2078 = vsub.f32 %v2040, %v2067
  %v2079 = vsub.f32 %v2045, %v2069
  %v2080 = vsub.f32 %v2050, %v2071
  %v2081 = vsub.f32 %v2055, %v2073
  %v2082 = vmul.f32 %v2074, 1.442695
  %v2083 = vpow.pop %v2082
  %v2084 = vmul.f32 %v2075, 1.442695
  %v2085 = vpow.pop %v2084
  %v2086 = vmul.f32 %v2076, 1.442695
  %v2087 = vpow.pop %v2086
  %v2088 = vmul.f32 %v2077, 1.442695
  %v2089 = vpow.pop %v2088
  %v2090 = vmul.f32 %v2078, 1.442695
  %v2091 = vpow.pop %v2090
  %v2092 = vmul.f32 %v2079, 1.442695
  %v2093 = vpow.pop %v2092
  %v2094 = vmul.f32 %v2080, 1.442695
  %v2095 = vpow.pop %v2094
  %v2096 = vmul.f32 %v2081, 1.442695
  %v2097 = vpow.pop %v2096
  %2098 = vadd.xlane.f32.xlu0 %v2083
  %v2099 = vpop.xlane.xlu0 %2098
  %2100 = vadd.xlane.f32.xlu0 %v2085
  %v2101 = vpop.xlane.xlu0 %2100
  %2102 = vadd.xlane.f32.xlu0 %v2087
  %v2103 = vpop.xlane.xlu0 %2102
  %2104 = vadd.xlane.f32.xlu0 %v2089
  %v2105 = vpop.xlane.xlu0 %2104
  %2106 = vadd.xlane.f32.xlu0 %v2091
  %v2107 = vpop.xlane.xlu0 %2106
  %2108 = vadd.xlane.f32.xlu0 %v2093
  %v2109 = vpop.xlane.xlu0 %2108
  %2110 = vadd.xlane.f32.xlu0 %v2095
  %v2111 = vpop.xlane.xlu0 %2110
  %2112 = vadd.xlane.f32.xlu0 %v2097
  %v2113 = vpop.xlane.xlu0 %2112
  %v2114 = vlog2.pop %v2099
  %v2115 = vmul.f32 %v2114, 0.6931472
  %v2116 = vlog2.pop %v2101
  %v2117 = vmul.f32 %v2116, 0.6931472
  %v2118 = vlog2.pop %v2103
  %v2119 = vmul.f32 %v2118, 0.6931472
  %v2120 = vlog2.pop %v2105
  %v2121 = vmul.f32 %v2120, 0.6931472
  %v2122 = vlog2.pop %v2107
  %v2123 = vmul.f32 %v2122, 0.6931472
  %v2124 = vlog2.pop %v2109
  %v2125 = vmul.f32 %v2124, 0.6931472
  %v2126 = vlog2.pop %v2111
  %v2127 = vmul.f32 %v2126, 0.6931472
  %v2128 = vlog2.pop %v2113
  %v2129 = vmul.f32 %v2128, 0.6931472
  %v2130 = vsub.f32 %v2074, %v2115
  %v2131 = vsub.f32 %v2075, %v2117
  %v2132 = vsub.f32 %v2076, %v2119
  %v2133 = vsub.f32 %v2077, %v2121
  %v2134 = vsub.f32 %v2078, %v2123
  %v2135 = vsub.f32 %v2079, %v2125
  %v2136 = vsub.f32 %v2080, %v2127
  %v2137 = vsub.f32 %v2081, %v2129
  %2138 = vst [vmem:[%s9] sm:$0xff] %v2130
  %2139 = vst [vmem:[%s9 + $0x8] sm:$0xff] %v2131
  %2140 = vst [vmem:[%s9 + $0x10] sm:$0xff] %v2132
  %2141 = vst [vmem:[%s9 + $0x18] sm:$0xff] %v2133
  %2142 = vst [vmem:[%s9 + $0x20] sm:$0xff] %v2134
  %2143 = vst [vmem:[%s9 + $0x28] sm:$0xff] %v2135
  %2144 = vst [vmem:[%s9 + $0x30] sm:$0xff] %v2136
  %2145 = vst [vmem:[%s9 + $0x38] sm:$0xff] %v2137
  // Predicated region
  $region42: #{_forward_impl.3} parent=0 // pred_check
    _
  $region43: #{_forward_impl.3} parent=0 // pred_check_branch
    %2147 = sbr.rel (0) target = $region45
  $region44: #{_forward_impl.3} parent=0 // pred_region
    _
  $region45: #{_forward_impl.3} parent=0 // pred_fallthru
    _
  // Predicated region
  $region46: #{_forward_impl.3} parent=0 // pred_check
    _
  $region47: #{_forward_impl.3} parent=0 // pred_check_branch
    %2149 = sbr.rel (0) target = $region49
  $region48: #{_forward_impl.3} parent=0 // pred_region
    _
  $region49: #{_forward_impl.3} parent=0 // pred_fallthru
    _

</llo_original>
